<compile_context>
chip_gen: v6e
topology: v6e:2x2x1
jax: 0.10.0
libtpu: 0.0.40
codegen_flags: <defaults>
</compile_context>

<pallas_src>
from functools import partial

import jax
import jax.numpy as jnp
from jax.experimental import pallas as pl
from jax.experimental.pallas import tpu as pltpu

L = 128  # fc1 output features == Conv1d spatial length


def _shift_pm1(a):
    """Per-sample zero-padded +/-1 shifts along the spatial axis (axis=1).

    a: (TB, L, C).  Uses XLU rolls + boundary masks (no slice+concat repacks).
    a_m1[b, l] = a[b, l-1] (zero at l=0); a_p1[b, l] = a[b, l+1] (zero at L-1).
    """
    l = a.shape[1]
    pos = jax.lax.broadcasted_iota(jnp.int32, a.shape, 1)
    zero = jnp.zeros((), a.dtype)
    a_m1 = jnp.where(pos == 0, zero, pltpu.roll(a, 1, axis=1))
    a_p1 = jnp.where(pos == l - 1, zero, pltpu.roll(a, l - 1, axis=1))
    return a_m1, a_p1


def _conv_layer(a, w_ref, b_ref, relu):
    """'same' Conv1d (k=3, pad=1) as one bf16 matmul over the batched tile.

    a: (TB, L, Cin) f32; w_ref: (3*Cin, Cout) bf16 (taps folded k-major into
    the contraction dim); b_ref: (1, Cout) f32.  One matmul with M = TB*L,
    bf16 operands, f32 accumulation; bias/ReLU in f32.
    """
    tb, l, cin = a.shape
    a_m1, a_p1 = _shift_pm1(a)
    a_cat = jnp.concatenate([a_m1, a, a_p1], axis=2)          # (TB, L, 3*Cin)
    flat = a_cat.reshape(tb * l, 3 * cin).astype(jnp.bfloat16)
    out = jnp.dot(flat, w_ref[...], preferred_element_type=jnp.float32)
    out = out + b_ref[...]                                    # bias once / layer
    if relu:
        out = jnp.maximum(out, 0.0)
    return out.reshape(tb, l, -1)                             # (TB, L, Cout) f32


def raman_kernel(x_ref, fc1_w_ref, fc1_b_ref,
                 w1_ref, b1_ref, w2_ref, b2_ref, w3_ref, b3_ref,
                 w4_ref, b4_ref, w5_ref, b5_ref, o_ref, *, out1):
    tb = x_ref.shape[0]

    # fc1 + ReLU on the MXU: (TB, I) @ (I, 128) -> (TB, 128), f32.
    h = jnp.dot(x_ref[...], fc1_w_ref[...], preferred_element_type=jnp.float32)
    h = jnp.maximum(h + fc1_b_ref[...], 0.0)

    # unsqueeze(1): single relayout per tile to channel-last (TB, L, Cin=1).
    a = jnp.transpose(h.reshape(tb, 1, L), (0, 2, 1))         # (TB, L, 1)

    # conv1 (Cin=1, Cout=16) on the VPU: broadcast FMAs, keep the MXU free.
    w1 = w1_ref[...]                                          # (3, 1, 16)
    a_m1, a_p1 = _shift_pm1(a)
    a = a_m1 * w1[0] + a * w1[1] + a_p1 * w1[2] + b1_ref[...]
    a = jnp.maximum(a, 0.0)                                   # (TB, L, 16)

    # conv2..conv4: one big-M bf16 matmul per layer (taps folded into K).
    a = _conv_layer(a, w2_ref, b2_ref, relu=True)             # (TB, L, 32)
    a = _conv_layer(a, w3_ref, b3_ref, relu=True)             # (TB, L, 64)
    a = _conv_layer(a, w4_ref, b4_ref, relu=True)             # (TB, L, 128)

    if out1:
        # conv5 with Cout=1: off the MXU (tap-wise f32 FMAs + lane reduction),
        # result written lane-dense as (TB, L) -- no trailing transpose.
        w5 = w5_ref[...]                                      # (3, 128) f32
        a_m1, a_p1 = _shift_pm1(a)
        tmp = a_m1 * w5[0] + a * w5[1] + a_p1 * w5[2]         # (TB, L, 128)
        out = jnp.sum(tmp, axis=2) + b5_ref[0, 0]             # (TB, L)
        o_ref[...] = out.astype(o_ref.dtype)
    else:
        # General O: matmul conv5, lane-dense NCL output (TB, O, L).
        a = _conv_layer(a, w5_ref, b5_ref, relu=False)        # (TB, L, O)
        o_ref[...] = jnp.transpose(a, (0, 2, 1)).astype(o_ref.dtype)


def _pick_tile(B, batch_tile):
    """Batch tile: big enough to amortize per-step overhead, multiple of 8 when
    multi-tile, and biased toward an even tile count (2-TC chips)."""
    if B <= batch_tile:
        return B
    n_tiles = pl.cdiv(B, batch_tile)
    if n_tiles % 2:
        n_tiles += 1                          # even tile count for megacore
    tb = -(-B // n_tiles)                     # ceil
    tb = ((tb + 7) // 8) * 8                  # sublane-aligned rows
    return min(tb, batch_tile)


def raman_forward(x, params, *, output_size, batch_tile=32):
    B, input_size = x.shape
    tb = _pick_tile(B, batch_tile)
    grid = (pl.cdiv(B, tb),)
    out1 = (output_size == 1)

    # Pre-pack weights: fc1 pre-transposed (f32); conv2..5 taps folded to
    # (3*Cin, Cout) and pre-cast to bf16 (MXU operands); conv1 stays f32 (VPU).
    def fold_bf16(w):
        return w.reshape(w.shape[0] * w.shape[1], w.shape[2]).astype(jnp.bfloat16)

    if out1:
        w5_pack = params["w5"][:, :, 0]                       # (3, 128) f32 (VPU path)
        b5_pack = params["b5"].reshape(1, 1)
    else:
        w5_pack = fold_bf16(params["w5"])                     # (384, O) bf16
        b5_pack = params["b5"]

    args = (x,
            params["fc1_wT"], params["fc1_b"],
            params["w1"], params["b1"],
            fold_bf16(params["w2"]), params["b2"],
            fold_bf16(params["w3"]), params["b3"],
            fold_bf16(params["w4"]), params["b4"],
            w5_pack, b5_pack)

    def const_spec(shape):
        n = len(shape)
        return pl.BlockSpec(shape, lambda i, _n=n: (0,) * _n)

    in_specs = ([pl.BlockSpec((tb, input_size), lambda i: (i, 0))]
                + [const_spec(a.shape) for a in args[1:]])

    if out1:
        out_shape = jax.ShapeDtypeStruct((B, L), jnp.float32)
        out_spec = pl.BlockSpec((tb, L), lambda i: (i, 0))
        out_elems = B * L
    else:
        out_shape = jax.ShapeDtypeStruct((B, output_size, L), jnp.float32)
        out_spec = pl.BlockSpec((tb, output_size, L), lambda i: (i, 0, 0))
        out_elems = B * output_size * L

    flops_per_sample = (
        2 * input_size * 128                  # fc1
        + 2 * 3 * 1 * 16 * L                  # conv1
        + 2 * 3 * 16 * 32 * L                 # conv2
        + 2 * 3 * 32 * 64 * L                 # conv3
        + 2 * 3 * 64 * 128 * L                # conv4
        + 2 * 3 * 128 * output_size * L)      # conv5
    weight_bytes = sum(int(a.size) * a.dtype.itemsize for a in args[1:])
    cost = pl.CostEstimate(
        flops=int(B * flops_per_sample),
        transcendentals=0,
        bytes_accessed=int(4 * B * input_size + 4 * out_elems + weight_bytes))

    out = pl.pallas_call(
        partial(raman_kernel, out1=out1),
        out_shape=out_shape,
        grid=grid,
        in_specs=in_specs,
        out_specs=out_spec,
        compiler_params=pltpu.CompilerParams(
            dimension_semantics=("parallel",),
            vmem_limit_bytes=64 * 1024 * 1024),
        cost_estimate=cost,
    )(*args)

    # out1: already (B, 128) == PyTorch x.squeeze(1); else (B, O, 128) NCL.
    return out


def init_params(key, input_size, output_size):
    ks = jax.random.split(key, 12)

    def w(k, shape, scale=0.1):
        return jax.random.normal(k, shape, jnp.float32) * scale

    p = {
        "fc1_wT": w(ks[0], (input_size, 128)),
        "fc1_b": w(ks[1], (1, 128)),
    }
    chans = [(1, 16), (16, 32), (32, 64), (64, 128), (128, output_size)]
    for i, (cin, cout) in enumerate(chans, start=1):
        p[f"w{i}"] = w(ks[2 * i], (3, cin, cout))     # packed (K, Cin, Cout)
        p[f"b{i}"] = w(ks[2 * i + 1], (1, cout))
    return p


def torch_reference(x, p, output_size):
    """Pure-JAX f32 reference mimicking the PyTorch forward (NCL convs)."""
    h = jnp.maximum(x @ p["fc1_wT"] + p["fc1_b"], 0.0)       # (B, 128)
    h = h[:, None, :]                                        # (B, 1, 128)

    def conv(h, w, b, relu):
        w_oik = jnp.transpose(w, (2, 1, 0))                  # (Cout, Cin, K) torch layout
        out = jax.lax.conv_general_dilated(
            h, w_oik, window_strides=(1,), padding=[(1, 1)],
            dimension_numbers=("NCH", "OIH", "NCH"))
        out = out + b.reshape(1, -1, 1)
        return jnp.maximum(out, 0.0) if relu else out

    h = conv(h, p["w1"], p["b1"], True)
    h = conv(h, p["w2"], p["b2"], True)
    h = conv(h, p["w3"], p["b3"], True)
    h = conv(h, p["w4"], p["b4"], True)
    h = conv(h, p["w5"], p["b5"], False)                     # (B, O, 128)
    if output_size == 1:
        h = h[:, 0, :]
    return h


if __name__ == "__main__":
    key = jax.random.PRNGKey(0)
    k_param, k_x1, k_x2, k_x3, k_param2, k_x4 = jax.random.split(key, 6)

    # bf16 MXU operands (f32 accumulation) -> relaxed tolerance vs f32 reference.
    ATOL = RTOL = 5e-2

    # ---- output_size == 1 (the x.squeeze(1) case; VPU conv5, (B, 128) output)
    input_size, output_size = 16, 1
    params = init_params(k_param, input_size, output_size)
    fwd = jax.jit(partial(raman_forward, output_size=output_size))

    x1 = jax.random.normal(k_x1, (2, input_size), jnp.float32)
    out1 = jax.block_until_ready(fwd(x1, params))
    ref1 = torch_reference(x1, params, output_size)
    assert out1.shape == ref1.shape, (out1.shape, ref1.shape)
    assert bool(jnp.allclose(out1, ref1, atol=ATOL, rtol=RTOL)), "mismatch (B=2)"

    x2 = jax.random.normal(k_x2, (9, input_size), jnp.float32)
    out2 = jax.block_until_ready(fwd(x2, params))
    ref2 = torch_reference(x2, params, output_size)
    assert out2.shape == ref2.shape, (out2.shape, ref2.shape)
    assert bool(jnp.allclose(out2, ref2, atol=ATOL, rtol=RTOL)), "mismatch (B=9)"

    # Multi-tile grid (ragged last tile, sublane-aligned tile rows).
    x3 = jax.random.normal(k_x3, (40, input_size), jnp.float32)
    out3 = jax.block_until_ready(fwd(x3, params))
    ref3 = torch_reference(x3, params, output_size)
    assert out3.shape == ref3.shape, (out3.shape, ref3.shape)
    assert bool(jnp.allclose(out3, ref3, atol=ATOL, rtol=RTOL)), "mismatch (B=40)"

    # ---- output_size > 1 (matmul conv5, NCL (B, O, 128) output)
    output_size2 = 3
    params2 = init_params(k_param2, input_size, output_size2)
    fwd2 = jax.jit(partial(raman_forward, output_size=output_size2))
    x4 = jax.random.normal(k_x4, (4, input_size), jnp.float32)
    out4 = jax.block_until_ready(fwd2(x4, params2))
    ref4 = torch_reference(x4, params2, output_size2)
    assert out4.shape == ref4.shape, (out4.shape, ref4.shape)
    assert bool(jnp.allclose(out4, ref4, atol=ATOL, rtol=RTOL)), "mismatch (O=3)"

    print("KERNEL_OK")
</pallas_src>

<mosaic_0001>
module attributes {stable_mosaic.version = 11 : i64} {
  func.func @raman_kernel(%arg0: i32, %arg1: memref<2x16xf32, #tpu.memory_space<vmem>>, %arg2: memref<16x128xf32, #tpu.memory_space<vmem>>, %arg3: memref<1x128xf32, #tpu.memory_space<vmem>>, %arg4: memref<3x1x16xf32, #tpu.memory_space<vmem>>, %arg5: memref<1x16xf32, #tpu.memory_space<vmem>>, %arg6: memref<48x32xbf16, #tpu.memory_space<vmem>>, %arg7: memref<1x32xf32, #tpu.memory_space<vmem>>, %arg8: memref<96x64xbf16, #tpu.memory_space<vmem>>, %arg9: memref<1x64xf32, #tpu.memory_space<vmem>>, %arg10: memref<192x128xbf16, #tpu.memory_space<vmem>>, %arg11: memref<1x128xf32, #tpu.memory_space<vmem>>, %arg12: memref<3x128xf32, #tpu.memory_space<vmem>>, %arg13: memref<1x1xf32, #tpu.memory_space<vmem>>, %arg14: memref<2x128xf32, #tpu.memory_space<vmem>>) attributes {dimension_semantics = [#tpu.dimension_semantics<parallel>], iteration_bounds = array<i64: 1>, scalar_prefetch = 0 : i64, scratch_operands = 0 : i64, tpu.core_type = #tpu.core_type<tc>, window_params = [{transform_indices = @transform_0, window_bounds = array<i64: 2, 16>}, {pipeline_mode = #tpu.pipeline_mode<synchronous>, transform_indices = @transform_1, window_bounds = array<i64: 16, 128>}, {pipeline_mode = #tpu.pipeline_mode<synchronous>, transform_indices = @transform_2, window_bounds = array<i64: 1, 128>}, {pipeline_mode = #tpu.pipeline_mode<synchronous>, transform_indices = @transform_3, window_bounds = array<i64: 3, 1, 16>}, {pipeline_mode = #tpu.pipeline_mode<synchronous>, transform_indices = @transform_4, window_bounds = array<i64: 1, 16>}, {pipeline_mode = #tpu.pipeline_mode<synchronous>, transform_indices = @transform_5, window_bounds = array<i64: 48, 32>}, {pipeline_mode = #tpu.pipeline_mode<synchronous>, transform_indices = @transform_6, window_bounds = array<i64: 1, 32>}, {pipeline_mode = #tpu.pipeline_mode<synchronous>, transform_indices = @transform_7, window_bounds = array<i64: 96, 64>}, {pipeline_mode = #tpu.pipeline_mode<synchronous>, transform_indices = @transform_8, window_bounds = array<i64: 1, 64>}, {pipeline_mode = #tpu.pipeline_mode<synchronous>, transform_indices = @transform_9, window_bounds = array<i64: 192, 128>}, {pipeline_mode = #tpu.pipeline_mode<synchronous>, transform_indices = @transform_10, window_bounds = array<i64: 1, 128>}, {pipeline_mode = #tpu.pipeline_mode<synchronous>, transform_indices = @transform_11, window_bounds = array<i64: 3, 128>}, {pipeline_mode = #tpu.pipeline_mode<synchronous>, transform_indices = @transform_12, window_bounds = array<i64: 1, 1>}, {transform_indices = @transform_13, window_bounds = array<i64: 2, 128>}]} {
    %c0 = arith.constant 0 : index
    %c0_0 = arith.constant 0 : index
    %0 = vector.load %arg1[%c0, %c0_0] : memref<2x16xf32, #tpu.memory_space<vmem>>, vector<2x16xf32>
    %c0_1 = arith.constant 0 : index
    %c0_2 = arith.constant 0 : index
    %1 = vector.load %arg2[%c0_1, %c0_2] : memref<16x128xf32, #tpu.memory_space<vmem>>, vector<16x128xf32>
    %cst = arith.constant dense<0.000000e+00> : vector<2x128xf32>
    %2 = tpu.matmul %0, %1, %cst {dimension_numbers = #tpu.dot_dimension_numbers<[1], [0], [0], [1], [0, 0, 1, 1], [], []>} : vector<2x16xf32>, vector<16x128xf32>, vector<2x128xf32> -> vector<2x128xf32>
    %c0_3 = arith.constant 0 : index
    %c0_4 = arith.constant 0 : index
    %3 = vector.load %arg3[%c0_3, %c0_4] : memref<1x128xf32, #tpu.memory_space<vmem>>, vector<1x128xf32>
    %4 = vector.broadcast %3 : vector<1x128xf32> to vector<2x128xf32>
    %5 = arith.addf %2, %4 : vector<2x128xf32>
    %cst_5 = arith.constant 0.000000e+00 : f32
    %6 = vector.broadcast %cst_5 : f32 to vector<2x128xf32>
    %7 = arith.maximumf %5, %6 : vector<2x128xf32>
    %8 = vector.shape_cast %7 : vector<2x128xf32> to vector<2x1x128xf32>
    %9 = tpu.transpose %8, [0, 2, 1] : vector<2x1x128xf32> -> vector<2x128x1xf32>
    %c0_6 = arith.constant 0 : index
    %c0_7 = arith.constant 0 : index
    %c0_8 = arith.constant 0 : index
    %10 = vector.load %arg4[%c0_6, %c0_7, %c0_8] : memref<3x1x16xf32, #tpu.memory_space<vmem>>, vector<3x1x16xf32>
    %11 = tpu.iota {dimensions = array<i32: 1>} : vector<2x128x1xi32>
    %c0_i32 = arith.constant 0 : i32
    %12 = vector.broadcast %c0_i32 : i32 to vector<2x128x1xi32>
    %13 = arith.cmpi eq, %11, %12 : vector<2x128x1xi32>
    %c1_i32 = arith.constant 1 : i32
    %14 = tpu.dynamic_rotate %9 by %c1_i32 dim 1 : vector<2x128x1xf32>, i32 -> vector<2x128x1xf32>
    %cst_9 = arith.constant 0.000000e+00 : f32
    %15 = vector.broadcast %cst_9 : f32 to vector<2x128x1xf32>
    %16 = arith.select %13, %15, %14 : vector<2x128x1xi1>, vector<2x128x1xf32>
    %c127_i32 = arith.constant 127 : i32
    %17 = vector.broadcast %c127_i32 : i32 to vector<2x128x1xi32>
    %18 = arith.cmpi eq, %11, %17 : vector<2x128x1xi32>
    %c127_i32_10 = arith.constant 127 : i32
    %19 = tpu.dynamic_rotate %9 by %c127_i32_10 dim 1 : vector<2x128x1xf32>, i32 -> vector<2x128x1xf32>
    %cst_11 = arith.constant 0.000000e+00 : f32
    %20 = vector.broadcast %cst_11 : f32 to vector<2x128x1xf32>
    %21 = arith.select %18, %20, %19 : vector<2x128x1xi1>, vector<2x128x1xf32>
    %22 = vector.extract_strided_slice %10 {offsets = [0, 0, 0], sizes = [1, 1, 16], strides = [1, 1, 1]} : vector<3x1x16xf32> to vector<1x1x16xf32>
    %23 = vector.shape_cast %22 : vector<1x1x16xf32> to vector<1x16xf32>
    %24 = vector.shape_cast %23 : vector<1x16xf32> to vector<1x1x16xf32>
    %25 = vector.broadcast %16 : vector<2x128x1xf32> to vector<2x128x16xf32>
    %26 = vector.broadcast %24 : vector<1x1x16xf32> to vector<2x128x16xf32>
    %27 = arith.mulf %25, %26 : vector<2x128x16xf32>
    %28 = vector.extract_strided_slice %10 {offsets = [1, 0, 0], sizes = [1, 1, 16], strides = [1, 1, 1]} : vector<3x1x16xf32> to vector<1x1x16xf32>
    %29 = vector.shape_cast %28 : vector<1x1x16xf32> to vector<1x16xf32>
    %30 = vector.shape_cast %29 : vector<1x16xf32> to vector<1x1x16xf32>
    %31 = vector.broadcast %9 : vector<2x128x1xf32> to vector<2x128x16xf32>
    %32 = vector.broadcast %30 : vector<1x1x16xf32> to vector<2x128x16xf32>
    %33 = arith.mulf %31, %32 : vector<2x128x16xf32>
    %34 = arith.addf %27, %33 : vector<2x128x16xf32>
    %35 = vector.extract_strided_slice %10 {offsets = [2, 0, 0], sizes = [1, 1, 16], strides = [1, 1, 1]} : vector<3x1x16xf32> to vector<1x1x16xf32>
    %36 = vector.shape_cast %35 : vector<1x1x16xf32> to vector<1x16xf32>
    %37 = vector.shape_cast %36 : vector<1x16xf32> to vector<1x1x16xf32>
    %38 = vector.broadcast %21 : vector<2x128x1xf32> to vector<2x128x16xf32>
    %39 = vector.broadcast %37 : vector<1x1x16xf32> to vector<2x128x16xf32>
    %40 = arith.mulf %38, %39 : vector<2x128x16xf32>
    %41 = arith.addf %34, %40 : vector<2x128x16xf32>
    %c0_12 = arith.constant 0 : index
    %c0_13 = arith.constant 0 : index
    %42 = vector.load %arg5[%c0_12, %c0_13] : memref<1x16xf32, #tpu.memory_space<vmem>>, vector<1x16xf32>
    %43 = vector.shape_cast %42 : vector<1x16xf32> to vector<1x1x16xf32>
    %44 = vector.broadcast %43 : vector<1x1x16xf32> to vector<2x128x16xf32>
    %45 = arith.addf %41, %44 : vector<2x128x16xf32>
    %cst_14 = arith.constant 0.000000e+00 : f32
    %46 = vector.broadcast %cst_14 : f32 to vector<2x128x16xf32>
    %47 = arith.maximumf %45, %46 : vector<2x128x16xf32>
    %48 = tpu.iota {dimensions = array<i32: 1>} : vector<2x128x16xi32>
    %c0_i32_15 = arith.constant 0 : i32
    %49 = vector.broadcast %c0_i32_15 : i32 to vector<2x128x16xi32>
    %50 = arith.cmpi eq, %48, %49 : vector<2x128x16xi32>
    %c1_i32_16 = arith.constant 1 : i32
    %51 = tpu.dynamic_rotate %47 by %c1_i32_16 dim 1 : vector<2x128x16xf32>, i32 -> vector<2x128x16xf32>
    %cst_17 = arith.constant 0.000000e+00 : f32
    %52 = vector.broadcast %cst_17 : f32 to vector<2x128x16xf32>
    %53 = arith.select %50, %52, %51 : vector<2x128x16xi1>, vector<2x128x16xf32>
    %c127_i32_18 = arith.constant 127 : i32
    %54 = vector.broadcast %c127_i32_18 : i32 to vector<2x128x16xi32>
    %55 = arith.cmpi eq, %48, %54 : vector<2x128x16xi32>
    %c127_i32_19 = arith.constant 127 : i32
    %56 = tpu.dynamic_rotate %47 by %c127_i32_19 dim 1 : vector<2x128x16xf32>, i32 -> vector<2x128x16xf32>
    %cst_20 = arith.constant 0.000000e+00 : f32
    %57 = vector.broadcast %cst_20 : f32 to vector<2x128x16xf32>
    %58 = arith.select %55, %57, %56 : vector<2x128x16xi1>, vector<2x128x16xf32>
    %59 = tpu.concatenate %53, %47, %58 in 2 : vector<2x128x16xf32>, vector<2x128x16xf32>, vector<2x128x16xf32> -> vector<2x128x48xf32>
    %60 = vector.shape_cast %59 : vector<2x128x48xf32> to vector<256x48xf32>
    %61 = arith.truncf %60 : vector<256x48xf32> to vector<256x48xbf16>
    %c0_21 = arith.constant 0 : index
    %c0_22 = arith.constant 0 : index
    %62 = vector.load %arg6[%c0_21, %c0_22] : memref<48x32xbf16, #tpu.memory_space<vmem>>, vector<48x32xbf16>
    %cst_23 = arith.constant dense<0.000000e+00> : vector<256x32xf32>
    %63 = tpu.matmul %61, %62, %cst_23 {dimension_numbers = #tpu.dot_dimension_numbers<[1], [0], [0], [1], [0, 0, 1, 1], [], []>} : vector<256x48xbf16>, vector<48x32xbf16>, vector<256x32xf32> -> vector<256x32xf32>
    %c0_24 = arith.constant 0 : index
    %c0_25 = arith.constant 0 : index
    %64 = vector.load %arg7[%c0_24, %c0_25] : memref<1x32xf32, #tpu.memory_space<vmem>>, vector<1x32xf32>
    %65 = vector.broadcast %64 : vector<1x32xf32> to vector<256x32xf32>
    %66 = arith.addf %63, %65 : vector<256x32xf32>
    %cst_26 = arith.constant 0.000000e+00 : f32
    %67 = vector.broadcast %cst_26 : f32 to vector<256x32xf32>
    %68 = arith.maximumf %66, %67 : vector<256x32xf32>
    %69 = vector.shape_cast %68 : vector<256x32xf32> to vector<2x128x32xf32>
    %70 = tpu.iota {dimensions = array<i32: 1>} : vector<2x128x32xi32>
    %c0_i32_27 = arith.constant 0 : i32
    %71 = vector.broadcast %c0_i32_27 : i32 to vector<2x128x32xi32>
    %72 = arith.cmpi eq, %70, %71 : vector<2x128x32xi32>
    %c1_i32_28 = arith.constant 1 : i32
    %73 = tpu.dynamic_rotate %69 by %c1_i32_28 dim 1 : vector<2x128x32xf32>, i32 -> vector<2x128x32xf32>
    %cst_29 = arith.constant 0.000000e+00 : f32
    %74 = vector.broadcast %cst_29 : f32 to vector<2x128x32xf32>
    %75 = arith.select %72, %74, %73 : vector<2x128x32xi1>, vector<2x128x32xf32>
    %c127_i32_30 = arith.constant 127 : i32
    %76 = vector.broadcast %c127_i32_30 : i32 to vector<2x128x32xi32>
    %77 = arith.cmpi eq, %70, %76 : vector<2x128x32xi32>
    %c127_i32_31 = arith.constant 127 : i32
    %78 = tpu.dynamic_rotate %69 by %c127_i32_31 dim 1 : vector<2x128x32xf32>, i32 -> vector<2x128x32xf32>
    %cst_32 = arith.constant 0.000000e+00 : f32
    %79 = vector.broadcast %cst_32 : f32 to vector<2x128x32xf32>
    %80 = arith.select %77, %79, %78 : vector<2x128x32xi1>, vector<2x128x32xf32>
    %81 = tpu.concatenate %75, %69, %80 in 2 : vector<2x128x32xf32>, vector<2x128x32xf32>, vector<2x128x32xf32> -> vector<2x128x96xf32>
    %82 = vector.shape_cast %81 : vector<2x128x96xf32> to vector<256x96xf32>
    %83 = arith.truncf %82 : vector<256x96xf32> to vector<256x96xbf16>
    %c0_33 = arith.constant 0 : index
    %c0_34 = arith.constant 0 : index
    %84 = vector.load %arg8[%c0_33, %c0_34] : memref<96x64xbf16, #tpu.memory_space<vmem>>, vector<96x64xbf16>
    %cst_35 = arith.constant dense<0.000000e+00> : vector<256x64xf32>
    %85 = tpu.matmul %83, %84, %cst_35 {dimension_numbers = #tpu.dot_dimension_numbers<[1], [0], [0], [1], [0, 0, 1, 1], [], []>} : vector<256x96xbf16>, vector<96x64xbf16>, vector<256x64xf32> -> vector<256x64xf32>
    %c0_36 = arith.constant 0 : index
    %c0_37 = arith.constant 0 : index
    %86 = vector.load %arg9[%c0_36, %c0_37] : memref<1x64xf32, #tpu.memory_space<vmem>>, vector<1x64xf32>
    %87 = vector.broadcast %86 : vector<1x64xf32> to vector<256x64xf32>
    %88 = arith.addf %85, %87 : vector<256x64xf32>
    %cst_38 = arith.constant 0.000000e+00 : f32
    %89 = vector.broadcast %cst_38 : f32 to vector<256x64xf32>
    %90 = arith.maximumf %88, %89 : vector<256x64xf32>
    %91 = vector.shape_cast %90 : vector<256x64xf32> to vector<2x128x64xf32>
    %92 = tpu.iota {dimensions = array<i32: 1>} : vector<2x128x64xi32>
    %c0_i32_39 = arith.constant 0 : i32
    %93 = vector.broadcast %c0_i32_39 : i32 to vector<2x128x64xi32>
    %94 = arith.cmpi eq, %92, %93 : vector<2x128x64xi32>
    %c1_i32_40 = arith.constant 1 : i32
    %95 = tpu.dynamic_rotate %91 by %c1_i32_40 dim 1 : vector<2x128x64xf32>, i32 -> vector<2x128x64xf32>
    %cst_41 = arith.constant 0.000000e+00 : f32
    %96 = vector.broadcast %cst_41 : f32 to vector<2x128x64xf32>
    %97 = arith.select %94, %96, %95 : vector<2x128x64xi1>, vector<2x128x64xf32>
    %c127_i32_42 = arith.constant 127 : i32
    %98 = vector.broadcast %c127_i32_42 : i32 to vector<2x128x64xi32>
    %99 = arith.cmpi eq, %92, %98 : vector<2x128x64xi32>
    %c127_i32_43 = arith.constant 127 : i32
    %100 = tpu.dynamic_rotate %91 by %c127_i32_43 dim 1 : vector<2x128x64xf32>, i32 -> vector<2x128x64xf32>
    %cst_44 = arith.constant 0.000000e+00 : f32
    %101 = vector.broadcast %cst_44 : f32 to vector<2x128x64xf32>
    %102 = arith.select %99, %101, %100 : vector<2x128x64xi1>, vector<2x128x64xf32>
    %103 = tpu.concatenate %97, %91, %102 in 2 : vector<2x128x64xf32>, vector<2x128x64xf32>, vector<2x128x64xf32> -> vector<2x128x192xf32>
    %104 = vector.shape_cast %103 : vector<2x128x192xf32> to vector<256x192xf32>
    %105 = arith.truncf %104 : vector<256x192xf32> to vector<256x192xbf16>
    %c0_45 = arith.constant 0 : index
    %c0_46 = arith.constant 0 : index
    %106 = vector.load %arg10[%c0_45, %c0_46] : memref<192x128xbf16, #tpu.memory_space<vmem>>, vector<192x128xbf16>
    %cst_47 = arith.constant dense<0.000000e+00> : vector<256x128xf32>
    %107 = tpu.matmul %105, %106, %cst_47 {dimension_numbers = #tpu.dot_dimension_numbers<[1], [0], [0], [1], [0, 0, 1, 1], [], []>} : vector<256x192xbf16>, vector<192x128xbf16>, vector<256x128xf32> -> vector<256x128xf32>
    %c0_48 = arith.constant 0 : index
    %c0_49 = arith.constant 0 : index
    %108 = vector.load %arg11[%c0_48, %c0_49] : memref<1x128xf32, #tpu.memory_space<vmem>>, vector<1x128xf32>
    %109 = vector.broadcast %108 : vector<1x128xf32> to vector<256x128xf32>
    %110 = arith.addf %107, %109 : vector<256x128xf32>
    %cst_50 = arith.constant 0.000000e+00 : f32
    %111 = vector.broadcast %cst_50 : f32 to vector<256x128xf32>
    %112 = arith.maximumf %110, %111 : vector<256x128xf32>
    %113 = vector.shape_cast %112 : vector<256x128xf32> to vector<2x128x128xf32>
    %c0_51 = arith.constant 0 : index
    %c0_52 = arith.constant 0 : index
    %114 = vector.load %arg12[%c0_51, %c0_52] : memref<3x128xf32, #tpu.memory_space<vmem>>, vector<3x128xf32>
    %115 = tpu.iota {dimensions = array<i32: 1>} : vector<2x128x128xi32>
    %c0_i32_53 = arith.constant 0 : i32
    %116 = vector.broadcast %c0_i32_53 : i32 to vector<2x128x128xi32>
    %117 = arith.cmpi eq, %115, %116 : vector<2x128x128xi32>
    %c1_i32_54 = arith.constant 1 : i32
    %118 = tpu.dynamic_rotate %113 by %c1_i32_54 dim 1 : vector<2x128x128xf32>, i32 -> vector<2x128x128xf32>
    %cst_55 = arith.constant 0.000000e+00 : f32
    %119 = vector.broadcast %cst_55 : f32 to vector<2x128x128xf32>
    %120 = arith.select %117, %119, %118 : vector<2x128x128xi1>, vector<2x128x128xf32>
    %c127_i32_56 = arith.constant 127 : i32
    %121 = vector.broadcast %c127_i32_56 : i32 to vector<2x128x128xi32>
    %122 = arith.cmpi eq, %115, %121 : vector<2x128x128xi32>
    %c127_i32_57 = arith.constant 127 : i32
    %123 = tpu.dynamic_rotate %113 by %c127_i32_57 dim 1 : vector<2x128x128xf32>, i32 -> vector<2x128x128xf32>
    %cst_58 = arith.constant 0.000000e+00 : f32
    %124 = vector.broadcast %cst_58 : f32 to vector<2x128x128xf32>
    %125 = arith.select %122, %124, %123 : vector<2x128x128xi1>, vector<2x128x128xf32>
    %126 = vector.extract_strided_slice %114 {offsets = [0, 0], sizes = [1, 128], strides = [1, 1]} : vector<3x128xf32> to vector<1x128xf32>
    %127 = vector.shape_cast %126 : vector<1x128xf32> to vector<128xf32>
    %128 = vector.shape_cast %127 : vector<128xf32> to vector<1x1x128xf32>
    %129 = vector.broadcast %128 : vector<1x1x128xf32> to vector<2x128x128xf32>
    %130 = arith.mulf %120, %129 : vector<2x128x128xf32>
    %131 = vector.extract_strided_slice %114 {offsets = [1, 0], sizes = [1, 128], strides = [1, 1]} : vector<3x128xf32> to vector<1x128xf32>
    %132 = vector.shape_cast %131 : vector<1x128xf32> to vector<128xf32>
    %133 = vector.shape_cast %132 : vector<128xf32> to vector<1x1x128xf32>
    %134 = vector.broadcast %133 : vector<1x1x128xf32> to vector<2x128x128xf32>
    %135 = arith.mulf %113, %134 : vector<2x128x128xf32>
    %136 = arith.addf %130, %135 : vector<2x128x128xf32>
    %137 = vector.extract_strided_slice %114 {offsets = [2, 0], sizes = [1, 128], strides = [1, 1]} : vector<3x128xf32> to vector<1x128xf32>
    %138 = vector.shape_cast %137 : vector<1x128xf32> to vector<128xf32>
    %139 = vector.shape_cast %138 : vector<128xf32> to vector<1x1x128xf32>
    %140 = vector.broadcast %139 : vector<1x1x128xf32> to vector<2x128x128xf32>
    %141 = arith.mulf %125, %140 : vector<2x128x128xf32>
    %142 = arith.addf %136, %141 : vector<2x128x128xf32>
    %cst_59 = arith.constant dense<0.000000e+00> : vector<2x128xf32>
    %143 = vector.multi_reduction <add>, %142, %cst_59 [2] : vector<2x128x128xf32> to vector<2x128xf32>
    %c0_60 = arith.constant 0 : index
    %c0_61 = arith.constant 0 : index
    %144 = vector.load %arg13[%c0_60, %c0_61] : memref<1x1xf32, #tpu.memory_space<vmem>>, vector<1x1xf32>
    %145 = vector.extract %144[0, 0] : f32 from vector<1x1xf32>
    %146 = vector.broadcast %145 : f32 to vector<2x128xf32>
    %147 = arith.addf %143, %146 : vector<2x128xf32>
    %c0_62 = arith.constant 0 : index
    %c0_63 = arith.constant 0 : index
    %148 = vector.load %arg14[%c0_62, %c0_63] : memref<2x128xf32, #tpu.memory_space<vmem>>, vector<2x128xf32>
    tpu.vector_store %arg14[%c0_62, %c0_63], %147 {strides = array<i32>} : memref<2x128xf32, #tpu.memory_space<vmem>>, vector<2x128xf32>,
    return
  }
  func.func @transform_0(%arg0: i32) -> (i32, i32) {
    %c0_i32 = arith.constant 0 : i32
    %c0_i32_0 = arith.constant 0 : i32
    return %arg0, %c0_i32 : i32, i32
  }
  func.func @transform_1(%arg0: i32) -> (i32, i32) {
    %c0_i32 = arith.constant 0 : i32
    %c0_i32_0 = arith.constant 0 : i32
    %c0_i32_1 = arith.constant 0 : i32
    return %c0_i32, %c0_i32_0 : i32, i32
  }
  func.func @transform_2(%arg0: i32) -> (i32, i32) {
    %c0_i32 = arith.constant 0 : i32
    %c0_i32_0 = arith.constant 0 : i32
    %c0_i32_1 = arith.constant 0 : i32
    return %c0_i32, %c0_i32_0 : i32, i32
  }
  func.func @transform_3(%arg0: i32) -> (i32, i32, i32) {
    %c0_i32 = arith.constant 0 : i32
    %c0_i32_0 = arith.constant 0 : i32
    %c0_i32_1 = arith.constant 0 : i32
    %c0_i32_2 = arith.constant 0 : i32
    return %c0_i32, %c0_i32_0, %c0_i32_1 : i32, i32, i32
  }
  func.func @transform_4(%arg0: i32) -> (i32, i32) {
    %c0_i32 = arith.constant 0 : i32
    %c0_i32_0 = arith.constant 0 : i32
    %c0_i32_1 = arith.constant 0 : i32
    return %c0_i32, %c0_i32_0 : i32, i32
  }
  func.func @transform_5(%arg0: i32) -> (i32, i32) {
    %c0_i32 = arith.constant 0 : i32
    %c0_i32_0 = arith.constant 0 : i32
    %c0_i32_1 = arith.constant 0 : i32
    return %c0_i32, %c0_i32_0 : i32, i32
  }
  func.func @transform_6(%arg0: i32) -> (i32, i32) {
    %c0_i32 = arith.constant 0 : i32
    %c0_i32_0 = arith.constant 0 : i32
    %c0_i32_1 = arith.constant 0 : i32
    return %c0_i32, %c0_i32_0 : i32, i32
  }
  func.func @transform_7(%arg0: i32) -> (i32, i32) {
    %c0_i32 = arith.constant 0 : i32
    %c0_i32_0 = arith.constant 0 : i32
    %c0_i32_1 = arith.constant 0 : i32
    return %c0_i32, %c0_i32_0 : i32, i32
  }
  func.func @transform_8(%arg0: i32) -> (i32, i32) {
    %c0_i32 = arith.constant 0 : i32
    %c0_i32_0 = arith.constant 0 : i32
    %c0_i32_1 = arith.constant 0 : i32
    return %c0_i32, %c0_i32_0 : i32, i32
  }
  func.func @transform_9(%arg0: i32) -> (i32, i32) {
    %c0_i32 = arith.constant 0 : i32
    %c0_i32_0 = arith.constant 0 : i32
    %c0_i32_1 = arith.constant 0 : i32
    return %c0_i32, %c0_i32_0 : i32, i32
  }
  func.func @transform_10(%arg0: i32) -> (i32, i32) {
    %c0_i32 = arith.constant 0 : i32
    %c0_i32_0 = arith.constant 0 : i32
    %c0_i32_1 = arith.constant 0 : i32
    return %c0_i32, %c0_i32_0 : i32, i32
  }
  func.func @transform_11(%arg0: i32) -> (i32, i32) {
    %c0_i32 = arith.constant 0 : i32
    %c0_i32_0 = arith.constant 0 : i32
    %c0_i32_1 = arith.constant 0 : i32
    return %c0_i32, %c0_i32_0 : i32, i32
  }
  func.func @transform_12(%arg0: i32) -> (i32, i32) {
    %c0_i32 = arith.constant 0 : i32
    %c0_i32_0 = arith.constant 0 : i32
    %c0_i32_1 = arith.constant 0 : i32
    return %c0_i32, %c0_i32_0 : i32, i32
  }
  func.func @transform_13(%arg0: i32) -> (i32, i32) {
    %c0_i32 = arith.constant 0 : i32
    %c0_i32_0 = arith.constant 0 : i32
    return %arg0, %c0_i32 : i32, i32
  }
}

</mosaic_0001>

<llo_original>
// kernel: raman_forward.1
$region0: #{raman_forward.1}
  #allocation0 [shape = 'u32[]', space=smem, size = 0x4, offset = 0x4, fixed_abs, tag = 'smem constant byte address 0x4 - core index']
  #allocation1 [shape = 'u32[144,128]{1,0:T(1,128)}', space=vmem, size = 0x12000, scoped, tag = 'internal scratch']
  #allocation2 [shape = 'f32[1,1]{1,0:T(1,128)S(1)}', space=vmem, size = 0x200, scoped, tag = 'scoped memory for raman_forward.1']
  %s0 = inlined_call_operand.vmem [shape: f32[2,16], index: 0, kind: input, shape index: {}]
  %s1 = inlined_call_operand.vmem [shape: f32[16,128], index: 1, kind: input, shape index: {}]
  %s2 = inlined_call_operand.vmem [shape: f32[1,128], index: 2, kind: input, shape index: {}]
  %s3 = inlined_call_operand.vmem [shape: f32[3,1,16], index: 3, kind: input, shape index: {}]
  %s4 = inlined_call_operand.vmem [shape: f32[1,16], index: 4, kind: input, shape index: {}]
  %s5 = inlined_call_operand.vmem [shape: bf16[48,32], index: 5, kind: input, shape index: {}]
  %s6 = inlined_call_operand.vmem [shape: f32[1,32], index: 6, kind: input, shape index: {}]
  %s7 = inlined_call_operand.vmem [shape: bf16[96,64], index: 7, kind: input, shape index: {}]
  %s8 = inlined_call_operand.vmem [shape: f32[1,64], index: 8, kind: input, shape index: {}]
  %s9 = inlined_call_operand.vmem [shape: bf16[192,128], index: 9, kind: input, shape index: {}]
  %s10 = inlined_call_operand.vmem [shape: f32[1,128], index: 10, kind: input, shape index: {}]
  %s11 = inlined_call_operand.vmem [shape: f32[3,128], index: 11, kind: input, shape index: {}]
  %s12 = inlined_call_operand.<no memory space> [shape: f32[1,1], index: 12, kind: input, shape index: {}]
  %s13 = inlined_call_operand.hbm [shape: f32[2,128], index: 13, kind: output, shape index: {}]
  %s14 = sld [smem:[#allocation0]]
  $region62: #{raman_forward.1} parent=0
    _
  %s16 = ssub.s32 1, %s14
  %s17 = scalar_select 0, %s16, %s14
  %v18 = vstv %s12
  %19 = vst [vmem:[#allocation2] sm:$0x1] %v18
  $region1: #{raman_forward.1} parent=0
    #allocation3 [shape = 'u8[1024]{0}', space=vmem, size = 0x400, scoped, tag = 'output window, operand 0, single buffered']
    #allocation4 [shape = 's32[1]{0}', space=sflag, size = 0x4, scoped, tag = 'scoped memory for raman_forward.1']
    %20 = vsyncpa [#allocation4], 0
    // Predicated region
    $region2: #{raman_forward.1} parent=1 // pred_check
      _
    $region3: #{raman_forward.1} parent=1 // pred_check_branch
      %22 = sbr.rel (0) target = $region5
    $region4: #{raman_forward.1} parent=1 // pred_region
      _
    $region5: #{raman_forward.1} parent=1 // pred_fallthru
      _
    // Predicated region
    $region6: #{raman_forward.1} parent=1 // pred_check
      _
    $region7: #{raman_forward.1} parent=1 // pred_check_branch
      %24 = sbr.rel (0) target = $region9
    $region8: #{raman_forward.1} parent=1 // pred_region
      _
    $region9: #{raman_forward.1} parent=1 // pred_fallthru
      _
    // Predicated region
    $region10: #{raman_forward.1} parent=1 // pred_check
      _
    $region11: #{raman_forward.1} parent=1 // pred_check_branch
      %26 = sbr.rel (0) target = $region13
    $region12: #{raman_forward.1} parent=1 // pred_region
      _
    $region13: #{raman_forward.1} parent=1 // pred_fallthru
      _
    // Predicated region
    $region14: #{raman_forward.1} parent=1 // pred_check
      _
    $region15: #{raman_forward.1} parent=1 // pred_check_branch
      %28 = sbr.rel (0) target = $region17
    $region16: #{raman_forward.1} parent=1 // pred_region
      _
    $region17: #{raman_forward.1} parent=1 // pred_fallthru
      _
    // Predicated region
    $region18: #{raman_forward.1} parent=1 // pred_check
      _
    $region19: #{raman_forward.1} parent=1 // pred_check_branch
      %30 = sbr.rel (0) target = $region21
    $region20: #{raman_forward.1} parent=1 // pred_region
      _
    $region21: #{raman_forward.1} parent=1 // pred_fallthru
      _
    // Predicated region
    $region22: #{raman_forward.1} parent=1 // pred_check
      _
    $region23: #{raman_forward.1} parent=1 // pred_check_branch
      %32 = sbr.rel (0) target = $region25
    $region24: #{raman_forward.1} parent=1 // pred_region
      _
    $region25: #{raman_forward.1} parent=1 // pred_fallthru
      _
    // Predicated region
    $region26: #{raman_forward.1} parent=1 // pred_check
      _
    $region27: #{raman_forward.1} parent=1 // pred_check_branch
      %34 = sbr.rel (0) target = $region29
    $region28: #{raman_forward.1} parent=1 // pred_region
      _
    $region29: #{raman_forward.1} parent=1 // pred_fallthru
      _
    // Predicated region
    $region30: #{raman_forward.1} parent=1 // pred_check
      _
    $region31: #{raman_forward.1} parent=1 // pred_check_branch
      %36 = sbr.rel (0) target = $region33
    $region32: #{raman_forward.1} parent=1 // pred_region
      _
    $region33: #{raman_forward.1} parent=1 // pred_fallthru
      _
    // Predicated region
    $region34: #{raman_forward.1} parent=1 // pred_check
      _
    $region35: #{raman_forward.1} parent=1 // pred_check_branch
      %38 = sbr.rel (0) target = $region37
    $region36: #{raman_forward.1} parent=1 // pred_region
      _
    $region37: #{raman_forward.1} parent=1 // pred_fallthru
      _
    // Predicated region
    $region38: #{raman_forward.1} parent=1 // pred_check
      _
    $region39: #{raman_forward.1} parent=1 // pred_check_branch
      %40 = sbr.rel (0) target = $region41
    $region40: #{raman_forward.1} parent=1 // pred_region
      _
    $region41: #{raman_forward.1} parent=1 // pred_fallthru
      _
    // Predicated region
    $region42: #{raman_forward.1} parent=1 // pred_check
      _
    $region43: #{raman_forward.1} parent=1 // pred_check_branch
      %42 = sbr.rel (0) target = $region45
    $region44: #{raman_forward.1} parent=1 // pred_region
      _
    $region45: #{raman_forward.1} parent=1 // pred_fallthru
      _
    // Predicated region
    $region46: #{raman_forward.1} parent=1 // pred_check
      _
    $region47: #{raman_forward.1} parent=1 // pred_check_branch
      %44 = sbr.rel (0) target = $region49
    $region48: #{raman_forward.1} parent=1 // pred_region
      _
    $region49: #{raman_forward.1} parent=1 // pred_fallthru
      _
    // Predicated region
    $region50: #{raman_forward.1} parent=1 // pred_check
      _
    $region51: #{raman_forward.1} parent=1 // pred_check_branch
      %46 = sbr.rel (0) target = $region53
    $region52: #{raman_forward.1} parent=1 // pred_region
      _
    $region53: #{raman_forward.1} parent=1 // pred_fallthru
      _
    %v48 = vld [vmem:[%s0] sm:$0x3]
    %v49 = vld [vmem:[%s1] sm:$0xff]
    %v50 = vld [vmem:[%s1 + $0x8] sm:$0xff]
    %v51 = vld [vmem:[%s2] sm:$0x1]
    %v53 = vlaneseq
    %v54 = vshrl.u32 %v53, 7
    %v55 = vsub.s32 0, %v54
    %v56 = vrot.slane %v51, %v55
    %vm58 = vcmask 130048
    %v60 = vsel %vm58, %v48, 0
    %62 = vmatprep.subr.mxu0 0.0
    %63 = vmatpush1.msra.mxu0 0.0
    %64 = vmatprep.subr.mxu0 0.0
    %65 = vmatpush1.msra.mxu0 0.0
    %66 = vmatprep.subr.mxu0 0.0
    %67 = vmatpush1.msra.mxu0 0.0
    %68 = vmatprep.subr.mxu0 0.0
    %69 = vmatpush1.msra.mxu0 0.0
    %70 = vmatprep.subr.mxu0 0.0
    %71 = vmatpush1.msra.mxu0 0.0
    %72 = vmatprep.subr.mxu0 0.0
    %73 = vmatpush1.msra.mxu0 0.0
    %74 = vmatprep.subr.mxu0 0.0
    %75 = vmatpush1.msra.mxu0 0.0
    %76 = vmatprep.subr.mxu0 0.0
    %77 = vmatpush1.msra.mxu0 0.0
    %78 = vmatprep.subr.mxu0 0.0
    %79 = vmatpush1.msra.mxu0 0.0
    %80 = vmatprep.subr.mxu0 0.0
    %81 = vmatpush1.msra.mxu0 0.0
    %82 = vmatprep.subr.mxu0 0.0
    %83 = vmatpush1.msra.mxu0 0.0
    %84 = vmatprep.subr.mxu0 0.0
    %85 = vmatpush1.msra.mxu0 0.0
    %86 = vmatprep.subr.mxu0 0.0
    %87 = vmatpush1.msra.mxu0 0.0
    %88 = vmatprep.subr.mxu0 0.0
    %89 = vmatpush1.msra.mxu0 0.0
    %90 = vmatprep.subr.mxu0 0.0
    %91 = vmatpush1.msra.mxu0 %v50
    %92 = vmatprep.subr.mxu0 0.0
    %93 = vmatpush1.msra.mxu0 %v49
    %94 = vmatprep.subr.mxu0 0.0
    %95 = vmatpush2.msra.mxu0 0.0
    %96 = vmatprep.subr.mxu0 0.0
    %97 = vmatpush2.msra.mxu0 0.0
    %98 = vmatprep.subr.mxu0 0.0
    %99 = vmatpush2.msra.mxu0 0.0
    %100 = vmatprep.subr.mxu0 0.0
    %101 = vmatpush2.msra.mxu0 0.0
    %102 = vmatprep.subr.mxu0 0.0
    %103 = vmatpush2.msra.mxu0 0.0
    %104 = vmatprep.subr.mxu0 0.0
    %105 = vmatpush2.msra.mxu0 0.0
    %106 = vmatprep.subr.mxu0 0.0
    %107 = vmatpush2.msra.mxu0 0.0
    %108 = vmatprep.subr.mxu0 0.0
    %109 = vmatpush2.msra.mxu0 0.0
    %110 = vmatprep.subr.mxu0 0.0
    %111 = vmatpush2.msra.mxu0 0.0
    %112 = vmatprep.subr.mxu0 0.0
    %113 = vmatpush2.msra.mxu0 0.0
    %114 = vmatprep.subr.mxu0 0.0
    %115 = vmatpush2.msra.mxu0 0.0
    %116 = vmatprep.subr.mxu0 0.0
    %117 = vmatpush2.msra.mxu0 0.0
    %118 = vmatprep.subr.mxu0 0.0
    %119 = vmatpush2.msra.mxu0 0.0
    %120 = vmatprep.subr.mxu0 0.0
    %121 = vmatpush2.msra.mxu0 0.0
    %122 = vmatprep.subr.mxu0 0.0
    %123 = vmatpush2.msra.mxu0 0.0
    %124 = vmatprep.subr.mxu0 0.0
    %125 = vmatpush2.msra.mxu0 0.0
    %126 = vmatprep.mubr.f32.mxu0 0.0
    %127 = vmatmul.mubr.f32.gmra.mxu0 %v60
    %v128 = vpop.f32.mrf.mxu0
    %v129 = vadd.f32 %v56, %v128
    %v130 = vpop.f32.mrf.mxu0
    %131 = vdwg.mxu0
    %v132 = vmax.f32 %v129, 0.0
    %v135 = vunpack.c.l.s4 1966171168
    %v136 = vunpack.c.0.s8 %v135
    %v137 = vlaneseq
    %v138 = vshrl.u32 %v137, 7
    %v139 = vsub.s32 %v136, %v138
    %v140 = vrot.slane %v132, %v139
    %v141 = vcombine.high %v140, %v140
    %v143 = vunpack.c.l.s4 1966171168
    %v144 = vunpack.c.0.s8 %v143
    %v145 = vlaneseq
    %v146 = vshrl.u32 %v145, 7
    %v147 = vsub.s32 %v144, %v146
    %v148 = vrot.slane %v140, %v147
    %v150 = vunpack.c.l.s4 1966171168
    %v151 = vunpack.c.0.s8 %v150
    %v152 = vlaneseq
    %v153 = vshrl.u32 %v152, 7
    %v154 = vsub.s32 %v151, %v153
    %v155 = vrot.slane %v141, %v154
    %158 = vxpose.xlu0.b32.start [1/16] %v148, 128
    %159 = vxpose.xlu0.b32.cont [2/16] 0.0, 128
    %160 = vxpose.xlu0.b32.cont [3/16] 0.0, 128
    %161 = vxpose.xlu0.b32.cont [4/16] 0.0, 128
    %162 = vxpose.xlu0.b32.cont [5/16] 0.0, 128
    %163 = vxpose.xlu0.b32.cont [6/16] 0.0, 128
    %164 = vxpose.xlu0.b32.cont [7/16] 0.0, 128
    %165 = vxpose.xlu0.b32.cont [8/16] 0.0, 128
    %166 = vxpose.xlu0.b32.cont [9/16] 0.0, 128
    %167 = vxpose.xlu0.b32.cont [10/16] 0.0, 128
    %168 = vxpose.xlu0.b32.cont [11/16] 0.0, 128
    %169 = vxpose.xlu0.b32.cont [12/16] 0.0, 128
    %170 = vxpose.xlu0.b32.cont [13/16] 0.0, 128
    %171 = vxpose.xlu0.b32.cont [14/16] 0.0, 128
    %172 = vxpose.xlu0.b32.cont [15/16] 0.0, 128
    %173 = vxpose.xlu0.b32.end [16/16] 0.0, 128
    %v174 = vpop.trf.xlu0
    %v175 = vpop.trf.xlu0
    %v176 = vpop.trf.xlu0
    %v177 = vpop.trf.xlu0
    %v178 = vpop.trf.xlu0
    %v179 = vpop.trf.xlu0
    %v180 = vpop.trf.xlu0
    %v181 = vpop.trf.xlu0
    %v182 = vpop.trf.xlu0
    %v183 = vpop.trf.xlu0
    %v184 = vpop.trf.xlu0
    %v185 = vpop.trf.xlu0
    %v186 = vpop.trf.xlu0
    %v187 = vpop.trf.xlu0
    %v188 = vpop.trf.xlu0
    %v189 = vpop.trf.xlu0
    %190 = vxpose.xlu0.b32.start [1/16] %v155, 128
    %191 = vxpose.xlu0.b32.cont [2/16] 0.0, 128
    %192 = vxpose.xlu0.b32.cont [3/16] 0.0, 128
    %193 = vxpose.xlu0.b32.cont [4/16] 0.0, 128
    %194 = vxpose.xlu0.b32.cont [5/16] 0.0, 128
    %195 = vxpose.xlu0.b32.cont [6/16] 0.0, 128
    %196 = vxpose.xlu0.b32.cont [7/16] 0.0, 128
    %197 = vxpose.xlu0.b32.cont [8/16] 0.0, 128
    %198 = vxpose.xlu0.b32.cont [9/16] 0.0, 128
    %199 = vxpose.xlu0.b32.cont [10/16] 0.0, 128
    %200 = vxpose.xlu0.b32.cont [11/16] 0.0, 128
    %201 = vxpose.xlu0.b32.cont [12/16] 0.0, 128
    %202 = vxpose.xlu0.b32.cont [13/16] 0.0, 128
    %203 = vxpose.xlu0.b32.cont [14/16] 0.0, 128
    %204 = vxpose.xlu0.b32.cont [15/16] 0.0, 128
    %205 = vxpose.xlu0.b32.end [16/16] 0.0, 128
    %v206 = vpop.trf.xlu0
    %v207 = vpop.trf.xlu0
    %v208 = vpop.trf.xlu0
    %v209 = vpop.trf.xlu0
    %v210 = vpop.trf.xlu0
    %v211 = vpop.trf.xlu0
    %v212 = vpop.trf.xlu0
    %v213 = vpop.trf.xlu0
    %v214 = vpop.trf.xlu0
    %v215 = vpop.trf.xlu0
    %v216 = vpop.trf.xlu0
    %v217 = vpop.trf.xlu0
    %v218 = vpop.trf.xlu0
    %v219 = vpop.trf.xlu0
    %v220 = vpop.trf.xlu0
    %v221 = vpop.trf.xlu0
    %v222 = vld [vmem:[%s3] sm:$0x1]
    %v223 = vld [vmem:[%s3 + $0x1] sm:$0x1]
    %v224 = vld [vmem:[%s3 + $0x2] sm:$0x1]
    %v225 = vlaneseq
    %v226 = vshrl.u32 %v225, 7
    %v227 = vadd.s32 %v226, 8
    %v228 = vadd.s32 %v226, 16
    %v229 = vadd.s32 %v226, 24
    %v230 = vadd.s32 %v226, 32
    %v231 = vadd.s32 %v226, 40
    %v232 = vadd.s32 %v226, 48
    %v233 = vadd.s32 %v226, 56
    %v234 = vadd.s32 %v226, 64
    %v235 = vadd.s32 %v226, 72
    %v236 = vadd.s32 %v226, 80
    %v237 = vadd.s32 %v226, 88
    %v238 = vadd.s32 %v226, 96
    %v239 = vadd.s32 %v226, 104
    %v240 = vadd.s32 %v226, 112
    %v241 = vadd.s32 %v226, 120
    %vm242 = vcmp.eq.s32.totalorder %v226, 0
    %vm243 = vcmp.eq.s32.totalorder %v227, 0
    %vm244 = vcmp.eq.s32.totalorder %v228, 0
    %vm245 = vcmp.eq.s32.totalorder %v229, 0
    %vm246 = vcmp.eq.s32.totalorder %v230, 0
    %vm247 = vcmp.eq.s32.totalorder %v231, 0
    %vm248 = vcmp.eq.s32.totalorder %v232, 0
    %vm249 = vcmp.eq.s32.totalorder %v233, 0
    %vm250 = vcmp.eq.s32.totalorder %v234, 0
    %vm251 = vcmp.eq.s32.totalorder %v235, 0
    %vm252 = vcmp.eq.s32.totalorder %v236, 0
    %vm253 = vcmp.eq.s32.totalorder %v237, 0
    %vm254 = vcmp.eq.s32.totalorder %v238, 0
    %vm255 = vcmp.eq.s32.totalorder %v239, 0
    %vm256 = vcmp.eq.s32.totalorder %v240, 0
    %vm257 = vcmp.eq.s32.totalorder %v241, 0
    %v258 = vrot.slane %v174, 7
    %v259 = vrot.slane %v206, 7
    %v260 = vrot.slane %v175, 7
    %v261 = vrot.slane %v207, 7
    %v262 = vrot.slane %v176, 7
    %v263 = vrot.slane %v208, 7
    %v264 = vrot.slane %v177, 7
    %v265 = vrot.slane %v209, 7
    %v266 = vrot.slane %v178, 7
    %v267 = vrot.slane %v210, 7
    %v268 = vrot.slane %v179, 7
    %v269 = vrot.slane %v211, 7
    %v270 = vrot.slane %v180, 7
    %v271 = vrot.slane %v212, 7
    %v272 = vrot.slane %v181, 7
    %v273 = vrot.slane %v213, 7
    %v274 = vrot.slane %v182, 7
    %v275 = vrot.slane %v214, 7
    %v276 = vrot.slane %v183, 7
    %v277 = vrot.slane %v215, 7
    %v278 = vrot.slane %v184, 7
    %v279 = vrot.slane %v216, 7
    %v280 = vrot.slane %v185, 7
    %v281 = vrot.slane %v217, 7
    %v282 = vrot.slane %v186, 7
    %v283 = vrot.slane %v218, 7
    %v284 = vrot.slane %v187, 7
    %v285 = vrot.slane %v219, 7
    %v286 = vrot.slane %v188, 7
    %v287 = vrot.slane %v220, 7
    %v288 = vrot.slane %v189, 7
    %v289 = vrot.slane %v221, 7
    %vm290 = vcmp.lt.s32.totalorder %v226, 1
    %v291 = vsel %vm290, %v286, %v288
    %v292 = vsel %vm290, %v287, %v289
    %v293 = vsel %vm290, %v284, %v286
    %v294 = vsel %vm290, %v285, %v287
    %v295 = vsel %vm290, %v282, %v284
    %v296 = vsel %vm290, %v283, %v285
    %v297 = vsel %vm290, %v280, %v282
    %v298 = vsel %vm290, %v281, %v283
    %v299 = vsel %vm290, %v278, %v280
    %v300 = vsel %vm290, %v279, %v281
    %v301 = vsel %vm290, %v276, %v278
    %v302 = vsel %vm290, %v277, %v279
    %v303 = vsel %vm290, %v274, %v276
    %v304 = vsel %vm290, %v275, %v277
    %v305 = vsel %vm290, %v272, %v274
    %v306 = vsel %vm290, %v273, %v275
    %v307 = vsel %vm290, %v270, %v272
    %v308 = vsel %vm290, %v271, %v273
    %v309 = vsel %vm290, %v268, %v270
    %v310 = vsel %vm290, %v269, %v271
    %v311 = vsel %vm290, %v266, %v268
    %v312 = vsel %vm290, %v267, %v269
    %v313 = vsel %vm290, %v264, %v266
    %v314 = vsel %vm290, %v265, %v267
    %v315 = vsel %vm290, %v262, %v264
    %v316 = vsel %vm290, %v263, %v265
    %v317 = vsel %vm290, %v260, %v262
    %v318 = vsel %vm290, %v261, %v263
    %v319 = vsel %vm290, %v258, %v260
    %v320 = vsel %vm290, %v259, %v261
    %v321 = vsel %vm290, %v288, %v258
    %v322 = vsel %vm290, %v289, %v259
    %v323 = vsel %vm242, 0.0, %v321
    %v324 = vsel %vm243, 0.0, %v319
    %v325 = vsel %vm244, 0.0, %v317
    %v326 = vsel %vm245, 0.0, %v315
    %v327 = vsel %vm246, 0.0, %v313
    %v328 = vsel %vm247, 0.0, %v311
    %v329 = vsel %vm248, 0.0, %v309
    %v330 = vsel %vm249, 0.0, %v307
    %v331 = vsel %vm250, 0.0, %v305
    %v332 = vsel %vm251, 0.0, %v303
    %v333 = vsel %vm252, 0.0, %v301
    %v334 = vsel %vm253, 0.0, %v299
    %v335 = vsel %vm254, 0.0, %v297
    %v336 = vsel %vm255, 0.0, %v295
    %v337 = vsel %vm256, 0.0, %v293
    %v338 = vsel %vm257, 0.0, %v291
    %v339 = vsel %vm242, 0.0, %v322
    %v340 = vsel %vm243, 0.0, %v320
    %v341 = vsel %vm244, 0.0, %v318
    %v342 = vsel %vm245, 0.0, %v316
    %v343 = vsel %vm246, 0.0, %v314
    %v344 = vsel %vm247, 0.0, %v312
    %v345 = vsel %vm248, 0.0, %v310
    %v346 = vsel %vm249, 0.0, %v308
    %v347 = vsel %vm250, 0.0, %v306
    %v348 = vsel %vm251, 0.0, %v304
    %v349 = vsel %vm252, 0.0, %v302
    %v350 = vsel %vm253, 0.0, %v300
    %v351 = vsel %vm254, 0.0, %v298
    %v352 = vsel %vm255, 0.0, %v296
    %v353 = vsel %vm256, 0.0, %v294
    %v354 = vsel %vm257, 0.0, %v292
    %vm355 = vcmp.eq.s32.totalorder %v226, 127
    %vm356 = vcmp.eq.s32.totalorder %v227, 127
    %vm357 = vcmp.eq.s32.totalorder %v228, 127
    %vm358 = vcmp.eq.s32.totalorder %v229, 127
    %vm359 = vcmp.eq.s32.totalorder %v230, 127
    %vm360 = vcmp.eq.s32.totalorder %v231, 127
    %vm361 = vcmp.eq.s32.totalorder %v232, 127
    %vm362 = vcmp.eq.s32.totalorder %v233, 127
    %vm363 = vcmp.eq.s32.totalorder %v234, 127
    %vm364 = vcmp.eq.s32.totalorder %v235, 127
    %vm365 = vcmp.eq.s32.totalorder %v236, 127
    %vm366 = vcmp.eq.s32.totalorder %v237, 127
    %vm367 = vcmp.eq.s32.totalorder %v238, 127
    %vm368 = vcmp.eq.s32.totalorder %v239, 127
    %vm369 = vcmp.eq.s32.totalorder %v240, 127
    %vm370 = vcmp.eq.s32.totalorder %v241, 127
    %v371 = vrot.slane %v174, 1
    %v372 = vrot.slane %v206, 1
    %v373 = vrot.slane %v175, 1
    %v374 = vrot.slane %v207, 1
    %v375 = vrot.slane %v176, 1
    %v376 = vrot.slane %v208, 1
    %v377 = vrot.slane %v177, 1
    %v378 = vrot.slane %v209, 1
    %v379 = vrot.slane %v178, 1
    %v380 = vrot.slane %v210, 1
    %v381 = vrot.slane %v179, 1
    %v382 = vrot.slane %v211, 1
    %v383 = vrot.slane %v180, 1
    %v384 = vrot.slane %v212, 1
    %v385 = vrot.slane %v181, 1
    %v386 = vrot.slane %v213, 1
    %v387 = vrot.slane %v182, 1
    %v388 = vrot.slane %v214, 1
    %v389 = vrot.slane %v183, 1
    %v390 = vrot.slane %v215, 1
    %v391 = vrot.slane %v184, 1
    %v392 = vrot.slane %v216, 1
    %v393 = vrot.slane %v185, 1
    %v394 = vrot.slane %v217, 1
    %v395 = vrot.slane %v186, 1
    %v396 = vrot.slane %v218, 1
    %v397 = vrot.slane %v187, 1
    %v398 = vrot.slane %v219, 1
    %v399 = vrot.slane %v188, 1
    %v400 = vrot.slane %v220, 1
    %v401 = vrot.slane %v189, 1
    %v402 = vrot.slane %v221, 1
    %vm403 = vcmp.lt.s32.totalorder %v226, 7
    %v404 = vsel %vm403, %v399, %v401
    %v405 = vsel %vm403, %v400, %v402
    %v406 = vsel %vm403, %v397, %v399
    %v407 = vsel %vm403, %v398, %v400
    %v408 = vsel %vm403, %v395, %v397
    %v409 = vsel %vm403, %v396, %v398
    %v410 = vsel %vm403, %v393, %v395
    %v411 = vsel %vm403, %v394, %v396
    %v412 = vsel %vm403, %v391, %v393
    %v413 = vsel %vm403, %v392, %v394
    %v414 = vsel %vm403, %v389, %v391
    %v415 = vsel %vm403, %v390, %v392
    %v416 = vsel %vm403, %v387, %v389
    %v417 = vsel %vm403, %v388, %v390
    %v418 = vsel %vm403, %v385, %v387
    %v419 = vsel %vm403, %v386, %v388
    %v420 = vsel %vm403, %v383, %v385
    %v421 = vsel %vm403, %v384, %v386
    %v422 = vsel %vm403, %v381, %v383
    %v423 = vsel %vm403, %v382, %v384
    %v424 = vsel %vm403, %v379, %v381
    %v425 = vsel %vm403, %v380, %v382
    %v426 = vsel %vm403, %v377, %v379
    %v427 = vsel %vm403, %v378, %v380
    %v428 = vsel %vm403, %v375, %v377
    %v429 = vsel %vm403, %v376, %v378
    %v430 = vsel %vm403, %v373, %v375
    %v431 = vsel %vm403, %v374, %v376
    %v432 = vsel %vm403, %v371, %v373
    %v433 = vsel %vm403, %v372, %v374
    %v434 = vsel %vm403, %v401, %v371
    %v435 = vsel %vm403, %v402, %v372
    %v436 = vsel %vm355, 0.0, %v432
    %v437 = vsel %vm356, 0.0, %v430
    %v438 = vsel %vm357, 0.0, %v428
    %v439 = vsel %vm358, 0.0, %v426
    %v440 = vsel %vm359, 0.0, %v424
    %v441 = vsel %vm360, 0.0, %v422
    %v442 = vsel %vm361, 0.0, %v420
    %v443 = vsel %vm362, 0.0, %v418
    %v444 = vsel %vm363, 0.0, %v416
    %v445 = vsel %vm364, 0.0, %v414
    %v446 = vsel %vm365, 0.0, %v412
    %v447 = vsel %vm366, 0.0, %v410
    %v448 = vsel %vm367, 0.0, %v408
    %v449 = vsel %vm368, 0.0, %v406
    %v450 = vsel %vm369, 0.0, %v404
    %v451 = vsel %vm370, 0.0, %v434
    %v452 = vsel %vm355, 0.0, %v433
    %v453 = vsel %vm356, 0.0, %v431
    %v454 = vsel %vm357, 0.0, %v429
    %v455 = vsel %vm358, 0.0, %v427
    %v456 = vsel %vm359, 0.0, %v425
    %v457 = vsel %vm360, 0.0, %v423
    %v458 = vsel %vm361, 0.0, %v421
    %v459 = vsel %vm362, 0.0, %v419
    %v460 = vsel %vm363, 0.0, %v417
    %v461 = vsel %vm364, 0.0, %v415
    %v462 = vsel %vm365, 0.0, %v413
    %v463 = vsel %vm366, 0.0, %v411
    %v464 = vsel %vm367, 0.0, %v409
    %v465 = vsel %vm368, 0.0, %v407
    %v466 = vsel %vm369, 0.0, %v405
    %v467 = vsel %vm370, 0.0, %v435
    %469 = vset.pattern.permute.xlu0 0
    %470 = vperm.xlu0 %469, %v323
    %v471 = vpop.permute.xlu0 %470
    %474 = vset.pattern.permute.xlu0 0
    %475 = vperm.xlu0 %474, %v324
    %v476 = vpop.permute.xlu0 %475
    %479 = vset.pattern.permute.xlu0 0
    %480 = vperm.xlu0 %479, %v325
    %v481 = vpop.permute.xlu0 %480
    %484 = vset.pattern.permute.xlu0 0
    %485 = vperm.xlu0 %484, %v326
    %v486 = vpop.permute.xlu0 %485
    %489 = vset.pattern.permute.xlu0 0
    %490 = vperm.xlu0 %489, %v327
    %v491 = vpop.permute.xlu0 %490
    %494 = vset.pattern.permute.xlu0 0
    %495 = vperm.xlu0 %494, %v328
    %v496 = vpop.permute.xlu0 %495
    %499 = vset.pattern.permute.xlu0 0
    %500 = vperm.xlu0 %499, %v329
    %v501 = vpop.permute.xlu0 %500
    %504 = vset.pattern.permute.xlu0 0
    %505 = vperm.xlu0 %504, %v330
    %v506 = vpop.permute.xlu0 %505
    %509 = vset.pattern.permute.xlu0 0
    %510 = vperm.xlu0 %509, %v331
    %v511 = vpop.permute.xlu0 %510
    %514 = vset.pattern.permute.xlu0 0
    %515 = vperm.xlu0 %514, %v332
    %v516 = vpop.permute.xlu0 %515
    %519 = vset.pattern.permute.xlu0 0
    %520 = vperm.xlu0 %519, %v333
    %v521 = vpop.permute.xlu0 %520
    %524 = vset.pattern.permute.xlu0 0
    %525 = vperm.xlu0 %524, %v334
    %v526 = vpop.permute.xlu0 %525
    %529 = vset.pattern.permute.xlu0 0
    %530 = vperm.xlu0 %529, %v335
    %v531 = vpop.permute.xlu0 %530
    %534 = vset.pattern.permute.xlu0 0
    %535 = vperm.xlu0 %534, %v336
    %v536 = vpop.permute.xlu0 %535
    %539 = vset.pattern.permute.xlu0 0
    %540 = vperm.xlu0 %539, %v337
    %v541 = vpop.permute.xlu0 %540
    %544 = vset.pattern.permute.xlu0 0
    %545 = vperm.xlu0 %544, %v338
    %v546 = vpop.permute.xlu0 %545
    %549 = vset.pattern.permute.xlu0 0
    %550 = vperm.xlu0 %549, %v339
    %v551 = vpop.permute.xlu0 %550
    %554 = vset.pattern.permute.xlu0 0
    %555 = vperm.xlu0 %554, %v340
    %v556 = vpop.permute.xlu0 %555
    %559 = vset.pattern.permute.xlu0 0
    %560 = vperm.xlu0 %559, %v341
    %v561 = vpop.permute.xlu0 %560
    %564 = vset.pattern.permute.xlu0 0
    %565 = vperm.xlu0 %564, %v342
    %v566 = vpop.permute.xlu0 %565
    %569 = vset.pattern.permute.xlu0 0
    %570 = vperm.xlu0 %569, %v343
    %v571 = vpop.permute.xlu0 %570
    %574 = vset.pattern.permute.xlu0 0
    %575 = vperm.xlu0 %574, %v344
    %v576 = vpop.permute.xlu0 %575
    %579 = vset.pattern.permute.xlu0 0
    %580 = vperm.xlu0 %579, %v345
    %v581 = vpop.permute.xlu0 %580
    %584 = vset.pattern.permute.xlu0 0
    %585 = vperm.xlu0 %584, %v346
    %v586 = vpop.permute.xlu0 %585
    %589 = vset.pattern.permute.xlu0 0
    %590 = vperm.xlu0 %589, %v347
    %v591 = vpop.permute.xlu0 %590
    %594 = vset.pattern.permute.xlu0 0
    %595 = vperm.xlu0 %594, %v348
    %v596 = vpop.permute.xlu0 %595
    %599 = vset.pattern.permute.xlu0 0
    %600 = vperm.xlu0 %599, %v349
    %v601 = vpop.permute.xlu0 %600
    %604 = vset.pattern.permute.xlu0 0
    %605 = vperm.xlu0 %604, %v350
    %v606 = vpop.permute.xlu0 %605
    %609 = vset.pattern.permute.xlu0 0
    %610 = vperm.xlu0 %609, %v351
    %v611 = vpop.permute.xlu0 %610
    %614 = vset.pattern.permute.xlu0 0
    %615 = vperm.xlu0 %614, %v352
    %v616 = vpop.permute.xlu0 %615
    %619 = vset.pattern.permute.xlu0 0
    %620 = vperm.xlu0 %619, %v353
    %v621 = vpop.permute.xlu0 %620
    %624 = vset.pattern.permute.xlu0 0
    %625 = vperm.xlu0 %624, %v354
    %v626 = vpop.permute.xlu0 %625
    %v629 = vlaneseq
    %v630 = vshrl.u32 %v629, 7
    %v631 = vsub.s32 0, %v630
    %v632 = vrot.slane %v222, %v631
    %v634 = vmul.f32 %v471, %v632
    %v635 = vmul.f32 %v476, %v632
    %v636 = vmul.f32 %v481, %v632
    %v637 = vmul.f32 %v486, %v632
    %v638 = vmul.f32 %v491, %v632
    %v639 = vmul.f32 %v496, %v632
    %v640 = vmul.f32 %v501, %v632
    %v641 = vmul.f32 %v506, %v632
    %v642 = vmul.f32 %v511, %v632
    %v643 = vmul.f32 %v516, %v632
    %v644 = vmul.f32 %v521, %v632
    %v645 = vmul.f32 %v526, %v632
    %v646 = vmul.f32 %v531, %v632
    %v647 = vmul.f32 %v536, %v632
    %v648 = vmul.f32 %v541, %v632
    %v649 = vmul.f32 %v546, %v632
    %v650 = vmul.f32 %v551, %v632
    %v651 = vmul.f32 %v556, %v632
    %v652 = vmul.f32 %v561, %v632
    %v653 = vmul.f32 %v566, %v632
    %v654 = vmul.f32 %v571, %v632
    %v655 = vmul.f32 %v576, %v632
    %v656 = vmul.f32 %v581, %v632
    %v657 = vmul.f32 %v586, %v632
    %v658 = vmul.f32 %v591, %v632
    %v659 = vmul.f32 %v596, %v632
    %v660 = vmul.f32 %v601, %v632
    %v661 = vmul.f32 %v606, %v632
    %v662 = vmul.f32 %v611, %v632
    %v663 = vmul.f32 %v616, %v632
    %v664 = vmul.f32 %v621, %v632
    %v665 = vmul.f32 %v626, %v632
    %667 = vset.pattern.permute.xlu0 0
    %668 = vperm.xlu0 %667, %v174
    %v669 = vpop.permute.xlu0 %668
    %672 = vset.pattern.permute.xlu0 0
    %673 = vperm.xlu0 %672, %v175
    %v674 = vpop.permute.xlu0 %673
    %677 = vset.pattern.permute.xlu0 0
    %678 = vperm.xlu0 %677, %v176
    %v679 = vpop.permute.xlu0 %678
    %682 = vset.pattern.permute.xlu0 0
    %683 = vperm.xlu0 %682, %v177
    %v684 = vpop.permute.xlu0 %683
    %687 = vset.pattern.permute.xlu0 0
    %688 = vperm.xlu0 %687, %v178
    %v689 = vpop.permute.xlu0 %688
    %692 = vset.pattern.permute.xlu0 0
    %693 = vperm.xlu0 %692, %v179
    %v694 = vpop.permute.xlu0 %693
    %697 = vset.pattern.permute.xlu0 0
    %698 = vperm.xlu0 %697, %v180
    %v699 = vpop.permute.xlu0 %698
    %702 = vset.pattern.permute.xlu0 0
    %703 = vperm.xlu0 %702, %v181
    %v704 = vpop.permute.xlu0 %703
    %707 = vset.pattern.permute.xlu0 0
    %708 = vperm.xlu0 %707, %v182
    %v709 = vpop.permute.xlu0 %708
    %712 = vset.pattern.permute.xlu0 0
    %713 = vperm.xlu0 %712, %v183
    %v714 = vpop.permute.xlu0 %713
    %717 = vset.pattern.permute.xlu0 0
    %718 = vperm.xlu0 %717, %v184
    %v719 = vpop.permute.xlu0 %718
    %722 = vset.pattern.permute.xlu0 0
    %723 = vperm.xlu0 %722, %v185
    %v724 = vpop.permute.xlu0 %723
    %727 = vset.pattern.permute.xlu0 0
    %728 = vperm.xlu0 %727, %v186
    %v729 = vpop.permute.xlu0 %728
    %732 = vset.pattern.permute.xlu0 0
    %733 = vperm.xlu0 %732, %v187
    %v734 = vpop.permute.xlu0 %733
    %737 = vset.pattern.permute.xlu0 0
    %738 = vperm.xlu0 %737, %v188
    %v739 = vpop.permute.xlu0 %738
    %742 = vset.pattern.permute.xlu0 0
    %743 = vperm.xlu0 %742, %v189
    %v744 = vpop.permute.xlu0 %743
    %747 = vset.pattern.permute.xlu0 0
    %748 = vperm.xlu0 %747, %v206
    %v749 = vpop.permute.xlu0 %748
    %752 = vset.pattern.permute.xlu0 0
    %753 = vperm.xlu0 %752, %v207
    %v754 = vpop.permute.xlu0 %753
    %757 = vset.pattern.permute.xlu0 0
    %758 = vperm.xlu0 %757, %v208
    %v759 = vpop.permute.xlu0 %758
    %762 = vset.pattern.permute.xlu0 0
    %763 = vperm.xlu0 %762, %v209
    %v764 = vpop.permute.xlu0 %763
    %767 = vset.pattern.permute.xlu0 0
    %768 = vperm.xlu0 %767, %v210
    %v769 = vpop.permute.xlu0 %768
    %772 = vset.pattern.permute.xlu0 0
    %773 = vperm.xlu0 %772, %v211
    %v774 = vpop.permute.xlu0 %773
    %777 = vset.pattern.permute.xlu0 0
    %778 = vperm.xlu0 %777, %v212
    %v779 = vpop.permute.xlu0 %778
    %782 = vset.pattern.permute.xlu0 0
    %783 = vperm.xlu0 %782, %v213
    %v784 = vpop.permute.xlu0 %783
    %787 = vset.pattern.permute.xlu0 0
    %788 = vperm.xlu0 %787, %v214
    %v789 = vpop.permute.xlu0 %788
    %792 = vset.pattern.permute.xlu0 0
    %793 = vperm.xlu0 %792, %v215
    %v794 = vpop.permute.xlu0 %793
    %797 = vset.pattern.permute.xlu0 0
    %798 = vperm.xlu0 %797, %v216
    %v799 = vpop.permute.xlu0 %798
    %802 = vset.pattern.permute.xlu0 0
    %803 = vperm.xlu0 %802, %v217
    %v804 = vpop.permute.xlu0 %803
    %807 = vset.pattern.permute.xlu0 0
    %808 = vperm.xlu0 %807, %v218
    %v809 = vpop.permute.xlu0 %808
    %812 = vset.pattern.permute.xlu0 0
    %813 = vperm.xlu0 %812, %v219
    %v814 = vpop.permute.xlu0 %813
    %817 = vset.pattern.permute.xlu0 0
    %818 = vperm.xlu0 %817, %v220
    %v819 = vpop.permute.xlu0 %818
    %822 = vset.pattern.permute.xlu0 0
    %823 = vperm.xlu0 %822, %v221
    %v824 = vpop.permute.xlu0 %823
    %v827 = vlaneseq
    %v828 = vshrl.u32 %v827, 7
    %v829 = vsub.s32 0, %v828
    %v830 = vrot.slane %v223, %v829
    %v832 = vmul.f32 %v669, %v830
    %v833 = vmul.f32 %v674, %v830
    %v834 = vmul.f32 %v679, %v830
    %v835 = vmul.f32 %v684, %v830
    %v836 = vmul.f32 %v689, %v830
    %v837 = vmul.f32 %v694, %v830
    %v838 = vmul.f32 %v699, %v830
    %v839 = vmul.f32 %v704, %v830
    %v840 = vmul.f32 %v709, %v830
    %v841 = vmul.f32 %v714, %v830
    %v842 = vmul.f32 %v719, %v830
    %v843 = vmul.f32 %v724, %v830
    %v844 = vmul.f32 %v729, %v830
    %v845 = vmul.f32 %v734, %v830
    %v846 = vmul.f32 %v739, %v830
    %v847 = vmul.f32 %v744, %v830
    %v848 = vmul.f32 %v749, %v830
    %v849 = vmul.f32 %v754, %v830
    %v850 = vmul.f32 %v759, %v830
    %v851 = vmul.f32 %v764, %v830
    %v852 = vmul.f32 %v769, %v830
    %v853 = vmul.f32 %v774, %v830
    %v854 = vmul.f32 %v779, %v830
    %v855 = vmul.f32 %v784, %v830
    %v856 = vmul.f32 %v789, %v830
    %v857 = vmul.f32 %v794, %v830
    %v858 = vmul.f32 %v799, %v830
    %v859 = vmul.f32 %v804, %v830
    %v860 = vmul.f32 %v809, %v830
    %v861 = vmul.f32 %v814, %v830
    %v862 = vmul.f32 %v819, %v830
    %v863 = vmul.f32 %v824, %v830
    %v864 = vadd.f32 %v634, %v832
    %v865 = vadd.f32 %v635, %v833
    %v866 = vadd.f32 %v636, %v834
    %v867 = vadd.f32 %v637, %v835
    %v868 = vadd.f32 %v638, %v836
    %v869 = vadd.f32 %v639, %v837
    %v870 = vadd.f32 %v640, %v838
    %v871 = vadd.f32 %v641, %v839
    %v872 = vadd.f32 %v642, %v840
    %v873 = vadd.f32 %v643, %v841
    %v874 = vadd.f32 %v644, %v842
    %v875 = vadd.f32 %v645, %v843
    %v876 = vadd.f32 %v646, %v844
    %v877 = vadd.f32 %v647, %v845
    %v878 = vadd.f32 %v648, %v846
    %v879 = vadd.f32 %v649, %v847
    %v880 = vadd.f32 %v650, %v848
    %v881 = vadd.f32 %v651, %v849
    %v882 = vadd.f32 %v652, %v850
    %v883 = vadd.f32 %v653, %v851
    %v884 = vadd.f32 %v654, %v852
    %v885 = vadd.f32 %v655, %v853
    %v886 = vadd.f32 %v656, %v854
    %v887 = vadd.f32 %v657, %v855
    %v888 = vadd.f32 %v658, %v856
    %v889 = vadd.f32 %v659, %v857
    %v890 = vadd.f32 %v660, %v858
    %v891 = vadd.f32 %v661, %v859
    %v892 = vadd.f32 %v662, %v860
    %v893 = vadd.f32 %v663, %v861
    %v894 = vadd.f32 %v664, %v862
    %v895 = vadd.f32 %v665, %v863
    %897 = vset.pattern.permute.xlu0 0
    %898 = vperm.xlu0 %897, %v436
    %v899 = vpop.permute.xlu0 %898
    %902 = vset.pattern.permute.xlu0 0
    %903 = vperm.xlu0 %902, %v437
    %v904 = vpop.permute.xlu0 %903
    %907 = vset.pattern.permute.xlu0 0
    %908 = vperm.xlu0 %907, %v438
    %v909 = vpop.permute.xlu0 %908
    %912 = vset.pattern.permute.xlu0 0
    %913 = vperm.xlu0 %912, %v439
    %v914 = vpop.permute.xlu0 %913
    %917 = vset.pattern.permute.xlu0 0
    %918 = vperm.xlu0 %917, %v440
    %v919 = vpop.permute.xlu0 %918
    %922 = vset.pattern.permute.xlu0 0
    %923 = vperm.xlu0 %922, %v441
    %v924 = vpop.permute.xlu0 %923
    %927 = vset.pattern.permute.xlu0 0
    %928 = vperm.xlu0 %927, %v442
    %v929 = vpop.permute.xlu0 %928
    %932 = vset.pattern.permute.xlu0 0
    %933 = vperm.xlu0 %932, %v443
    %v934 = vpop.permute.xlu0 %933
    %937 = vset.pattern.permute.xlu0 0
    %938 = vperm.xlu0 %937, %v444
    %v939 = vpop.permute.xlu0 %938
    %942 = vset.pattern.permute.xlu0 0
    %943 = vperm.xlu0 %942, %v445
    %v944 = vpop.permute.xlu0 %943
    %947 = vset.pattern.permute.xlu0 0
    %948 = vperm.xlu0 %947, %v446
    %v949 = vpop.permute.xlu0 %948
    %952 = vset.pattern.permute.xlu0 0
    %953 = vperm.xlu0 %952, %v447
    %v954 = vpop.permute.xlu0 %953
    %957 = vset.pattern.permute.xlu0 0
    %958 = vperm.xlu0 %957, %v448
    %v959 = vpop.permute.xlu0 %958
    %962 = vset.pattern.permute.xlu0 0
    %963 = vperm.xlu0 %962, %v449
    %v964 = vpop.permute.xlu0 %963
    %967 = vset.pattern.permute.xlu0 0
    %968 = vperm.xlu0 %967, %v450
    %v969 = vpop.permute.xlu0 %968
    %972 = vset.pattern.permute.xlu0 0
    %973 = vperm.xlu0 %972, %v451
    %v974 = vpop.permute.xlu0 %973
    %977 = vset.pattern.permute.xlu0 0
    %978 = vperm.xlu0 %977, %v452
    %v979 = vpop.permute.xlu0 %978
    %982 = vset.pattern.permute.xlu0 0
    %983 = vperm.xlu0 %982, %v453
    %v984 = vpop.permute.xlu0 %983
    %987 = vset.pattern.permute.xlu0 0
    %988 = vperm.xlu0 %987, %v454
    %v989 = vpop.permute.xlu0 %988
    %992 = vset.pattern.permute.xlu0 0
    %993 = vperm.xlu0 %992, %v455
    %v994 = vpop.permute.xlu0 %993
    %997 = vset.pattern.permute.xlu0 0
    %998 = vperm.xlu0 %997, %v456
    %v999 = vpop.permute.xlu0 %998
    %1002 = vset.pattern.permute.xlu0 0
    %1003 = vperm.xlu0 %1002, %v457
    %v1004 = vpop.permute.xlu0 %1003
    %1007 = vset.pattern.permute.xlu0 0
    %1008 = vperm.xlu0 %1007, %v458
    %v1009 = vpop.permute.xlu0 %1008
    %1012 = vset.pattern.permute.xlu0 0
    %1013 = vperm.xlu0 %1012, %v459
    %v1014 = vpop.permute.xlu0 %1013
    %1017 = vset.pattern.permute.xlu0 0
    %1018 = vperm.xlu0 %1017, %v460
    %v1019 = vpop.permute.xlu0 %1018
    %1022 = vset.pattern.permute.xlu0 0
    %1023 = vperm.xlu0 %1022, %v461
    %v1024 = vpop.permute.xlu0 %1023
    %1027 = vset.pattern.permute.xlu0 0
    %1028 = vperm.xlu0 %1027, %v462
    %v1029 = vpop.permute.xlu0 %1028
    %1032 = vset.pattern.permute.xlu0 0
    %1033 = vperm.xlu0 %1032, %v463
    %v1034 = vpop.permute.xlu0 %1033
    %1037 = vset.pattern.permute.xlu0 0
    %1038 = vperm.xlu0 %1037, %v464
    %v1039 = vpop.permute.xlu0 %1038
    %1042 = vset.pattern.permute.xlu0 0
    %1043 = vperm.xlu0 %1042, %v465
    %v1044 = vpop.permute.xlu0 %1043
    %1047 = vset.pattern.permute.xlu0 0
    %1048 = vperm.xlu0 %1047, %v466
    %v1049 = vpop.permute.xlu0 %1048
    %1052 = vset.pattern.permute.xlu0 0
    %1053 = vperm.xlu0 %1052, %v467
    %v1054 = vpop.permute.xlu0 %1053
    %v1057 = vlaneseq
    %v1058 = vshrl.u32 %v1057, 7
    %v1059 = vsub.s32 0, %v1058
    %v1060 = vrot.slane %v224, %v1059
    %v1062 = vmul.f32 %v899, %v1060
    %v1063 = vmul.f32 %v904, %v1060
    %v1064 = vmul.f32 %v909, %v1060
    %v1065 = vmul.f32 %v914, %v1060
    %v1066 = vmul.f32 %v919, %v1060
    %v1067 = vmul.f32 %v924, %v1060
    %v1068 = vmul.f32 %v929, %v1060
    %v1069 = vmul.f32 %v934, %v1060
    %v1070 = vmul.f32 %v939, %v1060
    %v1071 = vmul.f32 %v944, %v1060
    %v1072 = vmul.f32 %v949, %v1060
    %v1073 = vmul.f32 %v954, %v1060
    %v1074 = vmul.f32 %v959, %v1060
    %v1075 = vmul.f32 %v964, %v1060
    %v1076 = vmul.f32 %v969, %v1060
    %v1077 = vmul.f32 %v974, %v1060
    %v1078 = vmul.f32 %v979, %v1060
    %v1079 = vmul.f32 %v984, %v1060
    %v1080 = vmul.f32 %v989, %v1060
    %v1081 = vmul.f32 %v994, %v1060
    %v1082 = vmul.f32 %v999, %v1060
    %v1083 = vmul.f32 %v1004, %v1060
    %v1084 = vmul.f32 %v1009, %v1060
    %v1085 = vmul.f32 %v1014, %v1060
    %v1086 = vmul.f32 %v1019, %v1060
    %v1087 = vmul.f32 %v1024, %v1060
    %v1088 = vmul.f32 %v1029, %v1060
    %v1089 = vmul.f32 %v1034, %v1060
    %v1090 = vmul.f32 %v1039, %v1060
    %v1091 = vmul.f32 %v1044, %v1060
    %v1092 = vmul.f32 %v1049, %v1060
    %v1093 = vmul.f32 %v1054, %v1060
    %v1094 = vadd.f32 %v864, %v1062
    %v1095 = vadd.f32 %v865, %v1063
    %v1096 = vadd.f32 %v866, %v1064
    %v1097 = vadd.f32 %v867, %v1065
    %v1098 = vadd.f32 %v868, %v1066
    %v1099 = vadd.f32 %v869, %v1067
    %v1100 = vadd.f32 %v870, %v1068
    %v1101 = vadd.f32 %v871, %v1069
    %v1102 = vadd.f32 %v872, %v1070
    %v1103 = vadd.f32 %v873, %v1071
    %v1104 = vadd.f32 %v874, %v1072
    %v1105 = vadd.f32 %v875, %v1073
    %v1106 = vadd.f32 %v876, %v1074
    %v1107 = vadd.f32 %v877, %v1075
    %v1108 = vadd.f32 %v878, %v1076
    %v1109 = vadd.f32 %v879, %v1077
    %v1110 = vadd.f32 %v880, %v1078
    %v1111 = vadd.f32 %v881, %v1079
    %v1112 = vadd.f32 %v882, %v1080
    %v1113 = vadd.f32 %v883, %v1081
    %v1114 = vadd.f32 %v884, %v1082
    %v1115 = vadd.f32 %v885, %v1083
    %v1116 = vadd.f32 %v886, %v1084
    %v1117 = vadd.f32 %v887, %v1085
    %v1118 = vadd.f32 %v888, %v1086
    %v1119 = vadd.f32 %v889, %v1087
    %v1120 = vadd.f32 %v890, %v1088
    %v1121 = vadd.f32 %v891, %v1089
    %v1122 = vadd.f32 %v892, %v1090
    %v1123 = vadd.f32 %v893, %v1091
    %v1124 = vadd.f32 %v894, %v1092
    %v1125 = vadd.f32 %v895, %v1093
    %v1126 = vld [vmem:[%s4] sm:$0x1]
    %v1128 = vlaneseq
    %v1129 = vshrl.u32 %v1128, 7
    %v1130 = vsub.s32 0, %v1129
    %v1131 = vrot.slane %v1126, %v1130
    %v1133 = vadd.f32 %v1094, %v1131
    %v1134 = vadd.f32 %v1095, %v1131
    %v1135 = vadd.f32 %v1096, %v1131
    %v1136 = vadd.f32 %v1097, %v1131
    %v1137 = vadd.f32 %v1098, %v1131
    %v1138 = vadd.f32 %v1099, %v1131
    %v1139 = vadd.f32 %v1100, %v1131
    %v1140 = vadd.f32 %v1101, %v1131
    %v1141 = vadd.f32 %v1102, %v1131
    %v1142 = vadd.f32 %v1103, %v1131
    %v1143 = vadd.f32 %v1104, %v1131
    %v1144 = vadd.f32 %v1105, %v1131
    %v1145 = vadd.f32 %v1106, %v1131
    %v1146 = vadd.f32 %v1107, %v1131
    %v1147 = vadd.f32 %v1108, %v1131
    %v1148 = vadd.f32 %v1109, %v1131
    %v1149 = vadd.f32 %v1110, %v1131
    %v1150 = vadd.f32 %v1111, %v1131
    %v1151 = vadd.f32 %v1112, %v1131
    %v1152 = vadd.f32 %v1113, %v1131
    %v1153 = vadd.f32 %v1114, %v1131
    %v1154 = vadd.f32 %v1115, %v1131
    %v1155 = vadd.f32 %v1116, %v1131
    %v1156 = vadd.f32 %v1117, %v1131
    %v1157 = vadd.f32 %v1118, %v1131
    %v1158 = vadd.f32 %v1119, %v1131
    %v1159 = vadd.f32 %v1120, %v1131
    %v1160 = vadd.f32 %v1121, %v1131
    %v1161 = vadd.f32 %v1122, %v1131
    %v1162 = vadd.f32 %v1123, %v1131
    %v1163 = vadd.f32 %v1124, %v1131
    %v1164 = vadd.f32 %v1125, %v1131
    %v1165 = vmax.f32 %v1133, 0.0
    %v1166 = vmax.f32 %v1134, 0.0
    %v1167 = vmax.f32 %v1135, 0.0
    %v1168 = vmax.f32 %v1136, 0.0
    %v1169 = vmax.f32 %v1137, 0.0
    %v1170 = vmax.f32 %v1138, 0.0
    %v1171 = vmax.f32 %v1139, 0.0
    %v1172 = vmax.f32 %v1140, 0.0
    %v1173 = vmax.f32 %v1141, 0.0
    %v1174 = vmax.f32 %v1142, 0.0
    %v1175 = vmax.f32 %v1143, 0.0
    %v1176 = vmax.f32 %v1144, 0.0
    %v1177 = vmax.f32 %v1145, 0.0
    %v1178 = vmax.f32 %v1146, 0.0
    %v1179 = vmax.f32 %v1147, 0.0
    %v1180 = vmax.f32 %v1148, 0.0
    %v1181 = vmax.f32 %v1149, 0.0
    %v1182 = vmax.f32 %v1150, 0.0
    %v1183 = vmax.f32 %v1151, 0.0
    %v1184 = vmax.f32 %v1152, 0.0
    %v1185 = vmax.f32 %v1153, 0.0
    %v1186 = vmax.f32 %v1154, 0.0
    %v1187 = vmax.f32 %v1155, 0.0
    %v1188 = vmax.f32 %v1156, 0.0
    %v1189 = vmax.f32 %v1157, 0.0
    %v1190 = vmax.f32 %v1158, 0.0
    %v1191 = vmax.f32 %v1159, 0.0
    %v1192 = vmax.f32 %v1160, 0.0
    %v1193 = vmax.f32 %v1161, 0.0
    %v1194 = vmax.f32 %v1162, 0.0
    %v1195 = vmax.f32 %v1163, 0.0
    %v1196 = vmax.f32 %v1164, 0.0
    %v1197 = vrot.slane %v1165, 7
    %v1198 = vrot.slane %v1181, 7
    %v1199 = vrot.slane %v1166, 7
    %v1200 = vrot.slane %v1182, 7
    %v1201 = vrot.slane %v1167, 7
    %v1202 = vrot.slane %v1183, 7
    %v1203 = vrot.slane %v1168, 7
    %v1204 = vrot.slane %v1184, 7
    %v1205 = vrot.slane %v1169, 7
    %v1206 = vrot.slane %v1185, 7
    %v1207 = vrot.slane %v1170, 7
    %v1208 = vrot.slane %v1186, 7
    %v1209 = vrot.slane %v1171, 7
    %v1210 = vrot.slane %v1187, 7
    %v1211 = vrot.slane %v1172, 7
    %v1212 = vrot.slane %v1188, 7
    %v1213 = vrot.slane %v1173, 7
    %v1214 = vrot.slane %v1189, 7
    %v1215 = vrot.slane %v1174, 7
    %v1216 = vrot.slane %v1190, 7
    %v1217 = vrot.slane %v1175, 7
    %v1218 = vrot.slane %v1191, 7
    %v1219 = vrot.slane %v1176, 7
    %v1220 = vrot.slane %v1192, 7
    %v1221 = vrot.slane %v1177, 7
    %v1222 = vrot.slane %v1193, 7
    %v1223 = vrot.slane %v1178, 7
    %v1224 = vrot.slane %v1194, 7
    %v1225 = vrot.slane %v1179, 7
    %v1226 = vrot.slane %v1195, 7
    %v1227 = vrot.slane %v1180, 7
    %v1228 = vrot.slane %v1196, 7
    %v1229 = vsel %vm290, %v1225, %v1227
    %v1230 = vsel %vm290, %v1226, %v1228
    %v1231 = vsel %vm290, %v1223, %v1225
    %v1232 = vsel %vm290, %v1224, %v1226
    %v1233 = vsel %vm290, %v1221, %v1223
    %v1234 = vsel %vm290, %v1222, %v1224
    %v1235 = vsel %vm290, %v1219, %v1221
    %v1236 = vsel %vm290, %v1220, %v1222
    %v1237 = vsel %vm290, %v1217, %v1219
    %v1238 = vsel %vm290, %v1218, %v1220
    %v1239 = vsel %vm290, %v1215, %v1217
    %v1240 = vsel %vm290, %v1216, %v1218
    %v1241 = vsel %vm290, %v1213, %v1215
    %v1242 = vsel %vm290, %v1214, %v1216
    %v1243 = vsel %vm290, %v1211, %v1213
    %v1244 = vsel %vm290, %v1212, %v1214
    %v1245 = vsel %vm290, %v1209, %v1211
    %v1246 = vsel %vm290, %v1210, %v1212
    %v1247 = vsel %vm290, %v1207, %v1209
    %v1248 = vsel %vm290, %v1208, %v1210
    %v1249 = vsel %vm290, %v1205, %v1207
    %v1250 = vsel %vm290, %v1206, %v1208
    %v1251 = vsel %vm290, %v1203, %v1205
    %v1252 = vsel %vm290, %v1204, %v1206
    %v1253 = vsel %vm290, %v1201, %v1203
    %v1254 = vsel %vm290, %v1202, %v1204
    %v1255 = vsel %vm290, %v1199, %v1201
    %v1256 = vsel %vm290, %v1200, %v1202
    %v1257 = vsel %vm290, %v1197, %v1199
    %v1258 = vsel %vm290, %v1198, %v1200
    %v1259 = vsel %vm290, %v1227, %v1197
    %v1260 = vsel %vm290, %v1228, %v1198
    %v1261 = vsel %vm242, 0.0, %v1259
    %v1262 = vsel %vm243, 0.0, %v1257
    %v1263 = vsel %vm244, 0.0, %v1255
    %v1264 = vsel %vm245, 0.0, %v1253
    %v1265 = vsel %vm246, 0.0, %v1251
    %v1266 = vsel %vm247, 0.0, %v1249
    %v1267 = vsel %vm248, 0.0, %v1247
    %v1268 = vsel %vm249, 0.0, %v1245
    %v1269 = vsel %vm250, 0.0, %v1243
    %v1270 = vsel %vm251, 0.0, %v1241
    %v1271 = vsel %vm252, 0.0, %v1239
    %v1272 = vsel %vm253, 0.0, %v1237
    %v1273 = vsel %vm254, 0.0, %v1235
    %v1274 = vsel %vm255, 0.0, %v1233
    %v1275 = vsel %vm256, 0.0, %v1231
    %v1276 = vsel %vm257, 0.0, %v1229
    %v1277 = vsel %vm242, 0.0, %v1260
    %v1278 = vsel %vm243, 0.0, %v1258
    %v1279 = vsel %vm244, 0.0, %v1256
    %v1280 = vsel %vm245, 0.0, %v1254
    %v1281 = vsel %vm246, 0.0, %v1252
    %v1282 = vsel %vm247, 0.0, %v1250
    %v1283 = vsel %vm248, 0.0, %v1248
    %v1284 = vsel %vm249, 0.0, %v1246
    %v1285 = vsel %vm250, 0.0, %v1244
    %v1286 = vsel %vm251, 0.0, %v1242
    %v1287 = vsel %vm252, 0.0, %v1240
    %v1288 = vsel %vm253, 0.0, %v1238
    %v1289 = vsel %vm254, 0.0, %v1236
    %v1290 = vsel %vm255, 0.0, %v1234
    %v1291 = vsel %vm256, 0.0, %v1232
    %v1292 = vsel %vm257, 0.0, %v1230
    %v1293 = vrot.slane %v1165, 1
    %v1294 = vrot.slane %v1181, 1
    %v1295 = vrot.slane %v1166, 1
    %v1296 = vrot.slane %v1182, 1
    %v1297 = vrot.slane %v1167, 1
    %v1298 = vrot.slane %v1183, 1
    %v1299 = vrot.slane %v1168, 1
    %v1300 = vrot.slane %v1184, 1
    %v1301 = vrot.slane %v1169, 1
    %v1302 = vrot.slane %v1185, 1
    %v1303 = vrot.slane %v1170, 1
    %v1304 = vrot.slane %v1186, 1
    %v1305 = vrot.slane %v1171, 1
    %v1306 = vrot.slane %v1187, 1
    %v1307 = vrot.slane %v1172, 1
    %v1308 = vrot.slane %v1188, 1
    %v1309 = vrot.slane %v1173, 1
    %v1310 = vrot.slane %v1189, 1
    %v1311 = vrot.slane %v1174, 1
    %v1312 = vrot.slane %v1190, 1
    %v1313 = vrot.slane %v1175, 1
    %v1314 = vrot.slane %v1191, 1
    %v1315 = vrot.slane %v1176, 1
    %v1316 = vrot.slane %v1192, 1
    %v1317 = vrot.slane %v1177, 1
    %v1318 = vrot.slane %v1193, 1
    %v1319 = vrot.slane %v1178, 1
    %v1320 = vrot.slane %v1194, 1
    %v1321 = vrot.slane %v1179, 1
    %v1322 = vrot.slane %v1195, 1
    %v1323 = vrot.slane %v1180, 1
    %v1324 = vrot.slane %v1196, 1
    %v1325 = vsel %vm403, %v1321, %v1323
    %v1326 = vsel %vm403, %v1322, %v1324
    %v1327 = vsel %vm403, %v1319, %v1321
    %v1328 = vsel %vm403, %v1320, %v1322
    %v1329 = vsel %vm403, %v1317, %v1319
    %v1330 = vsel %vm403, %v1318, %v1320
    %v1331 = vsel %vm403, %v1315, %v1317
    %v1332 = vsel %vm403, %v1316, %v1318
    %v1333 = vsel %vm403, %v1313, %v1315
    %v1334 = vsel %vm403, %v1314, %v1316
    %v1335 = vsel %vm403, %v1311, %v1313
    %v1336 = vsel %vm403, %v1312, %v1314
    %v1337 = vsel %vm403, %v1309, %v1311
    %v1338 = vsel %vm403, %v1310, %v1312
    %v1339 = vsel %vm403, %v1307, %v1309
    %v1340 = vsel %vm403, %v1308, %v1310
    %v1341 = vsel %vm403, %v1305, %v1307
    %v1342 = vsel %vm403, %v1306, %v1308
    %v1343 = vsel %vm403, %v1303, %v1305
    %v1344 = vsel %vm403, %v1304, %v1306
    %v1345 = vsel %vm403, %v1301, %v1303
    %v1346 = vsel %vm403, %v1302, %v1304
    %v1347 = vsel %vm403, %v1299, %v1301
    %v1348 = vsel %vm403, %v1300, %v1302
    %v1349 = vsel %vm403, %v1297, %v1299
    %v1350 = vsel %vm403, %v1298, %v1300
    %v1351 = vsel %vm403, %v1295, %v1297
    %v1352 = vsel %vm403, %v1296, %v1298
    %v1353 = vsel %vm403, %v1293, %v1295
    %v1354 = vsel %vm403, %v1294, %v1296
    %v1355 = vsel %vm403, %v1323, %v1293
    %v1356 = vsel %vm403, %v1324, %v1294
    %v1357 = vsel %vm355, 0.0, %v1353
    %v1358 = vsel %vm356, 0.0, %v1351
    %v1359 = vsel %vm357, 0.0, %v1349
    %v1360 = vsel %vm358, 0.0, %v1347
    %v1361 = vsel %vm359, 0.0, %v1345
    %v1362 = vsel %vm360, 0.0, %v1343
    %v1363 = vsel %vm361, 0.0, %v1341
    %v1364 = vsel %vm362, 0.0, %v1339
    %v1365 = vsel %vm363, 0.0, %v1337
    %v1366 = vsel %vm364, 0.0, %v1335
    %v1367 = vsel %vm365, 0.0, %v1333
    %v1368 = vsel %vm366, 0.0, %v1331
    %v1369 = vsel %vm367, 0.0, %v1329
    %v1370 = vsel %vm368, 0.0, %v1327
    %v1371 = vsel %vm369, 0.0, %v1325
    %v1372 = vsel %vm370, 0.0, %v1355
    %v1373 = vsel %vm355, 0.0, %v1354
    %v1374 = vsel %vm356, 0.0, %v1352
    %v1375 = vsel %vm357, 0.0, %v1350
    %v1376 = vsel %vm358, 0.0, %v1348
    %v1377 = vsel %vm359, 0.0, %v1346
    %v1378 = vsel %vm360, 0.0, %v1344
    %v1379 = vsel %vm361, 0.0, %v1342
    %v1380 = vsel %vm362, 0.0, %v1340
    %v1381 = vsel %vm363, 0.0, %v1338
    %v1382 = vsel %vm364, 0.0, %v1336
    %v1383 = vsel %vm365, 0.0, %v1334
    %v1384 = vsel %vm366, 0.0, %v1332
    %v1385 = vsel %vm367, 0.0, %v1330
    %v1386 = vsel %vm368, 0.0, %v1328
    %v1387 = vsel %vm369, 0.0, %v1326
    %v1388 = vsel %vm370, 0.0, %v1356
    %1421 = vrot.lane.b32.xlu0 %v1165, 16
    %v1422 = vpop.permute.xlu0 %1421
    %1423 = vrot.lane.b32.xlu0 %v1166, 16
    %v1424 = vpop.permute.xlu0 %1423
    %1425 = vrot.lane.b32.xlu0 %v1167, 16
    %v1426 = vpop.permute.xlu0 %1425
    %1427 = vrot.lane.b32.xlu0 %v1168, 16
    %v1428 = vpop.permute.xlu0 %1427
    %1429 = vrot.lane.b32.xlu0 %v1169, 16
    %v1430 = vpop.permute.xlu0 %1429
    %1431 = vrot.lane.b32.xlu0 %v1170, 16
    %v1432 = vpop.permute.xlu0 %1431
    %1433 = vrot.lane.b32.xlu0 %v1171, 16
    %v1434 = vpop.permute.xlu0 %1433
    %1435 = vrot.lane.b32.xlu0 %v1172, 16
    %v1436 = vpop.permute.xlu0 %1435
    %1437 = vrot.lane.b32.xlu0 %v1173, 16
    %v1438 = vpop.permute.xlu0 %1437
    %1439 = vrot.lane.b32.xlu0 %v1174, 16
    %v1440 = vpop.permute.xlu0 %1439
    %1441 = vrot.lane.b32.xlu0 %v1175, 16
    %v1442 = vpop.permute.xlu0 %1441
    %1443 = vrot.lane.b32.xlu0 %v1176, 16
    %v1444 = vpop.permute.xlu0 %1443
    %1445 = vrot.lane.b32.xlu0 %v1177, 16
    %v1446 = vpop.permute.xlu0 %1445
    %1447 = vrot.lane.b32.xlu0 %v1178, 16
    %v1448 = vpop.permute.xlu0 %1447
    %1449 = vrot.lane.b32.xlu0 %v1179, 16
    %v1450 = vpop.permute.xlu0 %1449
    %1451 = vrot.lane.b32.xlu0 %v1180, 16
    %v1452 = vpop.permute.xlu0 %1451
    %1453 = vrot.lane.b32.xlu0 %v1181, 16
    %v1454 = vpop.permute.xlu0 %1453
    %1455 = vrot.lane.b32.xlu0 %v1182, 16
    %v1456 = vpop.permute.xlu0 %1455
    %1457 = vrot.lane.b32.xlu0 %v1183, 16
    %v1458 = vpop.permute.xlu0 %1457
    %1459 = vrot.lane.b32.xlu0 %v1184, 16
    %v1460 = vpop.permute.xlu0 %1459
    %1461 = vrot.lane.b32.xlu0 %v1185, 16
    %v1462 = vpop.permute.xlu0 %1461
    %1463 = vrot.lane.b32.xlu0 %v1186, 16
    %v1464 = vpop.permute.xlu0 %1463
    %1465 = vrot.lane.b32.xlu0 %v1187, 16
    %v1466 = vpop.permute.xlu0 %1465
    %1467 = vrot.lane.b32.xlu0 %v1188, 16
    %v1468 = vpop.permute.xlu0 %1467
    %1469 = vrot.lane.b32.xlu0 %v1189, 16
    %v1470 = vpop.permute.xlu0 %1469
    %1471 = vrot.lane.b32.xlu0 %v1190, 16
    %v1472 = vpop.permute.xlu0 %1471
    %1473 = vrot.lane.b32.xlu0 %v1191, 16
    %v1474 = vpop.permute.xlu0 %1473
    %1475 = vrot.lane.b32.xlu0 %v1192, 16
    %v1476 = vpop.permute.xlu0 %1475
    %1477 = vrot.lane.b32.xlu0 %v1193, 16
    %v1478 = vpop.permute.xlu0 %1477
    %1479 = vrot.lane.b32.xlu0 %v1194, 16
    %v1480 = vpop.permute.xlu0 %1479
    %1481 = vrot.lane.b32.xlu0 %v1195, 16
    %v1482 = vpop.permute.xlu0 %1481
    %1483 = vrot.lane.b32.xlu0 %v1196, 16
    %v1484 = vpop.permute.xlu0 %1483
    %1549 = vrot.lane.b32.xlu0 %v1357, 32
    %v1550 = vpop.permute.xlu0 %1549
    %1551 = vrot.lane.b32.xlu0 %v1358, 32
    %v1552 = vpop.permute.xlu0 %1551
    %1553 = vrot.lane.b32.xlu0 %v1359, 32
    %v1554 = vpop.permute.xlu0 %1553
    %1555 = vrot.lane.b32.xlu0 %v1360, 32
    %v1556 = vpop.permute.xlu0 %1555
    %1557 = vrot.lane.b32.xlu0 %v1361, 32
    %v1558 = vpop.permute.xlu0 %1557
    %1559 = vrot.lane.b32.xlu0 %v1362, 32
    %v1560 = vpop.permute.xlu0 %1559
    %1561 = vrot.lane.b32.xlu0 %v1363, 32
    %v1562 = vpop.permute.xlu0 %1561
    %1563 = vrot.lane.b32.xlu0 %v1364, 32
    %v1564 = vpop.permute.xlu0 %1563
    %1565 = vrot.lane.b32.xlu0 %v1365, 32
    %v1566 = vpop.permute.xlu0 %1565
    %1567 = vrot.lane.b32.xlu0 %v1366, 32
    %v1568 = vpop.permute.xlu0 %1567
    %1569 = vrot.lane.b32.xlu0 %v1367, 32
    %v1570 = vpop.permute.xlu0 %1569
    %1571 = vrot.lane.b32.xlu0 %v1368, 32
    %v1572 = vpop.permute.xlu0 %1571
    %1573 = vrot.lane.b32.xlu0 %v1369, 32
    %v1574 = vpop.permute.xlu0 %1573
    %1575 = vrot.lane.b32.xlu0 %v1370, 32
    %v1576 = vpop.permute.xlu0 %1575
    %1577 = vrot.lane.b32.xlu0 %v1371, 32
    %v1578 = vpop.permute.xlu0 %1577
    %1579 = vrot.lane.b32.xlu0 %v1372, 32
    %v1580 = vpop.permute.xlu0 %1579
    %1581 = vrot.lane.b32.xlu0 %v1373, 32
    %v1582 = vpop.permute.xlu0 %1581
    %1583 = vrot.lane.b32.xlu0 %v1374, 32
    %v1584 = vpop.permute.xlu0 %1583
    %1585 = vrot.lane.b32.xlu0 %v1375, 32
    %v1586 = vpop.permute.xlu0 %1585
    %1587 = vrot.lane.b32.xlu0 %v1376, 32
    %v1588 = vpop.permute.xlu0 %1587
    %1589 = vrot.lane.b32.xlu0 %v1377, 32
    %v1590 = vpop.permute.xlu0 %1589
    %1591 = vrot.lane.b32.xlu0 %v1378, 32
    %v1592 = vpop.permute.xlu0 %1591
    %1593 = vrot.lane.b32.xlu0 %v1379, 32
    %v1594 = vpop.permute.xlu0 %1593
    %1595 = vrot.lane.b32.xlu0 %v1380, 32
    %v1596 = vpop.permute.xlu0 %1595
    %1597 = vrot.lane.b32.xlu0 %v1381, 32
    %v1598 = vpop.permute.xlu0 %1597
    %1599 = vrot.lane.b32.xlu0 %v1382, 32
    %v1600 = vpop.permute.xlu0 %1599
    %1601 = vrot.lane.b32.xlu0 %v1383, 32
    %v1602 = vpop.permute.xlu0 %1601
    %1603 = vrot.lane.b32.xlu0 %v1384, 32
    %v1604 = vpop.permute.xlu0 %1603
    %1605 = vrot.lane.b32.xlu0 %v1385, 32
    %v1606 = vpop.permute.xlu0 %1605
    %1607 = vrot.lane.b32.xlu0 %v1386, 32
    %v1608 = vpop.permute.xlu0 %1607
    %1609 = vrot.lane.b32.xlu0 %v1387, 32
    %v1610 = vpop.permute.xlu0 %1609
    %1611 = vrot.lane.b32.xlu0 %v1388, 32
    %v1612 = vpop.permute.xlu0 %1611
    %v1645 = vsel %vm58, %v1261, %v1422
    %v1646 = vsel %vm58, %v1262, %v1424
    %v1647 = vsel %vm58, %v1263, %v1426
    %v1648 = vsel %vm58, %v1264, %v1428
    %v1649 = vsel %vm58, %v1265, %v1430
    %v1650 = vsel %vm58, %v1266, %v1432
    %v1651 = vsel %vm58, %v1267, %v1434
    %v1652 = vsel %vm58, %v1268, %v1436
    %v1653 = vsel %vm58, %v1269, %v1438
    %v1654 = vsel %vm58, %v1270, %v1440
    %v1655 = vsel %vm58, %v1271, %v1442
    %v1656 = vsel %vm58, %v1272, %v1444
    %v1657 = vsel %vm58, %v1273, %v1446
    %v1658 = vsel %vm58, %v1274, %v1448
    %v1659 = vsel %vm58, %v1275, %v1450
    %v1660 = vsel %vm58, %v1276, %v1452
    %v1661 = vsel %vm58, %v1277, %v1454
    %v1662 = vsel %vm58, %v1278, %v1456
    %v1663 = vsel %vm58, %v1279, %v1458
    %v1664 = vsel %vm58, %v1280, %v1460
    %v1665 = vsel %vm58, %v1281, %v1462
    %v1666 = vsel %vm58, %v1282, %v1464
    %v1667 = vsel %vm58, %v1283, %v1466
    %v1668 = vsel %vm58, %v1284, %v1468
    %v1669 = vsel %vm58, %v1285, %v1470
    %v1670 = vsel %vm58, %v1286, %v1472
    %v1671 = vsel %vm58, %v1287, %v1474
    %v1672 = vsel %vm58, %v1288, %v1476
    %v1673 = vsel %vm58, %v1289, %v1478
    %v1674 = vsel %vm58, %v1290, %v1480
    %v1675 = vsel %vm58, %v1291, %v1482
    %v1676 = vsel %vm58, %v1292, %v1484
    %vm1677 = vcmask 261120
    %v1678 = vsel %vm1677, %v1645, %v1550
    %v1679 = vsel %vm1677, %v1646, %v1552
    %v1680 = vsel %vm1677, %v1647, %v1554
    %v1681 = vsel %vm1677, %v1648, %v1556
    %v1682 = vsel %vm1677, %v1649, %v1558
    %v1683 = vsel %vm1677, %v1650, %v1560
    %v1684 = vsel %vm1677, %v1651, %v1562
    %v1685 = vsel %vm1677, %v1652, %v1564
    %v1686 = vsel %vm1677, %v1653, %v1566
    %v1687 = vsel %vm1677, %v1654, %v1568
    %v1688 = vsel %vm1677, %v1655, %v1570
    %v1689 = vsel %vm1677, %v1656, %v1572
    %v1690 = vsel %vm1677, %v1657, %v1574
    %v1691 = vsel %vm1677, %v1658, %v1576
    %v1692 = vsel %vm1677, %v1659, %v1578
    %v1693 = vsel %vm1677, %v1660, %v1580
    %v1694 = vsel %vm1677, %v1661, %v1582
    %v1695 = vsel %vm1677, %v1662, %v1584
    %v1696 = vsel %vm1677, %v1663, %v1586
    %v1697 = vsel %vm1677, %v1664, %v1588
    %v1698 = vsel %vm1677, %v1665, %v1590
    %v1699 = vsel %vm1677, %v1666, %v1592
    %v1700 = vsel %vm1677, %v1667, %v1594
    %v1701 = vsel %vm1677, %v1668, %v1596
    %v1702 = vsel %vm1677, %v1669, %v1598
    %v1703 = vsel %vm1677, %v1670, %v1600
    %v1704 = vsel %vm1677, %v1671, %v1602
    %v1705 = vsel %vm1677, %v1672, %v1604
    %v1706 = vsel %vm1677, %v1673, %v1606
    %v1707 = vsel %vm1677, %v1674, %v1608
    %v1708 = vsel %vm1677, %v1675, %v1610
    %v1709 = vsel %vm1677, %v1676, %v1612
    %v1710 = vpack.c.bf16 %v1679, %v1678
    %v1711 = vpack.c.bf16 %v1681, %v1680
    %v1712 = vpack.c.bf16 %v1683, %v1682
    %v1713 = vpack.c.bf16 %v1685, %v1684
    %v1714 = vpack.c.bf16 %v1687, %v1686
    %v1715 = vpack.c.bf16 %v1689, %v1688
    %v1716 = vpack.c.bf16 %v1691, %v1690
    %v1717 = vpack.c.bf16 %v1693, %v1692
    %v1718 = vpack.c.bf16 %v1695, %v1694
    %v1719 = vpack.c.bf16 %v1697, %v1696
    %v1720 = vpack.c.bf16 %v1699, %v1698
    %v1721 = vpack.c.bf16 %v1701, %v1700
    %v1722 = vpack.c.bf16 %v1703, %v1702
    %v1723 = vpack.c.bf16 %v1705, %v1704
    %v1724 = vpack.c.bf16 %v1707, %v1706
    %v1725 = vpack.c.bf16 %v1709, %v1708
    %v1726 = vld [vmem:[%s5] sm:$0xf]
    %v1727 = vld [vmem:[%s5 + $0x4] sm:$0xf]
    %v1728 = vld [vmem:[%s5 + $0x8] sm:$0xf]
    %v1729 = vld [vmem:[%s5 + $0xc] sm:$0xf]
    %v1730 = vld [vmem:[%s5 + $0x10] sm:$0xf]
    %v1731 = vld [vmem:[%s5 + $0x14] sm:$0xf]
    %v1732 = vld [vmem:[%s6] sm:$0x1]
    %v1734 = vlaneseq
    %v1735 = vshrl.u32 %v1734, 7
    %v1736 = vsub.s32 0, %v1735
    %v1737 = vrot.slane %v1732, %v1736
    %v1745 = vunpack.c.l.b16 %v1726
    %v1746 = vunpack.c.l.b16 %v1727
    %v1747 = vunpack.c.l.b16 %v1728
    %v1748 = vunpack.c.l.b16 %v1729
    %v1749 = vunpack.c.l.b16 %v1730
    %v1750 = vunpack.c.l.b16 %v1731
    %v1751 = vpack.c.b16 %v1746, %v1745
    %v1752 = vpack.c.b16 %v1748, %v1747
    %v1753 = vpack.c.b16 %v1750, %v1749
    %vm1757 = vcmask 392192
    %v1759 = vsel %vm1757, %v1710, 0
    %v1762 = vsel %vm1757, %v1711, 0
    %v1765 = vsel %vm1757, %v1712, 0
    %v1768 = vsel %vm1757, %v1713, 0
    %v1771 = vsel %vm1757, %v1714, 0
    %v1774 = vsel %vm1757, %v1715, 0
    %v1777 = vsel %vm1757, %v1716, 0
    %v1780 = vsel %vm1757, %v1717, 0
    %v1783 = vsel %vm1757, %v1718, 0
    %v1786 = vsel %vm1757, %v1719, 0
    %v1789 = vsel %vm1757, %v1720, 0
    %v1792 = vsel %vm1757, %v1721, 0
    %v1795 = vsel %vm1757, %v1722, 0
    %v1798 = vsel %vm1757, %v1723, 0
    %v1801 = vsel %vm1757, %v1724, 0
    %v1804 = vsel %vm1757, %v1725, 0
    %1806 = vmatprep.subr.bf16.mxu0 0
    %1807 = vmatpush1.bf16.msra.mxu0 0
    %1808 = vmatprep.subr.bf16.mxu0 0
    %1809 = vmatpush1.bf16.msra.mxu0 0
    %1810 = vmatprep.subr.bf16.mxu0 0
    %1811 = vmatpush1.bf16.msra.mxu0 0
    %1812 = vmatprep.subr.bf16.mxu0 0
    %1813 = vmatpush1.bf16.msra.mxu0 0
    %1814 = vmatprep.subr.bf16.mxu0 0
    %1815 = vmatpush1.bf16.msra.mxu0 0
    %1816 = vmatprep.subr.bf16.mxu0 0
    %1817 = vmatpush1.bf16.msra.mxu0 %v1753
    %1818 = vmatprep.subr.bf16.mxu0 0
    %1819 = vmatpush1.bf16.msra.mxu0 %v1752
    %1820 = vmatprep.subr.bf16.mxu0 0
    %1821 = vmatpush1.bf16.msra.mxu0 %v1751
    %1822 = vmatprep.subr.bf16.mxu0 0
    %1823 = vmatpush2.bf16.msra.mxu0 0
    %1824 = vmatprep.subr.bf16.mxu0 0
    %1825 = vmatpush2.bf16.msra.mxu0 0
    %1826 = vmatprep.subr.bf16.mxu0 0
    %1827 = vmatpush2.bf16.msra.mxu0 0
    %1828 = vmatprep.subr.bf16.mxu0 0
    %1829 = vmatpush2.bf16.msra.mxu0 0
    %1830 = vmatprep.subr.bf16.mxu0 0
    %1831 = vmatpush2.bf16.msra.mxu0 0
    %1832 = vmatprep.subr.bf16.mxu0 0
    %1833 = vmatpush2.bf16.msra.mxu0 0
    %1834 = vmatprep.subr.bf16.mxu0 0
    %1835 = vmatpush2.bf16.msra.mxu0 0
    %1836 = vmatprep.subr.bf16.mxu0 0
    %1837 = vmatpush2.bf16.msra.mxu0 0
    %1838 = vmatprep.mubr.bf16.mxu0 0
    %1839 = vmatmul.mubr.bf16.gmra.mxu0 %v1759
    %v1840 = vpop.f32.mrf.mxu0
    %v1841 = vadd.f32 %v1737, %v1840
    %v1842 = vpop.f32.mrf.mxu0
    %v1843 = vpop.f32.mrf.mxu0
    %v1844 = vadd.f32 %v1737, %v1843
    %v1845 = vpop.f32.mrf.mxu0
    %1846 = vmatprep.mubr.bf16.mxu0 0
    %1847 = vmatmul.mubr.bf16.gmra.mxu0 %v1762
    %v1848 = vpop.f32.mrf.mxu0
    %v1849 = vadd.f32 %v1737, %v1848
    %v1850 = vpop.f32.mrf.mxu0
    %v1851 = vpop.f32.mrf.mxu0
    %v1852 = vadd.f32 %v1737, %v1851
    %v1853 = vpop.f32.mrf.mxu0
    %1854 = vmatprep.mubr.bf16.mxu0 0
    %1855 = vmatmul.mubr.bf16.gmra.mxu0 %v1765
    %v1856 = vpop.f32.mrf.mxu0
    %v1857 = vadd.f32 %v1737, %v1856
    %v1858 = vpop.f32.mrf.mxu0
    %v1859 = vpop.f32.mrf.mxu0
    %v1860 = vadd.f32 %v1737, %v1859
    %v1861 = vpop.f32.mrf.mxu0
    %1862 = vmatprep.mubr.bf16.mxu0 0
    %1863 = vmatmul.mubr.bf16.gmra.mxu0 %v1768
    %v1864 = vpop.f32.mrf.mxu0
    %v1865 = vadd.f32 %v1737, %v1864
    %v1866 = vpop.f32.mrf.mxu0
    %v1867 = vpop.f32.mrf.mxu0
    %v1868 = vadd.f32 %v1737, %v1867
    %v1869 = vpop.f32.mrf.mxu0
    %1870 = vmatprep.mubr.bf16.mxu0 0
    %1871 = vmatmul.mubr.bf16.gmra.mxu0 %v1771
    %v1872 = vpop.f32.mrf.mxu0
    %v1873 = vadd.f32 %v1737, %v1872
    %v1874 = vpop.f32.mrf.mxu0
    %v1875 = vpop.f32.mrf.mxu0
    %v1876 = vadd.f32 %v1737, %v1875
    %v1877 = vpop.f32.mrf.mxu0
    %1878 = vmatprep.mubr.bf16.mxu0 0
    %1879 = vmatmul.mubr.bf16.gmra.mxu0 %v1774
    %v1880 = vpop.f32.mrf.mxu0
    %v1881 = vadd.f32 %v1737, %v1880
    %v1882 = vpop.f32.mrf.mxu0
    %v1883 = vpop.f32.mrf.mxu0
    %v1884 = vadd.f32 %v1737, %v1883
    %v1885 = vpop.f32.mrf.mxu0
    %1886 = vmatprep.mubr.bf16.mxu0 0
    %1887 = vmatmul.mubr.bf16.gmra.mxu0 %v1777
    %v1888 = vpop.f32.mrf.mxu0
    %v1889 = vadd.f32 %v1737, %v1888
    %v1890 = vpop.f32.mrf.mxu0
    %v1891 = vpop.f32.mrf.mxu0
    %v1892 = vadd.f32 %v1737, %v1891
    %v1893 = vpop.f32.mrf.mxu0
    %1894 = vmatprep.mubr.bf16.mxu0 0
    %1895 = vmatmul.mubr.bf16.gmra.mxu0 %v1780
    %v1896 = vpop.f32.mrf.mxu0
    %v1897 = vadd.f32 %v1737, %v1896
    %v1898 = vpop.f32.mrf.mxu0
    %v1899 = vpop.f32.mrf.mxu0
    %v1900 = vadd.f32 %v1737, %v1899
    %v1901 = vpop.f32.mrf.mxu0
    %1902 = vmatprep.mubr.bf16.mxu0 0
    %1903 = vmatmul.mubr.bf16.gmra.mxu0 %v1783
    %v1904 = vpop.f32.mrf.mxu0
    %v1905 = vadd.f32 %v1737, %v1904
    %v1906 = vpop.f32.mrf.mxu0
    %v1907 = vpop.f32.mrf.mxu0
    %v1908 = vadd.f32 %v1737, %v1907
    %v1909 = vpop.f32.mrf.mxu0
    %1910 = vmatprep.mubr.bf16.mxu0 0
    %1911 = vmatmul.mubr.bf16.gmra.mxu0 %v1786
    %v1912 = vpop.f32.mrf.mxu0
    %v1913 = vadd.f32 %v1737, %v1912
    %v1914 = vpop.f32.mrf.mxu0
    %v1915 = vpop.f32.mrf.mxu0
    %v1916 = vadd.f32 %v1737, %v1915
    %v1917 = vpop.f32.mrf.mxu0
    %1918 = vmatprep.mubr.bf16.mxu0 0
    %1919 = vmatmul.mubr.bf16.gmra.mxu0 %v1789
    %v1920 = vpop.f32.mrf.mxu0
    %v1921 = vadd.f32 %v1737, %v1920
    %v1922 = vpop.f32.mrf.mxu0
    %v1923 = vpop.f32.mrf.mxu0
    %v1924 = vadd.f32 %v1737, %v1923
    %v1925 = vpop.f32.mrf.mxu0
    %1926 = vmatprep.mubr.bf16.mxu0 0
    %1927 = vmatmul.mubr.bf16.gmra.mxu0 %v1792
    %v1928 = vpop.f32.mrf.mxu0
    %v1929 = vadd.f32 %v1737, %v1928
    %v1930 = vpop.f32.mrf.mxu0
    %v1931 = vpop.f32.mrf.mxu0
    %v1932 = vadd.f32 %v1737, %v1931
    %v1933 = vpop.f32.mrf.mxu0
    %1934 = vmatprep.mubr.bf16.mxu0 0
    %1935 = vmatmul.mubr.bf16.gmra.mxu0 %v1795
    %v1936 = vpop.f32.mrf.mxu0
    %v1937 = vadd.f32 %v1737, %v1936
    %v1938 = vpop.f32.mrf.mxu0
    %v1939 = vpop.f32.mrf.mxu0
    %v1940 = vadd.f32 %v1737, %v1939
    %v1941 = vpop.f32.mrf.mxu0
    %1942 = vmatprep.mubr.bf16.mxu0 0
    %1943 = vmatmul.mubr.bf16.gmra.mxu0 %v1798
    %v1944 = vpop.f32.mrf.mxu0
    %v1945 = vadd.f32 %v1737, %v1944
    %v1946 = vpop.f32.mrf.mxu0
    %v1947 = vpop.f32.mrf.mxu0
    %v1948 = vadd.f32 %v1737, %v1947
    %v1949 = vpop.f32.mrf.mxu0
    %1950 = vmatprep.mubr.bf16.mxu0 0
    %1951 = vmatmul.mubr.bf16.gmra.mxu0 %v1801
    %v1952 = vpop.f32.mrf.mxu0
    %v1953 = vadd.f32 %v1737, %v1952
    %v1954 = vpop.f32.mrf.mxu0
    %v1955 = vpop.f32.mrf.mxu0
    %v1956 = vadd.f32 %v1737, %v1955
    %v1957 = vpop.f32.mrf.mxu0
    %1958 = vmatprep.mubr.bf16.mxu0 0
    %1959 = vmatmul.mubr.bf16.gmra.mxu0 %v1804
    %v1960 = vpop.f32.mrf.mxu0
    %v1961 = vadd.f32 %v1737, %v1960
    %v1962 = vpop.f32.mrf.mxu0
    %v1963 = vpop.f32.mrf.mxu0
    %v1964 = vadd.f32 %v1737, %v1963
    %v1965 = vpop.f32.mrf.mxu0
    %1966 = vdwg.mxu0
    %v1967 = vmax.f32 %v1841, 0.0
    %v1968 = vmax.f32 %v1844, 0.0
    %v1969 = vmax.f32 %v1849, 0.0
    %v1970 = vmax.f32 %v1852, 0.0
    %v1971 = vmax.f32 %v1857, 0.0
    %v1972 = vmax.f32 %v1860, 0.0
    %v1973 = vmax.f32 %v1865, 0.0
    %v1974 = vmax.f32 %v1868, 0.0
    %v1975 = vmax.f32 %v1873, 0.0
    %v1976 = vmax.f32 %v1876, 0.0
    %v1977 = vmax.f32 %v1881, 0.0
    %v1978 = vmax.f32 %v1884, 0.0
    %v1979 = vmax.f32 %v1889, 0.0
    %v1980 = vmax.f32 %v1892, 0.0
    %v1981 = vmax.f32 %v1897, 0.0
    %v1982 = vmax.f32 %v1900, 0.0
    %v1983 = vmax.f32 %v1905, 0.0
    %v1984 = vmax.f32 %v1908, 0.0
    %v1985 = vmax.f32 %v1913, 0.0
    %v1986 = vmax.f32 %v1916, 0.0
    %v1987 = vmax.f32 %v1921, 0.0
    %v1988 = vmax.f32 %v1924, 0.0
    %v1989 = vmax.f32 %v1929, 0.0
    %v1990 = vmax.f32 %v1932, 0.0
    %v1991 = vmax.f32 %v1937, 0.0
    %v1992 = vmax.f32 %v1940, 0.0
    %v1993 = vmax.f32 %v1945, 0.0
    %v1994 = vmax.f32 %v1948, 0.0
    %v1995 = vmax.f32 %v1953, 0.0
    %v1996 = vmax.f32 %v1956, 0.0
    %v1997 = vmax.f32 %v1961, 0.0
    %v1998 = vmax.f32 %v1964, 0.0
    %v1999 = vrot.slane %v1967, 7
    %v2000 = vrot.slane %v1983, 7
    %v2001 = vrot.slane %v1968, 7
    %v2002 = vrot.slane %v1984, 7
    %v2003 = vrot.slane %v1969, 7
    %v2004 = vrot.slane %v1985, 7
    %v2005 = vrot.slane %v1970, 7
    %v2006 = vrot.slane %v1986, 7
    %v2007 = vrot.slane %v1971, 7
    %v2008 = vrot.slane %v1987, 7
    %v2009 = vrot.slane %v1972, 7
    %v2010 = vrot.slane %v1988, 7
    %v2011 = vrot.slane %v1973, 7
    %v2012 = vrot.slane %v1989, 7
    %v2013 = vrot.slane %v1974, 7
    %v2014 = vrot.slane %v1990, 7
    %v2015 = vrot.slane %v1975, 7
    %v2016 = vrot.slane %v1991, 7
    %v2017 = vrot.slane %v1976, 7
    %v2018 = vrot.slane %v1992, 7
    %v2019 = vrot.slane %v1977, 7
    %v2020 = vrot.slane %v1993, 7
    %v2021 = vrot.slane %v1978, 7
    %v2022 = vrot.slane %v1994, 7
    %v2023 = vrot.slane %v1979, 7
    %v2024 = vrot.slane %v1995, 7
    %v2025 = vrot.slane %v1980, 7
    %v2026 = vrot.slane %v1996, 7
    %v2027 = vrot.slane %v1981, 7
    %v2028 = vrot.slane %v1997, 7
    %v2029 = vrot.slane %v1982, 7
    %v2030 = vrot.slane %v1998, 7
    %v2031 = vsel %vm290, %v2027, %v2029
    %v2032 = vsel %vm290, %v2028, %v2030
    %v2033 = vsel %vm290, %v2025, %v2027
    %v2034 = vsel %vm290, %v2026, %v2028
    %v2035 = vsel %vm290, %v2023, %v2025
    %v2036 = vsel %vm290, %v2024, %v2026
    %v2037 = vsel %vm290, %v2021, %v2023
    %v2038 = vsel %vm290, %v2022, %v2024
    %v2039 = vsel %vm290, %v2019, %v2021
    %v2040 = vsel %vm290, %v2020, %v2022
    %v2041 = vsel %vm290, %v2017, %v2019
    %v2042 = vsel %vm290, %v2018, %v2020
    %v2043 = vsel %vm290, %v2015, %v2017
    %v2044 = vsel %vm290, %v2016, %v2018
    %v2045 = vsel %vm290, %v2013, %v2015
    %v2046 = vsel %vm290, %v2014, %v2016
    %v2047 = vsel %vm290, %v2011, %v2013
    %v2048 = vsel %vm290, %v2012, %v2014
    %v2049 = vsel %vm290, %v2009, %v2011
    %v2050 = vsel %vm290, %v2010, %v2012
    %v2051 = vsel %vm290, %v2007, %v2009
    %v2052 = vsel %vm290, %v2008, %v2010
    %v2053 = vsel %vm290, %v2005, %v2007
    %v2054 = vsel %vm290, %v2006, %v2008
    %v2055 = vsel %vm290, %v2003, %v2005
    %v2056 = vsel %vm290, %v2004, %v2006
    %v2057 = vsel %vm290, %v2001, %v2003
    %v2058 = vsel %vm290, %v2002, %v2004
    %v2059 = vsel %vm290, %v1999, %v2001
    %v2060 = vsel %vm290, %v2000, %v2002
    %v2061 = vsel %vm290, %v2029, %v1999
    %v2062 = vsel %vm290, %v2030, %v2000
    %v2063 = vsel %vm242, 0.0, %v2061
    %v2064 = vsel %vm243, 0.0, %v2059
    %v2065 = vsel %vm244, 0.0, %v2057
    %v2066 = vsel %vm245, 0.0, %v2055
    %v2067 = vsel %vm246, 0.0, %v2053
    %v2068 = vsel %vm247, 0.0, %v2051
    %v2069 = vsel %vm248, 0.0, %v2049
    %v2070 = vsel %vm249, 0.0, %v2047
    %v2071 = vsel %vm250, 0.0, %v2045
    %v2072 = vsel %vm251, 0.0, %v2043
    %v2073 = vsel %vm252, 0.0, %v2041
    %v2074 = vsel %vm253, 0.0, %v2039
    %v2075 = vsel %vm254, 0.0, %v2037
    %v2076 = vsel %vm255, 0.0, %v2035
    %v2077 = vsel %vm256, 0.0, %v2033
    %v2078 = vsel %vm257, 0.0, %v2031
    %v2079 = vsel %vm242, 0.0, %v2062
    %v2080 = vsel %vm243, 0.0, %v2060
    %v2081 = vsel %vm244, 0.0, %v2058
    %v2082 = vsel %vm245, 0.0, %v2056
    %v2083 = vsel %vm246, 0.0, %v2054
    %v2084 = vsel %vm247, 0.0, %v2052
    %v2085 = vsel %vm248, 0.0, %v2050
    %v2086 = vsel %vm249, 0.0, %v2048
    %v2087 = vsel %vm250, 0.0, %v2046
    %v2088 = vsel %vm251, 0.0, %v2044
    %v2089 = vsel %vm252, 0.0, %v2042
    %v2090 = vsel %vm253, 0.0, %v2040
    %v2091 = vsel %vm254, 0.0, %v2038
    %v2092 = vsel %vm255, 0.0, %v2036
    %v2093 = vsel %vm256, 0.0, %v2034
    %v2094 = vsel %vm257, 0.0, %v2032
    %v2095 = vrot.slane %v1967, 1
    %v2096 = vrot.slane %v1983, 1
    %v2097 = vrot.slane %v1968, 1
    %v2098 = vrot.slane %v1984, 1
    %v2099 = vrot.slane %v1969, 1
    %v2100 = vrot.slane %v1985, 1
    %v2101 = vrot.slane %v1970, 1
    %v2102 = vrot.slane %v1986, 1
    %v2103 = vrot.slane %v1971, 1
    %v2104 = vrot.slane %v1987, 1
    %v2105 = vrot.slane %v1972, 1
    %v2106 = vrot.slane %v1988, 1
    %v2107 = vrot.slane %v1973, 1
    %v2108 = vrot.slane %v1989, 1
    %v2109 = vrot.slane %v1974, 1
    %v2110 = vrot.slane %v1990, 1
    %v2111 = vrot.slane %v1975, 1
    %v2112 = vrot.slane %v1991, 1
    %v2113 = vrot.slane %v1976, 1
    %v2114 = vrot.slane %v1992, 1
    %v2115 = vrot.slane %v1977, 1
    %v2116 = vrot.slane %v1993, 1
    %v2117 = vrot.slane %v1978, 1
    %v2118 = vrot.slane %v1994, 1
    %v2119 = vrot.slane %v1979, 1
    %v2120 = vrot.slane %v1995, 1
    %v2121 = vrot.slane %v1980, 1
    %v2122 = vrot.slane %v1996, 1
    %v2123 = vrot.slane %v1981, 1
    %v2124 = vrot.slane %v1997, 1
    %v2125 = vrot.slane %v1982, 1
    %v2126 = vrot.slane %v1998, 1
    %v2127 = vsel %vm403, %v2123, %v2125
    %v2128 = vsel %vm403, %v2124, %v2126
    %v2129 = vsel %vm403, %v2121, %v2123
    %v2130 = vsel %vm403, %v2122, %v2124
    %v2131 = vsel %vm403, %v2119, %v2121
    %v2132 = vsel %vm403, %v2120, %v2122
    %v2133 = vsel %vm403, %v2117, %v2119
    %v2134 = vsel %vm403, %v2118, %v2120
    %v2135 = vsel %vm403, %v2115, %v2117
    %v2136 = vsel %vm403, %v2116, %v2118
    %v2137 = vsel %vm403, %v2113, %v2115
    %v2138 = vsel %vm403, %v2114, %v2116
    %v2139 = vsel %vm403, %v2111, %v2113
    %v2140 = vsel %vm403, %v2112, %v2114
    %v2141 = vsel %vm403, %v2109, %v2111
    %v2142 = vsel %vm403, %v2110, %v2112
    %v2143 = vsel %vm403, %v2107, %v2109
    %v2144 = vsel %vm403, %v2108, %v2110
    %v2145 = vsel %vm403, %v2105, %v2107
    %v2146 = vsel %vm403, %v2106, %v2108
    %v2147 = vsel %vm403, %v2103, %v2105
    %v2148 = vsel %vm403, %v2104, %v2106
    %v2149 = vsel %vm403, %v2101, %v2103
    %v2150 = vsel %vm403, %v2102, %v2104
    %v2151 = vsel %vm403, %v2099, %v2101
    %v2152 = vsel %vm403, %v2100, %v2102
    %v2153 = vsel %vm403, %v2097, %v2099
    %v2154 = vsel %vm403, %v2098, %v2100
    %v2155 = vsel %vm403, %v2095, %v2097
    %v2156 = vsel %vm403, %v2096, %v2098
    %v2157 = vsel %vm403, %v2125, %v2095
    %v2158 = vsel %vm403, %v2126, %v2096
    %v2159 = vsel %vm355, 0.0, %v2155
    %v2160 = vsel %vm356, 0.0, %v2153
    %v2161 = vsel %vm357, 0.0, %v2151
    %v2162 = vsel %vm358, 0.0, %v2149
    %v2163 = vsel %vm359, 0.0, %v2147
    %v2164 = vsel %vm360, 0.0, %v2145
    %v2165 = vsel %vm361, 0.0, %v2143
    %v2166 = vsel %vm362, 0.0, %v2141
    %v2167 = vsel %vm363, 0.0, %v2139
    %v2168 = vsel %vm364, 0.0, %v2137
    %v2169 = vsel %vm365, 0.0, %v2135
    %v2170 = vsel %vm366, 0.0, %v2133
    %v2171 = vsel %vm367, 0.0, %v2131
    %v2172 = vsel %vm368, 0.0, %v2129
    %v2173 = vsel %vm369, 0.0, %v2127
    %v2174 = vsel %vm370, 0.0, %v2157
    %v2175 = vsel %vm355, 0.0, %v2156
    %v2176 = vsel %vm356, 0.0, %v2154
    %v2177 = vsel %vm357, 0.0, %v2152
    %v2178 = vsel %vm358, 0.0, %v2150
    %v2179 = vsel %vm359, 0.0, %v2148
    %v2180 = vsel %vm360, 0.0, %v2146
    %v2181 = vsel %vm361, 0.0, %v2144
    %v2182 = vsel %vm362, 0.0, %v2142
    %v2183 = vsel %vm363, 0.0, %v2140
    %v2184 = vsel %vm364, 0.0, %v2138
    %v2185 = vsel %vm365, 0.0, %v2136
    %v2186 = vsel %vm366, 0.0, %v2134
    %v2187 = vsel %vm367, 0.0, %v2132
    %v2188 = vsel %vm368, 0.0, %v2130
    %v2189 = vsel %vm369, 0.0, %v2128
    %v2190 = vsel %vm370, 0.0, %v2158
    %2223 = vrot.lane.b32.xlu0 %v1967, 32
    %v2224 = vpop.permute.xlu0 %2223
    %2225 = vrot.lane.b32.xlu0 %v1968, 32
    %v2226 = vpop.permute.xlu0 %2225
    %2227 = vrot.lane.b32.xlu0 %v1969, 32
    %v2228 = vpop.permute.xlu0 %2227
    %2229 = vrot.lane.b32.xlu0 %v1970, 32
    %v2230 = vpop.permute.xlu0 %2229
    %2231 = vrot.lane.b32.xlu0 %v1971, 32
    %v2232 = vpop.permute.xlu0 %2231
    %2233 = vrot.lane.b32.xlu0 %v1972, 32
    %v2234 = vpop.permute.xlu0 %2233
    %2235 = vrot.lane.b32.xlu0 %v1973, 32
    %v2236 = vpop.permute.xlu0 %2235
    %2237 = vrot.lane.b32.xlu0 %v1974, 32
    %v2238 = vpop.permute.xlu0 %2237
    %2239 = vrot.lane.b32.xlu0 %v1975, 32
    %v2240 = vpop.permute.xlu0 %2239
    %2241 = vrot.lane.b32.xlu0 %v1976, 32
    %v2242 = vpop.permute.xlu0 %2241
    %2243 = vrot.lane.b32.xlu0 %v1977, 32
    %v2244 = vpop.permute.xlu0 %2243
    %2245 = vrot.lane.b32.xlu0 %v1978, 32
    %v2246 = vpop.permute.xlu0 %2245
    %2247 = vrot.lane.b32.xlu0 %v1979, 32
    %v2248 = vpop.permute.xlu0 %2247
    %2249 = vrot.lane.b32.xlu0 %v1980, 32
    %v2250 = vpop.permute.xlu0 %2249
    %2251 = vrot.lane.b32.xlu0 %v1981, 32
    %v2252 = vpop.permute.xlu0 %2251
    %2253 = vrot.lane.b32.xlu0 %v1982, 32
    %v2254 = vpop.permute.xlu0 %2253
    %2255 = vrot.lane.b32.xlu0 %v1983, 32
    %v2256 = vpop.permute.xlu0 %2255
    %2257 = vrot.lane.b32.xlu0 %v1984, 32
    %v2258 = vpop.permute.xlu0 %2257
    %2259 = vrot.lane.b32.xlu0 %v1985, 32
    %v2260 = vpop.permute.xlu0 %2259
    %2261 = vrot.lane.b32.xlu0 %v1986, 32
    %v2262 = vpop.permute.xlu0 %2261
    %2263 = vrot.lane.b32.xlu0 %v1987, 32
    %v2264 = vpop.permute.xlu0 %2263
    %2265 = vrot.lane.b32.xlu0 %v1988, 32
    %v2266 = vpop.permute.xlu0 %2265
    %2267 = vrot.lane.b32.xlu0 %v1989, 32
    %v2268 = vpop.permute.xlu0 %2267
    %2269 = vrot.lane.b32.xlu0 %v1990, 32
    %v2270 = vpop.permute.xlu0 %2269
    %2271 = vrot.lane.b32.xlu0 %v1991, 32
    %v2272 = vpop.permute.xlu0 %2271
    %2273 = vrot.lane.b32.xlu0 %v1992, 32
    %v2274 = vpop.permute.xlu0 %2273
    %2275 = vrot.lane.b32.xlu0 %v1993, 32
    %v2276 = vpop.permute.xlu0 %2275
    %2277 = vrot.lane.b32.xlu0 %v1994, 32
    %v2278 = vpop.permute.xlu0 %2277
    %2279 = vrot.lane.b32.xlu0 %v1995, 32
    %v2280 = vpop.permute.xlu0 %2279
    %2281 = vrot.lane.b32.xlu0 %v1996, 32
    %v2282 = vpop.permute.xlu0 %2281
    %2283 = vrot.lane.b32.xlu0 %v1997, 32
    %v2284 = vpop.permute.xlu0 %2283
    %2285 = vrot.lane.b32.xlu0 %v1998, 32
    %v2286 = vpop.permute.xlu0 %2285
    %2351 = vrot.lane.b32.xlu0 %v2159, 64
    %v2352 = vpop.permute.xlu0 %2351
    %2353 = vrot.lane.b32.xlu0 %v2160, 64
    %v2354 = vpop.permute.xlu0 %2353
    %2355 = vrot.lane.b32.xlu0 %v2161, 64
    %v2356 = vpop.permute.xlu0 %2355
    %2357 = vrot.lane.b32.xlu0 %v2162, 64
    %v2358 = vpop.permute.xlu0 %2357
    %2359 = vrot.lane.b32.xlu0 %v2163, 64
    %v2360 = vpop.permute.xlu0 %2359
    %2361 = vrot.lane.b32.xlu0 %v2164, 64
    %v2362 = vpop.permute.xlu0 %2361
    %2363 = vrot.lane.b32.xlu0 %v2165, 64
    %v2364 = vpop.permute.xlu0 %2363
    %2365 = vrot.lane.b32.xlu0 %v2166, 64
    %v2366 = vpop.permute.xlu0 %2365
    %2367 = vrot.lane.b32.xlu0 %v2167, 64
    %v2368 = vpop.permute.xlu0 %2367
    %2369 = vrot.lane.b32.xlu0 %v2168, 64
    %v2370 = vpop.permute.xlu0 %2369
    %2371 = vrot.lane.b32.xlu0 %v2169, 64
    %v2372 = vpop.permute.xlu0 %2371
    %2373 = vrot.lane.b32.xlu0 %v2170, 64
    %v2374 = vpop.permute.xlu0 %2373
    %2375 = vrot.lane.b32.xlu0 %v2171, 64
    %v2376 = vpop.permute.xlu0 %2375
    %2377 = vrot.lane.b32.xlu0 %v2172, 64
    %v2378 = vpop.permute.xlu0 %2377
    %2379 = vrot.lane.b32.xlu0 %v2173, 64
    %v2380 = vpop.permute.xlu0 %2379
    %2381 = vrot.lane.b32.xlu0 %v2174, 64
    %v2382 = vpop.permute.xlu0 %2381
    %2383 = vrot.lane.b32.xlu0 %v2175, 64
    %v2384 = vpop.permute.xlu0 %2383
    %2385 = vrot.lane.b32.xlu0 %v2176, 64
    %v2386 = vpop.permute.xlu0 %2385
    %2387 = vrot.lane.b32.xlu0 %v2177, 64
    %v2388 = vpop.permute.xlu0 %2387
    %2389 = vrot.lane.b32.xlu0 %v2178, 64
    %v2390 = vpop.permute.xlu0 %2389
    %2391 = vrot.lane.b32.xlu0 %v2179, 64
    %v2392 = vpop.permute.xlu0 %2391
    %2393 = vrot.lane.b32.xlu0 %v2180, 64
    %v2394 = vpop.permute.xlu0 %2393
    %2395 = vrot.lane.b32.xlu0 %v2181, 64
    %v2396 = vpop.permute.xlu0 %2395
    %2397 = vrot.lane.b32.xlu0 %v2182, 64
    %v2398 = vpop.permute.xlu0 %2397
    %2399 = vrot.lane.b32.xlu0 %v2183, 64
    %v2400 = vpop.permute.xlu0 %2399
    %2401 = vrot.lane.b32.xlu0 %v2184, 64
    %v2402 = vpop.permute.xlu0 %2401
    %2403 = vrot.lane.b32.xlu0 %v2185, 64
    %v2404 = vpop.permute.xlu0 %2403
    %2405 = vrot.lane.b32.xlu0 %v2186, 64
    %v2406 = vpop.permute.xlu0 %2405
    %2407 = vrot.lane.b32.xlu0 %v2187, 64
    %v2408 = vpop.permute.xlu0 %2407
    %2409 = vrot.lane.b32.xlu0 %v2188, 64
    %v2410 = vpop.permute.xlu0 %2409
    %2411 = vrot.lane.b32.xlu0 %v2189, 64
    %v2412 = vpop.permute.xlu0 %2411
    %2413 = vrot.lane.b32.xlu0 %v2190, 64
    %v2414 = vpop.permute.xlu0 %2413
    %v2447 = vsel %vm1677, %v2063, %v2224
    %v2448 = vsel %vm1677, %v2064, %v2226
    %v2449 = vsel %vm1677, %v2065, %v2228
    %v2450 = vsel %vm1677, %v2066, %v2230
    %v2451 = vsel %vm1677, %v2067, %v2232
    %v2452 = vsel %vm1677, %v2068, %v2234
    %v2453 = vsel %vm1677, %v2069, %v2236
    %v2454 = vsel %vm1677, %v2070, %v2238
    %v2455 = vsel %vm1677, %v2071, %v2240
    %v2456 = vsel %vm1677, %v2072, %v2242
    %v2457 = vsel %vm1677, %v2073, %v2244
    %v2458 = vsel %vm1677, %v2074, %v2246
    %v2459 = vsel %vm1677, %v2075, %v2248
    %v2460 = vsel %vm1677, %v2076, %v2250
    %v2461 = vsel %vm1677, %v2077, %v2252
    %v2462 = vsel %vm1677, %v2078, %v2254
    %v2463 = vsel %vm1677, %v2079, %v2256
    %v2464 = vsel %vm1677, %v2080, %v2258
    %v2465 = vsel %vm1677, %v2081, %v2260
    %v2466 = vsel %vm1677, %v2082, %v2262
    %v2467 = vsel %vm1677, %v2083, %v2264
    %v2468 = vsel %vm1677, %v2084, %v2266
    %v2469 = vsel %vm1677, %v2085, %v2268
    %v2470 = vsel %vm1677, %v2086, %v2270
    %v2471 = vsel %vm1677, %v2087, %v2272
    %v2472 = vsel %vm1677, %v2088, %v2274
    %v2473 = vsel %vm1677, %v2089, %v2276
    %v2474 = vsel %vm1677, %v2090, %v2278
    %v2475 = vsel %vm1677, %v2091, %v2280
    %v2476 = vsel %vm1677, %v2092, %v2282
    %v2477 = vsel %vm1677, %v2093, %v2284
    %v2478 = vsel %vm1677, %v2094, %v2286
    %vm2479 = vcmask 523264
    %v2480 = vsel %vm2479, %v2447, %v2352
    %v2481 = vsel %vm2479, %v2448, %v2354
    %v2482 = vsel %vm2479, %v2449, %v2356
    %v2483 = vsel %vm2479, %v2450, %v2358
    %v2484 = vsel %vm2479, %v2451, %v2360
    %v2485 = vsel %vm2479, %v2452, %v2362
    %v2486 = vsel %vm2479, %v2453, %v2364
    %v2487 = vsel %vm2479, %v2454, %v2366
    %v2488 = vsel %vm2479, %v2455, %v2368
    %v2489 = vsel %vm2479, %v2456, %v2370
    %v2490 = vsel %vm2479, %v2457, %v2372
    %v2491 = vsel %vm2479, %v2458, %v2374
    %v2492 = vsel %vm2479, %v2459, %v2376
    %v2493 = vsel %vm2479, %v2460, %v2378
    %v2494 = vsel %vm2479, %v2461, %v2380
    %v2495 = vsel %vm2479, %v2462, %v2382
    %v2496 = vsel %vm2479, %v2463, %v2384
    %v2497 = vsel %vm2479, %v2464, %v2386
    %v2498 = vsel %vm2479, %v2465, %v2388
    %v2499 = vsel %vm2479, %v2466, %v2390
    %v2500 = vsel %vm2479, %v2467, %v2392
    %v2501 = vsel %vm2479, %v2468, %v2394
    %v2502 = vsel %vm2479, %v2469, %v2396
    %v2503 = vsel %vm2479, %v2470, %v2398
    %v2504 = vsel %vm2479, %v2471, %v2400
    %v2505 = vsel %vm2479, %v2472, %v2402
    %v2506 = vsel %vm2479, %v2473, %v2404
    %v2507 = vsel %vm2479, %v2474, %v2406
    %v2508 = vsel %vm2479, %v2475, %v2408
    %v2509 = vsel %vm2479, %v2476, %v2410
    %v2510 = vsel %vm2479, %v2477, %v2412
    %v2511 = vsel %vm2479, %v2478, %v2414
    %v2512 = vpack.c.bf16 %v2481, %v2480
    %v2513 = vpack.c.bf16 %v2483, %v2482
    %v2514 = vpack.c.bf16 %v2485, %v2484
    %v2515 = vpack.c.bf16 %v2487, %v2486
    %v2516 = vpack.c.bf16 %v2489, %v2488
    %v2517 = vpack.c.bf16 %v2491, %v2490
    %v2518 = vpack.c.bf16 %v2493, %v2492
    %v2519 = vpack.c.bf16 %v2495, %v2494
    %v2520 = vpack.c.bf16 %v2497, %v2496
    %v2521 = vpack.c.bf16 %v2499, %v2498
    %v2522 = vpack.c.bf16 %v2501, %v2500
    %v2523 = vpack.c.bf16 %v2503, %v2502
    %v2524 = vpack.c.bf16 %v2505, %v2504
    %v2525 = vpack.c.bf16 %v2507, %v2506
    %v2526 = vpack.c.bf16 %v2509, %v2508
    %v2527 = vpack.c.bf16 %v2511, %v2510
    %v2528 = vld [vmem:[%s7] sm:$0xf]
    %v2529 = vld [vmem:[%s7 + $0x4] sm:$0xf]
    %v2530 = vld [vmem:[%s7 + $0x8] sm:$0xf]
    %v2531 = vld [vmem:[%s7 + $0xc] sm:$0xf]
    %v2532 = vld [vmem:[%s7 + $0x10] sm:$0xf]
    %v2533 = vld [vmem:[%s7 + $0x14] sm:$0xf]
    %v2534 = vld [vmem:[%s7 + $0x18] sm:$0xf]
    %v2535 = vld [vmem:[%s7 + $0x1c] sm:$0xf]
    %v2536 = vld [vmem:[%s7 + $0x20] sm:$0xf]
    %v2537 = vld [vmem:[%s7 + $0x24] sm:$0xf]
    %v2538 = vld [vmem:[%s7 + $0x28] sm:$0xf]
    %v2539 = vld [vmem:[%s7 + $0x2c] sm:$0xf]
    %v2540 = vld [vmem:[%s8] sm:$0x1]
    %v2542 = vlaneseq
    %v2543 = vshrl.u32 %v2542, 7
    %v2544 = vsub.s32 0, %v2543
    %v2545 = vrot.slane %v2540, %v2544
    %v2559 = vunpack.c.l.b16 %v2528
    %v2560 = vunpack.c.l.b16 %v2529
    %v2561 = vunpack.c.l.b16 %v2530
    %v2562 = vunpack.c.l.b16 %v2531
    %v2563 = vunpack.c.l.b16 %v2532
    %v2564 = vunpack.c.l.b16 %v2533
    %v2565 = vunpack.c.l.b16 %v2534
    %v2566 = vunpack.c.l.b16 %v2535
    %v2567 = vunpack.c.l.b16 %v2536
    %v2568 = vunpack.c.l.b16 %v2537
    %v2569 = vunpack.c.l.b16 %v2538
    %v2570 = vunpack.c.l.b16 %v2539
    %v2571 = vpack.c.b16 %v2560, %v2559
    %v2572 = vpack.c.b16 %v2562, %v2561
    %v2573 = vpack.c.b16 %v2564, %v2563
    %v2574 = vpack.c.b16 %v2566, %v2565
    %v2575 = vpack.c.b16 %v2568, %v2567
    %v2576 = vpack.c.b16 %v2570, %v2569
    %vm2583 = vcmask 785408
    %v2585 = vsel %vm2583, %v2512, 0
    %v2588 = vsel %vm2583, %v2513, 0
    %v2591 = vsel %vm2583, %v2514, 0
    %v2594 = vsel %vm2583, %v2515, 0
    %v2597 = vsel %vm2583, %v2516, 0
    %v2600 = vsel %vm2583, %v2517, 0
    %v2603 = vsel %vm2583, %v2518, 0
    %v2606 = vsel %vm2583, %v2519, 0
    %v2609 = vsel %vm2583, %v2520, 0
    %v2612 = vsel %vm2583, %v2521, 0
    %v2615 = vsel %vm2583, %v2522, 0
    %v2618 = vsel %vm2583, %v2523, 0
    %v2621 = vsel %vm2583, %v2524, 0
    %v2624 = vsel %vm2583, %v2525, 0
    %v2627 = vsel %vm2583, %v2526, 0
    %v2630 = vsel %vm2583, %v2527, 0
    %2632 = vmatprep.subr.bf16.mxu0 0
    %2633 = vmatpush1.bf16.msra.mxu0 0
    %2634 = vmatprep.subr.bf16.mxu0 0
    %2635 = vmatpush1.bf16.msra.mxu0 0
    %2636 = vmatprep.subr.bf16.mxu0 0
    %2637 = vmatpush1.bf16.msra.mxu0 %v2576
    %2638 = vmatprep.subr.bf16.mxu0 0
    %2639 = vmatpush1.bf16.msra.mxu0 %v2575
    %2640 = vmatprep.subr.bf16.mxu0 0
    %2641 = vmatpush1.bf16.msra.mxu0 %v2574
    %2642 = vmatprep.subr.bf16.mxu0 0
    %2643 = vmatpush1.bf16.msra.mxu0 %v2573
    %2644 = vmatprep.subr.bf16.mxu0 0
    %2645 = vmatpush1.bf16.msra.mxu0 %v2572
    %2646 = vmatprep.subr.bf16.mxu0 0
    %2647 = vmatpush1.bf16.msra.mxu0 %v2571
    %2648 = vmatprep.subr.bf16.mxu0 0
    %2649 = vmatpush2.bf16.msra.mxu0 0
    %2650 = vmatprep.subr.bf16.mxu0 0
    %2651 = vmatpush2.bf16.msra.mxu0 0
    %2652 = vmatprep.subr.bf16.mxu0 0
    %2653 = vmatpush2.bf16.msra.mxu0 0
    %2654 = vmatprep.subr.bf16.mxu0 0
    %2655 = vmatpush2.bf16.msra.mxu0 0
    %2656 = vmatprep.subr.bf16.mxu0 0
    %2657 = vmatpush2.bf16.msra.mxu0 0
    %2658 = vmatprep.subr.bf16.mxu0 0
    %2659 = vmatpush2.bf16.msra.mxu0 0
    %2660 = vmatprep.subr.bf16.mxu0 0
    %2661 = vmatpush2.bf16.msra.mxu0 0
    %2662 = vmatprep.subr.bf16.mxu0 0
    %2663 = vmatpush2.bf16.msra.mxu0 0
    %2664 = vmatprep.mubr.bf16.mxu0 0
    %2665 = vmatmul.mubr.bf16.gmra.mxu0 %v2585
    %v2666 = vpop.f32.mrf.mxu0
    %v2667 = vadd.f32 %v2545, %v2666
    %v2668 = vpop.f32.mrf.mxu0
    %v2669 = vpop.f32.mrf.mxu0
    %v2670 = vadd.f32 %v2545, %v2669
    %v2671 = vpop.f32.mrf.mxu0
    %2672 = vmatprep.mubr.bf16.mxu0 0
    %2673 = vmatmul.mubr.bf16.gmra.mxu0 %v2588
    %v2674 = vpop.f32.mrf.mxu0
    %v2675 = vadd.f32 %v2545, %v2674
    %v2676 = vpop.f32.mrf.mxu0
    %v2677 = vpop.f32.mrf.mxu0
    %v2678 = vadd.f32 %v2545, %v2677
    %v2679 = vpop.f32.mrf.mxu0
    %2680 = vmatprep.mubr.bf16.mxu0 0
    %2681 = vmatmul.mubr.bf16.gmra.mxu0 %v2591
    %v2682 = vpop.f32.mrf.mxu0
    %v2683 = vadd.f32 %v2545, %v2682
    %v2684 = vpop.f32.mrf.mxu0
    %v2685 = vpop.f32.mrf.mxu0
    %v2686 = vadd.f32 %v2545, %v2685
    %v2687 = vpop.f32.mrf.mxu0
    %2688 = vmatprep.mubr.bf16.mxu0 0
    %2689 = vmatmul.mubr.bf16.gmra.mxu0 %v2594
    %v2690 = vpop.f32.mrf.mxu0
    %v2691 = vadd.f32 %v2545, %v2690
    %v2692 = vpop.f32.mrf.mxu0
    %v2693 = vpop.f32.mrf.mxu0
    %v2694 = vadd.f32 %v2545, %v2693
    %v2695 = vpop.f32.mrf.mxu0
    %2696 = vmatprep.mubr.bf16.mxu0 0
    %2697 = vmatmul.mubr.bf16.gmra.mxu0 %v2597
    %v2698 = vpop.f32.mrf.mxu0
    %v2699 = vadd.f32 %v2545, %v2698
    %v2700 = vpop.f32.mrf.mxu0
    %v2701 = vpop.f32.mrf.mxu0
    %v2702 = vadd.f32 %v2545, %v2701
    %v2703 = vpop.f32.mrf.mxu0
    %2704 = vmatprep.mubr.bf16.mxu0 0
    %2705 = vmatmul.mubr.bf16.gmra.mxu0 %v2600
    %v2706 = vpop.f32.mrf.mxu0
    %v2707 = vadd.f32 %v2545, %v2706
    %v2708 = vpop.f32.mrf.mxu0
    %v2709 = vpop.f32.mrf.mxu0
    %v2710 = vadd.f32 %v2545, %v2709
    %v2711 = vpop.f32.mrf.mxu0
    %2712 = vmatprep.mubr.bf16.mxu0 0
    %2713 = vmatmul.mubr.bf16.gmra.mxu0 %v2603
    %v2714 = vpop.f32.mrf.mxu0
    %v2715 = vadd.f32 %v2545, %v2714
    %v2716 = vpop.f32.mrf.mxu0
    %v2717 = vpop.f32.mrf.mxu0
    %v2718 = vadd.f32 %v2545, %v2717
    %v2719 = vpop.f32.mrf.mxu0
    %2720 = vmatprep.mubr.bf16.mxu0 0
    %2721 = vmatmul.mubr.bf16.gmra.mxu0 %v2606
    %v2722 = vpop.f32.mrf.mxu0
    %v2723 = vadd.f32 %v2545, %v2722
    %v2724 = vpop.f32.mrf.mxu0
    %v2725 = vpop.f32.mrf.mxu0
    %v2726 = vadd.f32 %v2545, %v2725
    %v2727 = vpop.f32.mrf.mxu0
    %2728 = vmatprep.mubr.bf16.mxu0 0
    %2729 = vmatmul.mubr.bf16.gmra.mxu0 %v2609
    %v2730 = vpop.f32.mrf.mxu0
    %v2731 = vadd.f32 %v2545, %v2730
    %v2732 = vpop.f32.mrf.mxu0
    %v2733 = vpop.f32.mrf.mxu0
    %v2734 = vadd.f32 %v2545, %v2733
    %v2735 = vpop.f32.mrf.mxu0
    %2736 = vmatprep.mubr.bf16.mxu0 0
    %2737 = vmatmul.mubr.bf16.gmra.mxu0 %v2612
    %v2738 = vpop.f32.mrf.mxu0
    %v2739 = vadd.f32 %v2545, %v2738
    %v2740 = vpop.f32.mrf.mxu0
    %v2741 = vpop.f32.mrf.mxu0
    %v2742 = vadd.f32 %v2545, %v2741
    %v2743 = vpop.f32.mrf.mxu0
    %2744 = vmatprep.mubr.bf16.mxu0 0
    %2745 = vmatmul.mubr.bf16.gmra.mxu0 %v2615
    %v2746 = vpop.f32.mrf.mxu0
    %v2747 = vadd.f32 %v2545, %v2746
    %v2748 = vpop.f32.mrf.mxu0
    %v2749 = vpop.f32.mrf.mxu0
    %v2750 = vadd.f32 %v2545, %v2749
    %v2751 = vpop.f32.mrf.mxu0
    %2752 = vmatprep.mubr.bf16.mxu0 0
    %2753 = vmatmul.mubr.bf16.gmra.mxu0 %v2618
    %v2754 = vpop.f32.mrf.mxu0
    %v2755 = vadd.f32 %v2545, %v2754
    %v2756 = vpop.f32.mrf.mxu0
    %v2757 = vpop.f32.mrf.mxu0
    %v2758 = vadd.f32 %v2545, %v2757
    %v2759 = vpop.f32.mrf.mxu0
    %2760 = vmatprep.mubr.bf16.mxu0 0
    %2761 = vmatmul.mubr.bf16.gmra.mxu0 %v2621
    %v2762 = vpop.f32.mrf.mxu0
    %v2763 = vadd.f32 %v2545, %v2762
    %v2764 = vpop.f32.mrf.mxu0
    %v2765 = vpop.f32.mrf.mxu0
    %v2766 = vadd.f32 %v2545, %v2765
    %v2767 = vpop.f32.mrf.mxu0
    %2768 = vmatprep.mubr.bf16.mxu0 0
    %2769 = vmatmul.mubr.bf16.gmra.mxu0 %v2624
    %v2770 = vpop.f32.mrf.mxu0
    %v2771 = vadd.f32 %v2545, %v2770
    %v2772 = vpop.f32.mrf.mxu0
    %v2773 = vpop.f32.mrf.mxu0
    %v2774 = vadd.f32 %v2545, %v2773
    %v2775 = vpop.f32.mrf.mxu0
    %2776 = vmatprep.mubr.bf16.mxu0 0
    %2777 = vmatmul.mubr.bf16.gmra.mxu0 %v2627
    %v2778 = vpop.f32.mrf.mxu0
    %v2779 = vadd.f32 %v2545, %v2778
    %v2780 = vpop.f32.mrf.mxu0
    %v2781 = vpop.f32.mrf.mxu0
    %v2782 = vadd.f32 %v2545, %v2781
    %v2783 = vpop.f32.mrf.mxu0
    %2784 = vmatprep.mubr.bf16.mxu0 0
    %2785 = vmatmul.mubr.bf16.gmra.mxu0 %v2630
    %v2786 = vpop.f32.mrf.mxu0
    %v2787 = vadd.f32 %v2545, %v2786
    %v2788 = vpop.f32.mrf.mxu0
    %v2789 = vpop.f32.mrf.mxu0
    %v2790 = vadd.f32 %v2545, %v2789
    %v2791 = vpop.f32.mrf.mxu0
    %2792 = vdwg.mxu0
    %v2793 = vmax.f32 %v2667, 0.0
    %v2794 = vmax.f32 %v2670, 0.0
    %v2795 = vmax.f32 %v2675, 0.0
    %v2796 = vmax.f32 %v2678, 0.0
    %v2797 = vmax.f32 %v2683, 0.0
    %v2798 = vmax.f32 %v2686, 0.0
    %v2799 = vmax.f32 %v2691, 0.0
    %v2800 = vmax.f32 %v2694, 0.0
    %v2801 = vmax.f32 %v2699, 0.0
    %v2802 = vmax.f32 %v2702, 0.0
    %v2803 = vmax.f32 %v2707, 0.0
    %v2804 = vmax.f32 %v2710, 0.0
    %v2805 = vmax.f32 %v2715, 0.0
    %v2806 = vmax.f32 %v2718, 0.0
    %v2807 = vmax.f32 %v2723, 0.0
    %v2808 = vmax.f32 %v2726, 0.0
    %v2809 = vmax.f32 %v2731, 0.0
    %v2810 = vmax.f32 %v2734, 0.0
    %v2811 = vmax.f32 %v2739, 0.0
    %v2812 = vmax.f32 %v2742, 0.0
    %v2813 = vmax.f32 %v2747, 0.0
    %v2814 = vmax.f32 %v2750, 0.0
    %v2815 = vmax.f32 %v2755, 0.0
    %v2816 = vmax.f32 %v2758, 0.0
    %v2817 = vmax.f32 %v2763, 0.0
    %v2818 = vmax.f32 %v2766, 0.0
    %v2819 = vmax.f32 %v2771, 0.0
    %v2820 = vmax.f32 %v2774, 0.0
    %v2821 = vmax.f32 %v2779, 0.0
    %v2822 = vmax.f32 %v2782, 0.0
    %v2823 = vmax.f32 %v2787, 0.0
    %v2824 = vmax.f32 %v2790, 0.0
    %v2825 = vrot.slane %v2793, 7
    %v2826 = vrot.slane %v2809, 7
    %v2827 = vrot.slane %v2794, 7
    %v2828 = vrot.slane %v2810, 7
    %v2829 = vrot.slane %v2795, 7
    %v2830 = vrot.slane %v2811, 7
    %v2831 = vrot.slane %v2796, 7
    %v2832 = vrot.slane %v2812, 7
    %v2833 = vrot.slane %v2797, 7
    %v2834 = vrot.slane %v2813, 7
    %v2835 = vrot.slane %v2798, 7
    %v2836 = vrot.slane %v2814, 7
    %v2837 = vrot.slane %v2799, 7
    %v2838 = vrot.slane %v2815, 7
    %v2839 = vrot.slane %v2800, 7
    %v2840 = vrot.slane %v2816, 7
    %v2841 = vrot.slane %v2801, 7
    %v2842 = vrot.slane %v2817, 7
    %v2843 = vrot.slane %v2802, 7
    %v2844 = vrot.slane %v2818, 7
    %v2845 = vrot.slane %v2803, 7
    %v2846 = vrot.slane %v2819, 7
    %v2847 = vrot.slane %v2804, 7
    %v2848 = vrot.slane %v2820, 7
    %v2849 = vrot.slane %v2805, 7
    %v2850 = vrot.slane %v2821, 7
    %v2851 = vrot.slane %v2806, 7
    %v2852 = vrot.slane %v2822, 7
    %v2853 = vrot.slane %v2807, 7
    %v2854 = vrot.slane %v2823, 7
    %v2855 = vrot.slane %v2808, 7
    %v2856 = vrot.slane %v2824, 7
    %v2857 = vsel %vm290, %v2853, %v2855
    %v2858 = vsel %vm290, %v2854, %v2856
    %v2859 = vsel %vm290, %v2851, %v2853
    %v2860 = vsel %vm290, %v2852, %v2854
    %v2861 = vsel %vm290, %v2849, %v2851
    %v2862 = vsel %vm290, %v2850, %v2852
    %v2863 = vsel %vm290, %v2847, %v2849
    %v2864 = vsel %vm290, %v2848, %v2850
    %v2865 = vsel %vm290, %v2845, %v2847
    %v2866 = vsel %vm290, %v2846, %v2848
    %v2867 = vsel %vm290, %v2843, %v2845
    %v2868 = vsel %vm290, %v2844, %v2846
    %v2869 = vsel %vm290, %v2841, %v2843
    %v2870 = vsel %vm290, %v2842, %v2844
    %v2871 = vsel %vm290, %v2839, %v2841
    %v2872 = vsel %vm290, %v2840, %v2842
    %v2873 = vsel %vm290, %v2837, %v2839
    %v2874 = vsel %vm290, %v2838, %v2840
    %v2875 = vsel %vm290, %v2835, %v2837
    %v2876 = vsel %vm290, %v2836, %v2838
    %v2877 = vsel %vm290, %v2833, %v2835
    %v2878 = vsel %vm290, %v2834, %v2836
    %v2879 = vsel %vm290, %v2831, %v2833
    %v2880 = vsel %vm290, %v2832, %v2834
    %v2881 = vsel %vm290, %v2829, %v2831
    %v2882 = vsel %vm290, %v2830, %v2832
    %v2883 = vsel %vm290, %v2827, %v2829
    %v2884 = vsel %vm290, %v2828, %v2830
    %v2885 = vsel %vm290, %v2825, %v2827
    %v2886 = vsel %vm290, %v2826, %v2828
    %v2887 = vsel %vm290, %v2855, %v2825
    %v2888 = vsel %vm290, %v2856, %v2826
    %v2889 = vsel %vm242, 0.0, %v2887
    %v2890 = vsel %vm243, 0.0, %v2885
    %v2891 = vsel %vm244, 0.0, %v2883
    %v2892 = vsel %vm245, 0.0, %v2881
    %v2893 = vsel %vm246, 0.0, %v2879
    %v2894 = vsel %vm247, 0.0, %v2877
    %v2895 = vsel %vm248, 0.0, %v2875
    %v2896 = vsel %vm249, 0.0, %v2873
    %v2897 = vsel %vm250, 0.0, %v2871
    %v2898 = vsel %vm251, 0.0, %v2869
    %v2899 = vsel %vm252, 0.0, %v2867
    %v2900 = vsel %vm253, 0.0, %v2865
    %v2901 = vsel %vm254, 0.0, %v2863
    %v2902 = vsel %vm255, 0.0, %v2861
    %v2903 = vsel %vm256, 0.0, %v2859
    %v2904 = vsel %vm257, 0.0, %v2857
    %v2905 = vsel %vm242, 0.0, %v2888
    %v2906 = vsel %vm243, 0.0, %v2886
    %v2907 = vsel %vm244, 0.0, %v2884
    %v2908 = vsel %vm245, 0.0, %v2882
    %v2909 = vsel %vm246, 0.0, %v2880
    %v2910 = vsel %vm247, 0.0, %v2878
    %v2911 = vsel %vm248, 0.0, %v2876
    %v2912 = vsel %vm249, 0.0, %v2874
    %v2913 = vsel %vm250, 0.0, %v2872
    %v2914 = vsel %vm251, 0.0, %v2870
    %v2915 = vsel %vm252, 0.0, %v2868
    %v2916 = vsel %vm253, 0.0, %v2866
    %v2917 = vsel %vm254, 0.0, %v2864
    %v2918 = vsel %vm255, 0.0, %v2862
    %v2919 = vsel %vm256, 0.0, %v2860
    %v2920 = vsel %vm257, 0.0, %v2858
    %v2921 = vrot.slane %v2793, 1
    %v2922 = vrot.slane %v2809, 1
    %v2923 = vrot.slane %v2794, 1
    %v2924 = vrot.slane %v2810, 1
    %v2925 = vrot.slane %v2795, 1
    %v2926 = vrot.slane %v2811, 1
    %v2927 = vrot.slane %v2796, 1
    %v2928 = vrot.slane %v2812, 1
    %v2929 = vrot.slane %v2797, 1
    %v2930 = vrot.slane %v2813, 1
    %v2931 = vrot.slane %v2798, 1
    %v2932 = vrot.slane %v2814, 1
    %v2933 = vrot.slane %v2799, 1
    %v2934 = vrot.slane %v2815, 1
    %v2935 = vrot.slane %v2800, 1
    %v2936 = vrot.slane %v2816, 1
    %v2937 = vrot.slane %v2801, 1
    %v2938 = vrot.slane %v2817, 1
    %v2939 = vrot.slane %v2802, 1
    %v2940 = vrot.slane %v2818, 1
    %v2941 = vrot.slane %v2803, 1
    %v2942 = vrot.slane %v2819, 1
    %v2943 = vrot.slane %v2804, 1
    %v2944 = vrot.slane %v2820, 1
    %v2945 = vrot.slane %v2805, 1
    %v2946 = vrot.slane %v2821, 1
    %v2947 = vrot.slane %v2806, 1
    %v2948 = vrot.slane %v2822, 1
    %v2949 = vrot.slane %v2807, 1
    %v2950 = vrot.slane %v2823, 1
    %v2951 = vrot.slane %v2808, 1
    %v2952 = vrot.slane %v2824, 1
    %v2953 = vsel %vm403, %v2949, %v2951
    %v2954 = vsel %vm403, %v2950, %v2952
    %v2955 = vsel %vm403, %v2947, %v2949
    %v2956 = vsel %vm403, %v2948, %v2950
    %v2957 = vsel %vm403, %v2945, %v2947
    %v2958 = vsel %vm403, %v2946, %v2948
    %v2959 = vsel %vm403, %v2943, %v2945
    %v2960 = vsel %vm403, %v2944, %v2946
    %v2961 = vsel %vm403, %v2941, %v2943
    %v2962 = vsel %vm403, %v2942, %v2944
    %v2963 = vsel %vm403, %v2939, %v2941
    %v2964 = vsel %vm403, %v2940, %v2942
    %v2965 = vsel %vm403, %v2937, %v2939
    %v2966 = vsel %vm403, %v2938, %v2940
    %v2967 = vsel %vm403, %v2935, %v2937
    %v2968 = vsel %vm403, %v2936, %v2938
    %v2969 = vsel %vm403, %v2933, %v2935
    %v2970 = vsel %vm403, %v2934, %v2936
    %v2971 = vsel %vm403, %v2931, %v2933
    %v2972 = vsel %vm403, %v2932, %v2934
    %v2973 = vsel %vm403, %v2929, %v2931
    %v2974 = vsel %vm403, %v2930, %v2932
    %v2975 = vsel %vm403, %v2927, %v2929
    %v2976 = vsel %vm403, %v2928, %v2930
    %v2977 = vsel %vm403, %v2925, %v2927
    %v2978 = vsel %vm403, %v2926, %v2928
    %v2979 = vsel %vm403, %v2923, %v2925
    %v2980 = vsel %vm403, %v2924, %v2926
    %v2981 = vsel %vm403, %v2921, %v2923
    %v2982 = vsel %vm403, %v2922, %v2924
    %v2983 = vsel %vm403, %v2951, %v2921
    %v2984 = vsel %vm403, %v2952, %v2922
    %v2985 = vsel %vm355, 0.0, %v2981
    %v2986 = vsel %vm356, 0.0, %v2979
    %v2987 = vsel %vm357, 0.0, %v2977
    %v2988 = vsel %vm358, 0.0, %v2975
    %v2989 = vsel %vm359, 0.0, %v2973
    %v2990 = vsel %vm360, 0.0, %v2971
    %v2991 = vsel %vm361, 0.0, %v2969
    %v2992 = vsel %vm362, 0.0, %v2967
    %v2993 = vsel %vm363, 0.0, %v2965
    %v2994 = vsel %vm364, 0.0, %v2963
    %v2995 = vsel %vm365, 0.0, %v2961
    %v2996 = vsel %vm366, 0.0, %v2959
    %v2997 = vsel %vm367, 0.0, %v2957
    %v2998 = vsel %vm368, 0.0, %v2955
    %v2999 = vsel %vm369, 0.0, %v2953
    %v3000 = vsel %vm370, 0.0, %v2983
    %v3001 = vsel %vm355, 0.0, %v2982
    %v3002 = vsel %vm356, 0.0, %v2980
    %v3003 = vsel %vm357, 0.0, %v2978
    %v3004 = vsel %vm358, 0.0, %v2976
    %v3005 = vsel %vm359, 0.0, %v2974
    %v3006 = vsel %vm360, 0.0, %v2972
    %v3007 = vsel %vm361, 0.0, %v2970
    %v3008 = vsel %vm362, 0.0, %v2968
    %v3009 = vsel %vm363, 0.0, %v2966
    %v3010 = vsel %vm364, 0.0, %v2964
    %v3011 = vsel %vm365, 0.0, %v2962
    %v3012 = vsel %vm366, 0.0, %v2960
    %v3013 = vsel %vm367, 0.0, %v2958
    %v3014 = vsel %vm368, 0.0, %v2956
    %v3015 = vsel %vm369, 0.0, %v2954
    %v3016 = vsel %vm370, 0.0, %v2984
    %3049 = vrot.lane.b32.xlu0 %v2793, 64
    %v3050 = vpop.permute.xlu0 %3049
    %3051 = vrot.lane.b32.xlu0 %v2794, 64
    %v3052 = vpop.permute.xlu0 %3051
    %3053 = vrot.lane.b32.xlu0 %v2795, 64
    %v3054 = vpop.permute.xlu0 %3053
    %3055 = vrot.lane.b32.xlu0 %v2796, 64
    %v3056 = vpop.permute.xlu0 %3055
    %3057 = vrot.lane.b32.xlu0 %v2797, 64
    %v3058 = vpop.permute.xlu0 %3057
    %3059 = vrot.lane.b32.xlu0 %v2798, 64
    %v3060 = vpop.permute.xlu0 %3059
    %3061 = vrot.lane.b32.xlu0 %v2799, 64
    %v3062 = vpop.permute.xlu0 %3061
    %3063 = vrot.lane.b32.xlu0 %v2800, 64
    %v3064 = vpop.permute.xlu0 %3063
    %3065 = vrot.lane.b32.xlu0 %v2801, 64
    %v3066 = vpop.permute.xlu0 %3065
    %3067 = vrot.lane.b32.xlu0 %v2802, 64
    %v3068 = vpop.permute.xlu0 %3067
    %3069 = vrot.lane.b32.xlu0 %v2803, 64
    %v3070 = vpop.permute.xlu0 %3069
    %3071 = vrot.lane.b32.xlu0 %v2804, 64
    %v3072 = vpop.permute.xlu0 %3071
    %3073 = vrot.lane.b32.xlu0 %v2805, 64
    %v3074 = vpop.permute.xlu0 %3073
    %3075 = vrot.lane.b32.xlu0 %v2806, 64
    %v3076 = vpop.permute.xlu0 %3075
    %3077 = vrot.lane.b32.xlu0 %v2807, 64
    %v3078 = vpop.permute.xlu0 %3077
    %3079 = vrot.lane.b32.xlu0 %v2808, 64
    %v3080 = vpop.permute.xlu0 %3079
    %3081 = vrot.lane.b32.xlu0 %v2809, 64
    %v3082 = vpop.permute.xlu0 %3081
    %3083 = vrot.lane.b32.xlu0 %v2810, 64
    %v3084 = vpop.permute.xlu0 %3083
    %3085 = vrot.lane.b32.xlu0 %v2811, 64
    %v3086 = vpop.permute.xlu0 %3085
    %3087 = vrot.lane.b32.xlu0 %v2812, 64
    %v3088 = vpop.permute.xlu0 %3087
    %3089 = vrot.lane.b32.xlu0 %v2813, 64
    %v3090 = vpop.permute.xlu0 %3089
    %3091 = vrot.lane.b32.xlu0 %v2814, 64
    %v3092 = vpop.permute.xlu0 %3091
    %3093 = vrot.lane.b32.xlu0 %v2815, 64
    %v3094 = vpop.permute.xlu0 %3093
    %3095 = vrot.lane.b32.xlu0 %v2816, 64
    %v3096 = vpop.permute.xlu0 %3095
    %3097 = vrot.lane.b32.xlu0 %v2817, 64
    %v3098 = vpop.permute.xlu0 %3097
    %3099 = vrot.lane.b32.xlu0 %v2818, 64
    %v3100 = vpop.permute.xlu0 %3099
    %3101 = vrot.lane.b32.xlu0 %v2819, 64
    %v3102 = vpop.permute.xlu0 %3101
    %3103 = vrot.lane.b32.xlu0 %v2820, 64
    %v3104 = vpop.permute.xlu0 %3103
    %3105 = vrot.lane.b32.xlu0 %v2821, 64
    %v3106 = vpop.permute.xlu0 %3105
    %3107 = vrot.lane.b32.xlu0 %v2822, 64
    %v3108 = vpop.permute.xlu0 %3107
    %3109 = vrot.lane.b32.xlu0 %v2823, 64
    %v3110 = vpop.permute.xlu0 %3109
    %3111 = vrot.lane.b32.xlu0 %v2824, 64
    %v3112 = vpop.permute.xlu0 %3111
    %v3145 = vsel %vm2479, %v2889, %v3050
    %v3146 = vsel %vm2479, %v2890, %v3052
    %v3147 = vsel %vm2479, %v2891, %v3054
    %v3148 = vsel %vm2479, %v2892, %v3056
    %v3149 = vsel %vm2479, %v2893, %v3058
    %v3150 = vsel %vm2479, %v2894, %v3060
    %v3151 = vsel %vm2479, %v2895, %v3062
    %v3152 = vsel %vm2479, %v2896, %v3064
    %v3153 = vsel %vm2479, %v2897, %v3066
    %v3154 = vsel %vm2479, %v2898, %v3068
    %v3155 = vsel %vm2479, %v2899, %v3070
    %v3156 = vsel %vm2479, %v2900, %v3072
    %v3157 = vsel %vm2479, %v2901, %v3074
    %v3158 = vsel %vm2479, %v2902, %v3076
    %v3159 = vsel %vm2479, %v2903, %v3078
    %v3160 = vsel %vm2479, %v2904, %v3080
    %v3161 = vsel %vm2479, %v2905, %v3082
    %v3162 = vsel %vm2479, %v2906, %v3084
    %v3163 = vsel %vm2479, %v2907, %v3086
    %v3164 = vsel %vm2479, %v2908, %v3088
    %v3165 = vsel %vm2479, %v2909, %v3090
    %v3166 = vsel %vm2479, %v2910, %v3092
    %v3167 = vsel %vm2479, %v2911, %v3094
    %v3168 = vsel %vm2479, %v2912, %v3096
    %v3169 = vsel %vm2479, %v2913, %v3098
    %v3170 = vsel %vm2479, %v2914, %v3100
    %v3171 = vsel %vm2479, %v2915, %v3102
    %v3172 = vsel %vm2479, %v2916, %v3104
    %v3173 = vsel %vm2479, %v2917, %v3106
    %v3174 = vsel %vm2479, %v2918, %v3108
    %v3175 = vsel %vm2479, %v2919, %v3110
    %v3176 = vsel %vm2479, %v2920, %v3112
    %v3177 = vpack.c.bf16 %v3146, %v3145
    %v3178 = vpack.c.bf16 %v2986, %v2985
    %v3179 = vpack.c.bf16 %v3148, %v3147
    %v3180 = vpack.c.bf16 %v2988, %v2987
    %v3181 = vpack.c.bf16 %v3150, %v3149
    %v3182 = vpack.c.bf16 %v2990, %v2989
    %v3183 = vpack.c.bf16 %v3152, %v3151
    %v3184 = vpack.c.bf16 %v2992, %v2991
    %v3185 = vpack.c.bf16 %v3154, %v3153
    %v3186 = vpack.c.bf16 %v2994, %v2993
    %v3187 = vpack.c.bf16 %v3156, %v3155
    %v3188 = vpack.c.bf16 %v2996, %v2995
    %v3189 = vpack.c.bf16 %v3158, %v3157
    %v3190 = vpack.c.bf16 %v2998, %v2997
    %v3191 = vpack.c.bf16 %v3160, %v3159
    %v3192 = vpack.c.bf16 %v3000, %v2999
    %v3193 = vpack.c.bf16 %v3162, %v3161
    %v3194 = vpack.c.bf16 %v3002, %v3001
    %v3195 = vpack.c.bf16 %v3164, %v3163
    %v3196 = vpack.c.bf16 %v3004, %v3003
    %v3197 = vpack.c.bf16 %v3166, %v3165
    %v3198 = vpack.c.bf16 %v3006, %v3005
    %v3199 = vpack.c.bf16 %v3168, %v3167
    %v3200 = vpack.c.bf16 %v3008, %v3007
    %v3201 = vpack.c.bf16 %v3170, %v3169
    %v3202 = vpack.c.bf16 %v3010, %v3009
    %v3203 = vpack.c.bf16 %v3172, %v3171
    %v3204 = vpack.c.bf16 %v3012, %v3011
    %v3205 = vpack.c.bf16 %v3174, %v3173
    %v3206 = vpack.c.bf16 %v3014, %v3013
    %v3207 = vpack.c.bf16 %v3176, %v3175
    %v3208 = vpack.c.bf16 %v3016, %v3015
    %v3209 = vld [vmem:[%s9] sm:$0xf]
    %v3210 = vld [vmem:[%s9 + $0x4] sm:$0xf]
    %v3211 = vld [vmem:[%s9 + $0x8] sm:$0xf]
    %v3212 = vld [vmem:[%s9 + $0xc] sm:$0xf]
    %v3213 = vld [vmem:[%s9 + $0x10] sm:$0xf]
    %v3214 = vld [vmem:[%s9 + $0x14] sm:$0xf]
    %v3215 = vld [vmem:[%s9 + $0x18] sm:$0xf]
    %v3216 = vld [vmem:[%s9 + $0x1c] sm:$0xf]
    %v3217 = vld [vmem:[%s9 + $0x20] sm:$0xf]
    %v3218 = vld [vmem:[%s9 + $0x24] sm:$0xf]
    %v3219 = vld [vmem:[%s9 + $0x28] sm:$0xf]
    %v3220 = vld [vmem:[%s9 + $0x2c] sm:$0xf]
    %v3221 = vld [vmem:[%s9 + $0x30] sm:$0xf]
    %v3222 = vld [vmem:[%s9 + $0x34] sm:$0xf]
    %v3223 = vld [vmem:[%s9 + $0x38] sm:$0xf]
    %v3224 = vld [vmem:[%s9 + $0x3c] sm:$0xf]
    %v3225 = vld [vmem:[%s9 + $0x40] sm:$0xf]
    %v3226 = vld [vmem:[%s9 + $0x44] sm:$0xf]
    %v3227 = vld [vmem:[%s9 + $0x48] sm:$0xf]
    %v3228 = vld [vmem:[%s9 + $0x4c] sm:$0xf]
    %v3229 = vld [vmem:[%s9 + $0x50] sm:$0xf]
    %v3230 = vld [vmem:[%s9 + $0x54] sm:$0xf]
    %v3231 = vld [vmem:[%s9 + $0x58] sm:$0xf]
    %v3232 = vld [vmem:[%s9 + $0x5c] sm:$0xf]
    %v3233 = vld [vmem:[%s10] sm:$0x1]
    %v3235 = vlaneseq
    %v3236 = vshrl.u32 %v3235, 7
    %v3237 = vsub.s32 0, %v3236
    %v3238 = vrot.slane %v3233, %v3237
    %v3264 = vunpack.c.l.b16 %v3209
    %v3265 = vunpack.c.l.b16 %v3210
    %v3266 = vunpack.c.l.b16 %v3211
    %v3267 = vunpack.c.l.b16 %v3212
    %v3268 = vunpack.c.l.b16 %v3213
    %v3269 = vunpack.c.l.b16 %v3214
    %v3270 = vunpack.c.l.b16 %v3215
    %v3271 = vunpack.c.l.b16 %v3216
    %v3272 = vunpack.c.l.b16 %v3217
    %v3273 = vunpack.c.l.b16 %v3218
    %v3274 = vunpack.c.l.b16 %v3219
    %v3275 = vunpack.c.l.b16 %v3220
    %v3276 = vunpack.c.l.b16 %v3221
    %v3277 = vunpack.c.l.b16 %v3222
    %v3278 = vunpack.c.l.b16 %v3223
    %v3279 = vunpack.c.l.b16 %v3224
    %v3280 = vunpack.c.l.b16 %v3225
    %v3281 = vunpack.c.l.b16 %v3226
    %v3282 = vunpack.c.l.b16 %v3227
    %v3283 = vunpack.c.l.b16 %v3228
    %v3284 = vunpack.c.l.b16 %v3229
    %v3285 = vunpack.c.l.b16 %v3230
    %v3286 = vunpack.c.l.b16 %v3231
    %v3287 = vunpack.c.l.b16 %v3232
    %v3288 = vpack.c.b16 %v3265, %v3264
    %v3289 = vpack.c.b16 %v3267, %v3266
    %v3290 = vpack.c.b16 %v3269, %v3268
    %v3291 = vpack.c.b16 %v3271, %v3270
    %v3292 = vpack.c.b16 %v3273, %v3272
    %v3293 = vpack.c.b16 %v3275, %v3274
    %v3294 = vpack.c.b16 %v3277, %v3276
    %v3295 = vpack.c.b16 %v3279, %v3278
    %v3296 = vpack.c.b16 %v3281, %v3280
    %v3297 = vpack.c.b16 %v3283, %v3282
    %v3298 = vpack.c.b16 %v3285, %v3284
    %v3299 = vpack.c.b16 %v3287, %v3286
    %v3313 = vsel %vm2479, %v3178, 0
    %v3316 = vsel %vm2479, %v3180, 0
    %v3319 = vsel %vm2479, %v3182, 0
    %v3322 = vsel %vm2479, %v3184, 0
    %v3325 = vsel %vm2479, %v3186, 0
    %v3328 = vsel %vm2479, %v3188, 0
    %v3331 = vsel %vm2479, %v3190, 0
    %v3334 = vsel %vm2479, %v3192, 0
    %v3337 = vsel %vm2479, %v3194, 0
    %v3340 = vsel %vm2479, %v3196, 0
    %v3343 = vsel %vm2479, %v3198, 0
    %v3346 = vsel %vm2479, %v3200, 0
    %v3349 = vsel %vm2479, %v3202, 0
    %v3352 = vsel %vm2479, %v3204, 0
    %v3355 = vsel %vm2479, %v3206, 0
    %v3358 = vsel %vm2479, %v3208, 0
    %3360 = vmatprep.subr.bf16.mxu0 0
    %3361 = vmatpush1.bf16.msra.mxu0 %v3295
    %3362 = vmatprep.subr.bf16.mxu0 0
    %3363 = vmatpush1.bf16.msra.mxu0 %v3294
    %3364 = vmatprep.subr.bf16.mxu0 0
    %3365 = vmatpush1.bf16.msra.mxu0 %v3293
    %3366 = vmatprep.subr.bf16.mxu0 0
    %3367 = vmatpush1.bf16.msra.mxu0 %v3292
    %3368 = vmatprep.subr.bf16.mxu0 0
    %3369 = vmatpush1.bf16.msra.mxu0 %v3291
    %3370 = vmatprep.subr.bf16.mxu0 0
    %3371 = vmatpush1.bf16.msra.mxu0 %v3290
    %3372 = vmatprep.subr.bf16.mxu0 0
    %3373 = vmatpush1.bf16.msra.mxu0 %v3289
    %3374 = vmatprep.subr.bf16.mxu0 0
    %3375 = vmatpush1.bf16.msra.mxu0 %v3288
    %3376 = vmatprep.subr.bf16.mxu0 0
    %3377 = vmatpush2.bf16.msra.mxu0 0
    %3378 = vmatprep.subr.bf16.mxu0 0
    %3379 = vmatpush2.bf16.msra.mxu0 0
    %3380 = vmatprep.subr.bf16.mxu0 0
    %3381 = vmatpush2.bf16.msra.mxu0 0
    %3382 = vmatprep.subr.bf16.mxu0 0
    %3383 = vmatpush2.bf16.msra.mxu0 0
    %3384 = vmatprep.subr.bf16.mxu0 0
    %3385 = vmatpush2.bf16.msra.mxu0 %v3299
    %3386 = vmatprep.subr.bf16.mxu0 0
    %3387 = vmatpush2.bf16.msra.mxu0 %v3298
    %3388 = vmatprep.subr.bf16.mxu0 0
    %3389 = vmatpush2.bf16.msra.mxu0 %v3297
    %3390 = vmatprep.subr.bf16.mxu0 0
    %3391 = vmatpush2.bf16.msra.mxu0 %v3296
    %3392 = vmatprep.mubr.bf16.mxu0 %v3313
    %3393 = vmatmul.mubr.bf16.gmra.mxu0 %v3177
    %v3394 = vpop.f32.mrf.mxu0
    %v3395 = vadd.f32 %v3238, %v3394
    %v3396 = vpop.f32.mrf.mxu0
    %v3397 = vpop.f32.mrf.mxu0
    %v3398 = vadd.f32 %v3238, %v3397
    %v3399 = vpop.f32.mrf.mxu0
    %3400 = vmatprep.mubr.bf16.mxu0 %v3316
    %3401 = vmatmul.mubr.bf16.gmra.mxu0 %v3179
    %v3402 = vpop.f32.mrf.mxu0
    %v3403 = vadd.f32 %v3238, %v3402
    %v3404 = vpop.f32.mrf.mxu0
    %v3405 = vpop.f32.mrf.mxu0
    %v3406 = vadd.f32 %v3238, %v3405
    %v3407 = vpop.f32.mrf.mxu0
    %3408 = vmatprep.mubr.bf16.mxu0 %v3319
    %3409 = vmatmul.mubr.bf16.gmra.mxu0 %v3181
    %v3410 = vpop.f32.mrf.mxu0
    %v3411 = vadd.f32 %v3238, %v3410
    %v3412 = vpop.f32.mrf.mxu0
    %v3413 = vpop.f32.mrf.mxu0
    %v3414 = vadd.f32 %v3238, %v3413
    %v3415 = vpop.f32.mrf.mxu0
    %3416 = vmatprep.mubr.bf16.mxu0 %v3322
    %3417 = vmatmul.mubr.bf16.gmra.mxu0 %v3183
    %v3418 = vpop.f32.mrf.mxu0
    %v3419 = vadd.f32 %v3238, %v3418
    %v3420 = vpop.f32.mrf.mxu0
    %v3421 = vpop.f32.mrf.mxu0
    %v3422 = vadd.f32 %v3238, %v3421
    %v3423 = vpop.f32.mrf.mxu0
    %3424 = vmatprep.mubr.bf16.mxu0 %v3325
    %3425 = vmatmul.mubr.bf16.gmra.mxu0 %v3185
    %v3426 = vpop.f32.mrf.mxu0
    %v3427 = vadd.f32 %v3238, %v3426
    %v3428 = vpop.f32.mrf.mxu0
    %v3429 = vpop.f32.mrf.mxu0
    %v3430 = vadd.f32 %v3238, %v3429
    %v3431 = vpop.f32.mrf.mxu0
    %3432 = vmatprep.mubr.bf16.mxu0 %v3328
    %3433 = vmatmul.mubr.bf16.gmra.mxu0 %v3187
    %v3434 = vpop.f32.mrf.mxu0
    %v3435 = vadd.f32 %v3238, %v3434
    %v3436 = vpop.f32.mrf.mxu0
    %v3437 = vpop.f32.mrf.mxu0
    %v3438 = vadd.f32 %v3238, %v3437
    %v3439 = vpop.f32.mrf.mxu0
    %3440 = vmatprep.mubr.bf16.mxu0 %v3331
    %3441 = vmatmul.mubr.bf16.gmra.mxu0 %v3189
    %v3442 = vpop.f32.mrf.mxu0
    %v3443 = vadd.f32 %v3238, %v3442
    %v3444 = vpop.f32.mrf.mxu0
    %v3445 = vpop.f32.mrf.mxu0
    %v3446 = vadd.f32 %v3238, %v3445
    %v3447 = vpop.f32.mrf.mxu0
    %3448 = vmatprep.mubr.bf16.mxu0 %v3334
    %3449 = vmatmul.mubr.bf16.gmra.mxu0 %v3191
    %v3450 = vpop.f32.mrf.mxu0
    %v3451 = vadd.f32 %v3238, %v3450
    %v3452 = vpop.f32.mrf.mxu0
    %v3453 = vpop.f32.mrf.mxu0
    %v3454 = vadd.f32 %v3238, %v3453
    %v3455 = vpop.f32.mrf.mxu0
    %3456 = vmatprep.mubr.bf16.mxu0 %v3337
    %3457 = vmatmul.mubr.bf16.gmra.mxu0 %v3193
    %v3458 = vpop.f32.mrf.mxu0
    %v3459 = vadd.f32 %v3238, %v3458
    %v3460 = vpop.f32.mrf.mxu0
    %v3461 = vpop.f32.mrf.mxu0
    %v3462 = vadd.f32 %v3238, %v3461
    %v3463 = vpop.f32.mrf.mxu0
    %3464 = vmatprep.mubr.bf16.mxu0 %v3340
    %3465 = vmatmul.mubr.bf16.gmra.mxu0 %v3195
    %v3466 = vpop.f32.mrf.mxu0
    %v3467 = vadd.f32 %v3238, %v3466
    %v3468 = vpop.f32.mrf.mxu0
    %v3469 = vpop.f32.mrf.mxu0
    %v3470 = vadd.f32 %v3238, %v3469
    %v3471 = vpop.f32.mrf.mxu0
    %3472 = vmatprep.mubr.bf16.mxu0 %v3343
    %3473 = vmatmul.mubr.bf16.gmra.mxu0 %v3197
    %v3474 = vpop.f32.mrf.mxu0
    %v3475 = vadd.f32 %v3238, %v3474
    %v3476 = vpop.f32.mrf.mxu0
    %v3477 = vpop.f32.mrf.mxu0
    %v3478 = vadd.f32 %v3238, %v3477
    %v3479 = vpop.f32.mrf.mxu0
    %3480 = vmatprep.mubr.bf16.mxu0 %v3346
    %3481 = vmatmul.mubr.bf16.gmra.mxu0 %v3199
    %v3482 = vpop.f32.mrf.mxu0
    %v3483 = vadd.f32 %v3238, %v3482
    %v3484 = vpop.f32.mrf.mxu0
    %v3485 = vpop.f32.mrf.mxu0
    %v3486 = vadd.f32 %v3238, %v3485
    %v3487 = vpop.f32.mrf.mxu0
    %3488 = vmatprep.mubr.bf16.mxu0 %v3349
    %3489 = vmatmul.mubr.bf16.gmra.mxu0 %v3201
    %v3490 = vpop.f32.mrf.mxu0
    %v3491 = vadd.f32 %v3238, %v3490
    %v3492 = vpop.f32.mrf.mxu0
    %v3493 = vpop.f32.mrf.mxu0
    %v3494 = vadd.f32 %v3238, %v3493
    %v3495 = vpop.f32.mrf.mxu0
    %3496 = vmatprep.mubr.bf16.mxu0 %v3352
    %3497 = vmatmul.mubr.bf16.gmra.mxu0 %v3203
    %v3498 = vpop.f32.mrf.mxu0
    %v3499 = vadd.f32 %v3238, %v3498
    %v3500 = vpop.f32.mrf.mxu0
    %v3501 = vpop.f32.mrf.mxu0
    %v3502 = vadd.f32 %v3238, %v3501
    %v3503 = vpop.f32.mrf.mxu0
    %3504 = vmatprep.mubr.bf16.mxu0 %v3355
    %3505 = vmatmul.mubr.bf16.gmra.mxu0 %v3205
    %v3506 = vpop.f32.mrf.mxu0
    %v3507 = vadd.f32 %v3238, %v3506
    %v3508 = vpop.f32.mrf.mxu0
    %v3509 = vpop.f32.mrf.mxu0
    %v3510 = vadd.f32 %v3238, %v3509
    %v3511 = vpop.f32.mrf.mxu0
    %3512 = vmatprep.mubr.bf16.mxu0 %v3358
    %3513 = vmatmul.mubr.bf16.gmra.mxu0 %v3207
    %v3514 = vpop.f32.mrf.mxu0
    %v3515 = vadd.f32 %v3238, %v3514
    %v3516 = vpop.f32.mrf.mxu0
    %v3517 = vpop.f32.mrf.mxu0
    %v3518 = vadd.f32 %v3238, %v3517
    %v3519 = vpop.f32.mrf.mxu0
    %3520 = vdwg.mxu0
    %v3521 = vmax.f32 %v3395, 0.0
    %v3522 = vmax.f32 %v3398, 0.0
    %v3523 = vmax.f32 %v3403, 0.0
    %v3524 = vmax.f32 %v3406, 0.0
    %v3525 = vmax.f32 %v3411, 0.0
    %v3526 = vmax.f32 %v3414, 0.0
    %v3527 = vmax.f32 %v3419, 0.0
    %v3528 = vmax.f32 %v3422, 0.0
    %v3529 = vmax.f32 %v3427, 0.0
    %v3530 = vmax.f32 %v3430, 0.0
    %v3531 = vmax.f32 %v3435, 0.0
    %v3532 = vmax.f32 %v3438, 0.0
    %v3533 = vmax.f32 %v3443, 0.0
    %v3534 = vmax.f32 %v3446, 0.0
    %v3535 = vmax.f32 %v3451, 0.0
    %v3536 = vmax.f32 %v3454, 0.0
    %v3537 = vmax.f32 %v3459, 0.0
    %v3538 = vmax.f32 %v3462, 0.0
    %v3539 = vmax.f32 %v3467, 0.0
    %v3540 = vmax.f32 %v3470, 0.0
    %v3541 = vmax.f32 %v3475, 0.0
    %v3542 = vmax.f32 %v3478, 0.0
    %v3543 = vmax.f32 %v3483, 0.0
    %v3544 = vmax.f32 %v3486, 0.0
    %v3545 = vmax.f32 %v3491, 0.0
    %v3546 = vmax.f32 %v3494, 0.0
    %v3547 = vmax.f32 %v3499, 0.0
    %v3548 = vmax.f32 %v3502, 0.0
    %v3549 = vmax.f32 %v3507, 0.0
    %v3550 = vmax.f32 %v3510, 0.0
    %v3551 = vmax.f32 %v3515, 0.0
    %v3552 = vmax.f32 %v3518, 0.0
    %v3553 = vld [vmem:[%s11] sm:$0x7]
    %v3554 = vrot.slane %v3521, 7
    %v3555 = vrot.slane %v3537, 7
    %v3556 = vrot.slane %v3522, 7
    %v3557 = vrot.slane %v3538, 7
    %v3558 = vrot.slane %v3523, 7
    %v3559 = vrot.slane %v3539, 7
    %v3560 = vrot.slane %v3524, 7
    %v3561 = vrot.slane %v3540, 7
    %v3562 = vrot.slane %v3525, 7
    %v3563 = vrot.slane %v3541, 7
    %v3564 = vrot.slane %v3526, 7
    %v3565 = vrot.slane %v3542, 7
    %v3566 = vrot.slane %v3527, 7
    %v3567 = vrot.slane %v3543, 7
    %v3568 = vrot.slane %v3528, 7
    %v3569 = vrot.slane %v3544, 7
    %v3570 = vrot.slane %v3529, 7
    %v3571 = vrot.slane %v3545, 7
    %v3572 = vrot.slane %v3530, 7
    %v3573 = vrot.slane %v3546, 7
    %v3574 = vrot.slane %v3531, 7
    %v3575 = vrot.slane %v3547, 7
    %v3576 = vrot.slane %v3532, 7
    %v3577 = vrot.slane %v3548, 7
    %v3578 = vrot.slane %v3533, 7
    %v3579 = vrot.slane %v3549, 7
    %v3580 = vrot.slane %v3534, 7
    %v3581 = vrot.slane %v3550, 7
    %v3582 = vrot.slane %v3535, 7
    %v3583 = vrot.slane %v3551, 7
    %v3584 = vrot.slane %v3536, 7
    %v3585 = vrot.slane %v3552, 7
    %v3586 = vsel %vm290, %v3582, %v3584
    %v3587 = vsel %vm290, %v3583, %v3585
    %v3588 = vsel %vm290, %v3580, %v3582
    %v3589 = vsel %vm290, %v3581, %v3583
    %v3590 = vsel %vm290, %v3578, %v3580
    %v3591 = vsel %vm290, %v3579, %v3581
    %v3592 = vsel %vm290, %v3576, %v3578
    %v3593 = vsel %vm290, %v3577, %v3579
    %v3594 = vsel %vm290, %v3574, %v3576
    %v3595 = vsel %vm290, %v3575, %v3577
    %v3596 = vsel %vm290, %v3572, %v3574
    %v3597 = vsel %vm290, %v3573, %v3575
    %v3598 = vsel %vm290, %v3570, %v3572
    %v3599 = vsel %vm290, %v3571, %v3573
    %v3600 = vsel %vm290, %v3568, %v3570
    %v3601 = vsel %vm290, %v3569, %v3571
    %v3602 = vsel %vm290, %v3566, %v3568
    %v3603 = vsel %vm290, %v3567, %v3569
    %v3604 = vsel %vm290, %v3564, %v3566
    %v3605 = vsel %vm290, %v3565, %v3567
    %v3606 = vsel %vm290, %v3562, %v3564
    %v3607 = vsel %vm290, %v3563, %v3565
    %v3608 = vsel %vm290, %v3560, %v3562
    %v3609 = vsel %vm290, %v3561, %v3563
    %v3610 = vsel %vm290, %v3558, %v3560
    %v3611 = vsel %vm290, %v3559, %v3561
    %v3612 = vsel %vm290, %v3556, %v3558
    %v3613 = vsel %vm290, %v3557, %v3559
    %v3614 = vsel %vm290, %v3554, %v3556
    %v3615 = vsel %vm290, %v3555, %v3557
    %v3616 = vsel %vm290, %v3584, %v3554
    %v3617 = vsel %vm290, %v3585, %v3555
    %v3618 = vsel %vm242, 0.0, %v3616
    %v3619 = vsel %vm243, 0.0, %v3614
    %v3620 = vsel %vm244, 0.0, %v3612
    %v3621 = vsel %vm245, 0.0, %v3610
    %v3622 = vsel %vm246, 0.0, %v3608
    %v3623 = vsel %vm247, 0.0, %v3606
    %v3624 = vsel %vm248, 0.0, %v3604
    %v3625 = vsel %vm249, 0.0, %v3602
    %v3626 = vsel %vm250, 0.0, %v3600
    %v3627 = vsel %vm251, 0.0, %v3598
    %v3628 = vsel %vm252, 0.0, %v3596
    %v3629 = vsel %vm253, 0.0, %v3594
    %v3630 = vsel %vm254, 0.0, %v3592
    %v3631 = vsel %vm255, 0.0, %v3590
    %v3632 = vsel %vm256, 0.0, %v3588
    %v3633 = vsel %vm257, 0.0, %v3586
    %v3634 = vsel %vm242, 0.0, %v3617
    %v3635 = vsel %vm243, 0.0, %v3615
    %v3636 = vsel %vm244, 0.0, %v3613
    %v3637 = vsel %vm245, 0.0, %v3611
    %v3638 = vsel %vm246, 0.0, %v3609
    %v3639 = vsel %vm247, 0.0, %v3607
    %v3640 = vsel %vm248, 0.0, %v3605
    %v3641 = vsel %vm249, 0.0, %v3603
    %v3642 = vsel %vm250, 0.0, %v3601
    %v3643 = vsel %vm251, 0.0, %v3599
    %v3644 = vsel %vm252, 0.0, %v3597
    %v3645 = vsel %vm253, 0.0, %v3595
    %v3646 = vsel %vm254, 0.0, %v3593
    %v3647 = vsel %vm255, 0.0, %v3591
    %v3648 = vsel %vm256, 0.0, %v3589
    %v3649 = vsel %vm257, 0.0, %v3587
    %v3650 = vrot.slane %v3521, 1
    %v3651 = vrot.slane %v3537, 1
    %v3652 = vrot.slane %v3522, 1
    %v3653 = vrot.slane %v3538, 1
    %v3654 = vrot.slane %v3523, 1
    %v3655 = vrot.slane %v3539, 1
    %v3656 = vrot.slane %v3524, 1
    %v3657 = vrot.slane %v3540, 1
    %v3658 = vrot.slane %v3525, 1
    %v3659 = vrot.slane %v3541, 1
    %v3660 = vrot.slane %v3526, 1
    %v3661 = vrot.slane %v3542, 1
    %v3662 = vrot.slane %v3527, 1
    %v3663 = vrot.slane %v3543, 1
    %v3664 = vrot.slane %v3528, 1
    %v3665 = vrot.slane %v3544, 1
    %v3666 = vrot.slane %v3529, 1
    %v3667 = vrot.slane %v3545, 1
    %v3668 = vrot.slane %v3530, 1
    %v3669 = vrot.slane %v3546, 1
    %v3670 = vrot.slane %v3531, 1
    %v3671 = vrot.slane %v3547, 1
    %v3672 = vrot.slane %v3532, 1
    %v3673 = vrot.slane %v3548, 1
    %v3674 = vrot.slane %v3533, 1
    %v3675 = vrot.slane %v3549, 1
    %v3676 = vrot.slane %v3534, 1
    %v3677 = vrot.slane %v3550, 1
    %v3678 = vrot.slane %v3535, 1
    %v3679 = vrot.slane %v3551, 1
    %v3680 = vrot.slane %v3536, 1
    %v3681 = vrot.slane %v3552, 1
    %v3682 = vsel %vm403, %v3678, %v3680
    %v3683 = vsel %vm403, %v3679, %v3681
    %v3684 = vsel %vm403, %v3676, %v3678
    %v3685 = vsel %vm403, %v3677, %v3679
    %v3686 = vsel %vm403, %v3674, %v3676
    %v3687 = vsel %vm403, %v3675, %v3677
    %v3688 = vsel %vm403, %v3672, %v3674
    %v3689 = vsel %vm403, %v3673, %v3675
    %v3690 = vsel %vm403, %v3670, %v3672
    %v3691 = vsel %vm403, %v3671, %v3673
    %v3692 = vsel %vm403, %v3668, %v3670
    %v3693 = vsel %vm403, %v3669, %v3671
    %v3694 = vsel %vm403, %v3666, %v3668
    %v3695 = vsel %vm403, %v3667, %v3669
    %v3696 = vsel %vm403, %v3664, %v3666
    %v3697 = vsel %vm403, %v3665, %v3667
    %v3698 = vsel %vm403, %v3662, %v3664
    %v3699 = vsel %vm403, %v3663, %v3665
    %v3700 = vsel %vm403, %v3660, %v3662
    %v3701 = vsel %vm403, %v3661, %v3663
    %v3702 = vsel %vm403, %v3658, %v3660
    %v3703 = vsel %vm403, %v3659, %v3661
    %v3704 = vsel %vm403, %v3656, %v3658
    %v3705 = vsel %vm403, %v3657, %v3659
    %v3706 = vsel %vm403, %v3654, %v3656
    %v3707 = vsel %vm403, %v3655, %v3657
    %v3708 = vsel %vm403, %v3652, %v3654
    %v3709 = vsel %vm403, %v3653, %v3655
    %v3710 = vsel %vm403, %v3650, %v3652
    %v3711 = vsel %vm403, %v3651, %v3653
    %v3712 = vsel %vm403, %v3680, %v3650
    %v3713 = vsel %vm403, %v3681, %v3651
    %v3714 = vsel %vm355, 0.0, %v3710
    %v3715 = vsel %vm356, 0.0, %v3708
    %v3716 = vsel %vm357, 0.0, %v3706
    %v3717 = vsel %vm358, 0.0, %v3704
    %v3718 = vsel %vm359, 0.0, %v3702
    %v3719 = vsel %vm360, 0.0, %v3700
    %v3720 = vsel %vm361, 0.0, %v3698
    %v3721 = vsel %vm362, 0.0, %v3696
    %v3722 = vsel %vm363, 0.0, %v3694
    %v3723 = vsel %vm364, 0.0, %v3692
    %v3724 = vsel %vm365, 0.0, %v3690
    %v3725 = vsel %vm366, 0.0, %v3688
    %v3726 = vsel %vm367, 0.0, %v3686
    %v3727 = vsel %vm368, 0.0, %v3684
    %v3728 = vsel %vm369, 0.0, %v3682
    %v3729 = vsel %vm370, 0.0, %v3712
    %v3730 = vsel %vm355, 0.0, %v3711
    %v3731 = vsel %vm356, 0.0, %v3709
    %v3732 = vsel %vm357, 0.0, %v3707
    %v3733 = vsel %vm358, 0.0, %v3705
    %v3734 = vsel %vm359, 0.0, %v3703
    %v3735 = vsel %vm360, 0.0, %v3701
    %v3736 = vsel %vm361, 0.0, %v3699
    %v3737 = vsel %vm362, 0.0, %v3697
    %v3738 = vsel %vm363, 0.0, %v3695
    %v3739 = vsel %vm364, 0.0, %v3693
    %v3740 = vsel %vm365, 0.0, %v3691
    %v3741 = vsel %vm366, 0.0, %v3689
    %v3742 = vsel %vm367, 0.0, %v3687
    %v3743 = vsel %vm368, 0.0, %v3685
    %v3744 = vsel %vm369, 0.0, %v3683
    %v3745 = vsel %vm370, 0.0, %v3713
    %v3746 = vlaneseq
    %v3747 = vshrl.u32 %v3746, 7
    %v3748 = vsub.s32 0, %v3747
    %v3749 = vrot.slane %v3553, %v3748
    %v3750 = vmul.f32 %v3618, %v3749
    %v3751 = vmul.f32 %v3619, %v3749
    %v3752 = vmul.f32 %v3620, %v3749
    %v3753 = vmul.f32 %v3621, %v3749
    %v3754 = vmul.f32 %v3622, %v3749
    %v3755 = vmul.f32 %v3623, %v3749
    %v3756 = vmul.f32 %v3624, %v3749
    %v3757 = vmul.f32 %v3625, %v3749
    %v3758 = vmul.f32 %v3626, %v3749
    %v3759 = vmul.f32 %v3627, %v3749
    %v3760 = vmul.f32 %v3628, %v3749
    %v3761 = vmul.f32 %v3629, %v3749
    %v3762 = vmul.f32 %v3630, %v3749
    %v3763 = vmul.f32 %v3631, %v3749
    %v3764 = vmul.f32 %v3632, %v3749
    %v3765 = vmul.f32 %v3633, %v3749
    %v3766 = vmul.f32 %v3634, %v3749
    %v3767 = vmul.f32 %v3635, %v3749
    %v3768 = vmul.f32 %v3636, %v3749
    %v3769 = vmul.f32 %v3637, %v3749
    %v3770 = vmul.f32 %v3638, %v3749
    %v3771 = vmul.f32 %v3639, %v3749
    %v3772 = vmul.f32 %v3640, %v3749
    %v3773 = vmul.f32 %v3641, %v3749
    %v3774 = vmul.f32 %v3642, %v3749
    %v3775 = vmul.f32 %v3643, %v3749
    %v3776 = vmul.f32 %v3644, %v3749
    %v3777 = vmul.f32 %v3645, %v3749
    %v3778 = vmul.f32 %v3646, %v3749
    %v3779 = vmul.f32 %v3647, %v3749
    %v3780 = vmul.f32 %v3648, %v3749
    %v3781 = vmul.f32 %v3649, %v3749
    %v3782 = vlaneseq
    %v3783 = vshrl.u32 %v3782, 7
    %v3784 = vsub.s32 1, %v3783
    %v3785 = vrot.slane %v3553, %v3784
    %v3786 = vmul.f32 %v3521, %v3785
    %v3787 = vmul.f32 %v3522, %v3785
    %v3788 = vmul.f32 %v3523, %v3785
    %v3789 = vmul.f32 %v3524, %v3785
    %v3790 = vmul.f32 %v3525, %v3785
    %v3791 = vmul.f32 %v3526, %v3785
    %v3792 = vmul.f32 %v3527, %v3785
    %v3793 = vmul.f32 %v3528, %v3785
    %v3794 = vmul.f32 %v3529, %v3785
    %v3795 = vmul.f32 %v3530, %v3785
    %v3796 = vmul.f32 %v3531, %v3785
    %v3797 = vmul.f32 %v3532, %v3785
    %v3798 = vmul.f32 %v3533, %v3785
    %v3799 = vmul.f32 %v3534, %v3785
    %v3800 = vmul.f32 %v3535, %v3785
    %v3801 = vmul.f32 %v3536, %v3785
    %v3802 = vmul.f32 %v3537, %v3785
    %v3803 = vmul.f32 %v3538, %v3785
    %v3804 = vmul.f32 %v3539, %v3785
    %v3805 = vmul.f32 %v3540, %v3785
    %v3806 = vmul.f32 %v3541, %v3785
    %v3807 = vmul.f32 %v3542, %v3785
    %v3808 = vmul.f32 %v3543, %v3785
    %v3809 = vmul.f32 %v3544, %v3785
    %v3810 = vmul.f32 %v3545, %v3785
    %v3811 = vmul.f32 %v3546, %v3785
    %v3812 = vmul.f32 %v3547, %v3785
    %v3813 = vmul.f32 %v3548, %v3785
    %v3814 = vmul.f32 %v3549, %v3785
    %v3815 = vmul.f32 %v3550, %v3785
    %v3816 = vmul.f32 %v3551, %v3785
    %v3817 = vmul.f32 %v3552, %v3785
    %v3818 = vadd.f32 %v3750, %v3786
    %v3819 = vadd.f32 %v3751, %v3787
    %v3820 = vadd.f32 %v3752, %v3788
    %v3821 = vadd.f32 %v3753, %v3789
    %v3822 = vadd.f32 %v3754, %v3790
    %v3823 = vadd.f32 %v3755, %v3791
    %v3824 = vadd.f32 %v3756, %v3792
    %v3825 = vadd.f32 %v3757, %v3793
    %v3826 = vadd.f32 %v3758, %v3794
    %v3827 = vadd.f32 %v3759, %v3795
    %v3828 = vadd.f32 %v3760, %v3796
    %v3829 = vadd.f32 %v3761, %v3797
    %v3830 = vadd.f32 %v3762, %v3798
    %v3831 = vadd.f32 %v3763, %v3799
    %v3832 = vadd.f32 %v3764, %v3800
    %v3833 = vadd.f32 %v3765, %v3801
    %v3834 = vadd.f32 %v3766, %v3802
    %v3835 = vadd.f32 %v3767, %v3803
    %v3836 = vadd.f32 %v3768, %v3804
    %v3837 = vadd.f32 %v3769, %v3805
    %v3838 = vadd.f32 %v3770, %v3806
    %v3839 = vadd.f32 %v3771, %v3807
    %v3840 = vadd.f32 %v3772, %v3808
    %v3841 = vadd.f32 %v3773, %v3809
    %v3842 = vadd.f32 %v3774, %v3810
    %v3843 = vadd.f32 %v3775, %v3811
    %v3844 = vadd.f32 %v3776, %v3812
    %v3845 = vadd.f32 %v3777, %v3813
    %v3846 = vadd.f32 %v3778, %v3814
    %v3847 = vadd.f32 %v3779, %v3815
    %v3848 = vadd.f32 %v3780, %v3816
    %v3849 = vadd.f32 %v3781, %v3817
    %v3850 = vlaneseq
    %v3851 = vshrl.u32 %v3850, 7
    %v3852 = vsub.s32 2, %v3851
    %v3853 = vrot.slane %v3553, %v3852
    %v3854 = vmul.f32 %v3714, %v3853
    %v3855 = vmul.f32 %v3715, %v3853
    %v3856 = vmul.f32 %v3716, %v3853
    %v3857 = vmul.f32 %v3717, %v3853
    %v3858 = vmul.f32 %v3718, %v3853
    %v3859 = vmul.f32 %v3719, %v3853
    %v3860 = vmul.f32 %v3720, %v3853
    %v3861 = vmul.f32 %v3721, %v3853
    %v3862 = vmul.f32 %v3722, %v3853
    %v3863 = vmul.f32 %v3723, %v3853
    %v3864 = vmul.f32 %v3724, %v3853
    %v3865 = vmul.f32 %v3725, %v3853
    %v3866 = vmul.f32 %v3726, %v3853
    %v3867 = vmul.f32 %v3727, %v3853
    %v3868 = vmul.f32 %v3728, %v3853
    %v3869 = vmul.f32 %v3729, %v3853
    %v3870 = vmul.f32 %v3730, %v3853
    %v3871 = vmul.f32 %v3731, %v3853
    %v3872 = vmul.f32 %v3732, %v3853
    %v3873 = vmul.f32 %v3733, %v3853
    %v3874 = vmul.f32 %v3734, %v3853
    %v3875 = vmul.f32 %v3735, %v3853
    %v3876 = vmul.f32 %v3736, %v3853
    %v3877 = vmul.f32 %v3737, %v3853
    %v3878 = vmul.f32 %v3738, %v3853
    %v3879 = vmul.f32 %v3739, %v3853
    %v3880 = vmul.f32 %v3740, %v3853
    %v3881 = vmul.f32 %v3741, %v3853
    %v3882 = vmul.f32 %v3742, %v3853
    %v3883 = vmul.f32 %v3743, %v3853
    %v3884 = vmul.f32 %v3744, %v3853
    %v3885 = vmul.f32 %v3745, %v3853
    %v3886 = vadd.f32 %v3818, %v3854
    %v3887 = vadd.f32 %v3819, %v3855
    %v3888 = vadd.f32 %v3820, %v3856
    %v3889 = vadd.f32 %v3821, %v3857
    %v3890 = vadd.f32 %v3822, %v3858
    %v3891 = vadd.f32 %v3823, %v3859
    %v3892 = vadd.f32 %v3824, %v3860
    %v3893 = vadd.f32 %v3825, %v3861
    %v3894 = vadd.f32 %v3826, %v3862
    %v3895 = vadd.f32 %v3827, %v3863
    %v3896 = vadd.f32 %v3828, %v3864
    %v3897 = vadd.f32 %v3829, %v3865
    %v3898 = vadd.f32 %v3830, %v3866
    %v3899 = vadd.f32 %v3831, %v3867
    %v3900 = vadd.f32 %v3832, %v3868
    %v3901 = vadd.f32 %v3833, %v3869
    %v3902 = vadd.f32 %v3834, %v3870
    %v3903 = vadd.f32 %v3835, %v3871
    %v3904 = vadd.f32 %v3836, %v3872
    %v3905 = vadd.f32 %v3837, %v3873
    %v3906 = vadd.f32 %v3838, %v3874
    %v3907 = vadd.f32 %v3839, %v3875
    %v3908 = vadd.f32 %v3840, %v3876
    %v3909 = vadd.f32 %v3841, %v3877
    %v3910 = vadd.f32 %v3842, %v3878
    %v3911 = vadd.f32 %v3843, %v3879
    %v3912 = vadd.f32 %v3844, %v3880
    %v3913 = vadd.f32 %v3845, %v3881
    %v3914 = vadd.f32 %v3846, %v3882
    %v3915 = vadd.f32 %v3847, %v3883
    %v3916 = vadd.f32 %v3848, %v3884
    %v3917 = vadd.f32 %v3849, %v3885
    %3918 = vadd.xlane.f32.xlu0 %v3886
    %v3919 = vpop.xlane.xlu0 %3918
    %3920 = vadd.xlane.f32.xlu0 %v3887
    %v3921 = vpop.xlane.xlu0 %3920
    %3922 = vadd.xlane.f32.xlu0 %v3888
    %v3923 = vpop.xlane.xlu0 %3922
    %3924 = vadd.xlane.f32.xlu0 %v3889
    %v3925 = vpop.xlane.xlu0 %3924
    %3926 = vadd.xlane.f32.xlu0 %v3890
    %v3927 = vpop.xlane.xlu0 %3926
    %3928 = vadd.xlane.f32.xlu0 %v3891
    %v3929 = vpop.xlane.xlu0 %3928
    %3930 = vadd.xlane.f32.xlu0 %v3892
    %v3931 = vpop.xlane.xlu0 %3930
    %3932 = vadd.xlane.f32.xlu0 %v3893
    %v3933 = vpop.xlane.xlu0 %3932
    %3934 = vadd.xlane.f32.xlu0 %v3894
    %v3935 = vpop.xlane.xlu0 %3934
    %3936 = vadd.xlane.f32.xlu0 %v3895
    %v3937 = vpop.xlane.xlu0 %3936
    %3938 = vadd.xlane.f32.xlu0 %v3896
    %v3939 = vpop.xlane.xlu0 %3938
    %3940 = vadd.xlane.f32.xlu0 %v3897
    %v3941 = vpop.xlane.xlu0 %3940
    %3942 = vadd.xlane.f32.xlu0 %v3898
    %v3943 = vpop.xlane.xlu0 %3942
    %3944 = vadd.xlane.f32.xlu0 %v3899
    %v3945 = vpop.xlane.xlu0 %3944
    %3946 = vadd.xlane.f32.xlu0 %v3900
    %v3947 = vpop.xlane.xlu0 %3946
    %3948 = vadd.xlane.f32.xlu0 %v3901
    %v3949 = vpop.xlane.xlu0 %3948
    %3950 = vadd.xlane.f32.xlu0 %v3902
    %v3951 = vpop.xlane.xlu0 %3950
    %3952 = vadd.xlane.f32.xlu0 %v3903
    %v3953 = vpop.xlane.xlu0 %3952
    %3954 = vadd.xlane.f32.xlu0 %v3904
    %v3955 = vpop.xlane.xlu0 %3954
    %3956 = vadd.xlane.f32.xlu0 %v3905
    %v3957 = vpop.xlane.xlu0 %3956
    %3958 = vadd.xlane.f32.xlu0 %v3906
    %v3959 = vpop.xlane.xlu0 %3958
    %3960 = vadd.xlane.f32.xlu0 %v3907
    %v3961 = vpop.xlane.xlu0 %3960
    %3962 = vadd.xlane.f32.xlu0 %v3908
    %v3963 = vpop.xlane.xlu0 %3962
    %3964 = vadd.xlane.f32.xlu0 %v3909
    %v3965 = vpop.xlane.xlu0 %3964
    %3966 = vadd.xlane.f32.xlu0 %v3910
    %v3967 = vpop.xlane.xlu0 %3966
    %3968 = vadd.xlane.f32.xlu0 %v3911
    %v3969 = vpop.xlane.xlu0 %3968
    %3970 = vadd.xlane.f32.xlu0 %v3912
    %v3971 = vpop.xlane.xlu0 %3970
    %3972 = vadd.xlane.f32.xlu0 %v3913
    %v3973 = vpop.xlane.xlu0 %3972
    %3974 = vadd.xlane.f32.xlu0 %v3914
    %v3975 = vpop.xlane.xlu0 %3974
    %3976 = vadd.xlane.f32.xlu0 %v3915
    %v3977 = vpop.xlane.xlu0 %3976
    %3978 = vadd.xlane.f32.xlu0 %v3916
    %v3979 = vpop.xlane.xlu0 %3978
    %3980 = vadd.xlane.f32.xlu0 %v3917
    %v3981 = vpop.xlane.xlu0 %3980
    %v3982 = vld [vmem:[#allocation2] sm:$0x1]
    %s3983 = vtos %v3982
    %v3984 = vstv %s3983
    %v3985 = vadd.f32 %v3919, %v3984
    %v3986 = vadd.f32 %v3921, %v3984
    %v3987 = vadd.f32 %v3923, %v3984
    %v3988 = vadd.f32 %v3925, %v3984
    %v3989 = vadd.f32 %v3927, %v3984
    %v3990 = vadd.f32 %v3929, %v3984
    %v3991 = vadd.f32 %v3931, %v3984
    %v3992 = vadd.f32 %v3933, %v3984
    %v3993 = vadd.f32 %v3935, %v3984
    %v3994 = vadd.f32 %v3937, %v3984
    %v3995 = vadd.f32 %v3939, %v3984
    %v3996 = vadd.f32 %v3941, %v3984
    %v3997 = vadd.f32 %v3943, %v3984
    %v3998 = vadd.f32 %v3945, %v3984
    %v3999 = vadd.f32 %v3947, %v3984
    %v4000 = vadd.f32 %v3949, %v3984
    %v4001 = vadd.f32 %v3951, %v3984
    %v4002 = vadd.f32 %v3953, %v3984
    %v4003 = vadd.f32 %v3955, %v3984
    %v4004 = vadd.f32 %v3957, %v3984
    %v4005 = vadd.f32 %v3959, %v3984
    %v4006 = vadd.f32 %v3961, %v3984
    %v4007 = vadd.f32 %v3963, %v3984
    %v4008 = vadd.f32 %v3965, %v3984
    %v4009 = vadd.f32 %v3967, %v3984
    %v4010 = vadd.f32 %v3969, %v3984
    %v4011 = vadd.f32 %v3971, %v3984
    %v4012 = vadd.f32 %v3973, %v3984
    %v4013 = vadd.f32 %v3975, %v3984
    %v4014 = vadd.f32 %v3977, %v3984
    %v4015 = vadd.f32 %v3979, %v3984
    %v4016 = vadd.f32 %v3981, %v3984
    %v4049 = vlaneseq
    %v4050 = vand.u32 %v4049, 127
    %v4051 = vlaneseq
    %v4052 = vshrl.u32 %v4051, 7
    %v4053 = vsub.s32 %v4050, %v4052
    %v4054 = vrot.slane %v3985, %v4053
    %v4055 = vadd.s32 %v4050, 4294967288
    %v4056 = vlaneseq
    %v4057 = vshrl.u32 %v4056, 7
    %v4058 = vsub.s32 %v4055, %v4057
    %v4059 = vrot.slane %v3986, %v4058
    %vm4060 = vcmask 130112
    %v4061 = vsel %vm4060, %v4059, %v4054
    %v4062 = vadd.s32 %v4050, 4294967280
    %v4063 = vlaneseq
    %v4064 = vshrl.u32 %v4063, 7
    %v4065 = vsub.s32 %v4062, %v4064
    %v4066 = vrot.slane %v3987, %v4065
    %vm4067 = vcmask 195712
    %v4068 = vsel %vm4067, %v4066, %v4061
    %v4069 = vadd.s32 %v4050, 4294967272
    %v4070 = vlaneseq
    %v4071 = vshrl.u32 %v4070, 7
    %v4072 = vsub.s32 %v4069, %v4071
    %v4073 = vrot.slane %v3988, %v4072
    %vm4074 = vcmask 261312
    %v4075 = vsel %vm4074, %v4073, %v4068
    %v4076 = vadd.s32 %v4050, 4294967264
    %v4077 = vlaneseq
    %v4078 = vshrl.u32 %v4077, 7
    %v4079 = vsub.s32 %v4076, %v4078
    %v4080 = vrot.slane %v3989, %v4079
    %vm4081 = vcmask 326912
    %v4082 = vsel %vm4081, %v4080, %v4075
    %v4083 = vadd.s32 %v4050, 4294967256
    %v4084 = vlaneseq
    %v4085 = vshrl.u32 %v4084, 7
    %v4086 = vsub.s32 %v4083, %v4085
    %v4087 = vrot.slane %v3990, %v4086
    %vm4088 = vcmask 392512
    %v4089 = vsel %vm4088, %v4087, %v4082
    %v4090 = vadd.s32 %v4050, 4294967248
    %v4091 = vlaneseq
    %v4092 = vshrl.u32 %v4091, 7
    %v4093 = vsub.s32 %v4090, %v4092
    %v4094 = vrot.slane %v3991, %v4093
    %vm4095 = vcmask 458112
    %v4096 = vsel %vm4095, %v4094, %v4089
    %v4097 = vadd.s32 %v4050, 4294967240
    %v4098 = vlaneseq
    %v4099 = vshrl.u32 %v4098, 7
    %v4100 = vsub.s32 %v4097, %v4099
    %v4101 = vrot.slane %v3992, %v4100
    %vm4102 = vcmask 523712
    %v4103 = vsel %vm4102, %v4101, %v4096
    %v4104 = vadd.s32 %v4050, 4294967232
    %v4105 = vlaneseq
    %v4106 = vshrl.u32 %v4105, 7
    %v4107 = vsub.s32 %v4104, %v4106
    %v4108 = vrot.slane %v3993, %v4107
    %vm4109 = vcmask 589312
    %v4110 = vsel %vm4109, %v4108, %v4103
    %v4111 = vadd.s32 %v4050, 4294967224
    %v4112 = vlaneseq
    %v4113 = vshrl.u32 %v4112, 7
    %v4114 = vsub.s32 %v4111, %v4113
    %v4115 = vrot.slane %v3994, %v4114
    %vm4116 = vcmask 654912
    %v4117 = vsel %vm4116, %v4115, %v4110
    %v4118 = vadd.s32 %v4050, 4294967216
    %v4119 = vlaneseq
    %v4120 = vshrl.u32 %v4119, 7
    %v4121 = vsub.s32 %v4118, %v4120
    %v4122 = vrot.slane %v3995, %v4121
    %vm4123 = vcmask 720512
    %v4124 = vsel %vm4123, %v4122, %v4117
    %v4125 = vadd.s32 %v4050, 4294967208
    %v4126 = vlaneseq
    %v4127 = vshrl.u32 %v4126, 7
    %v4128 = vsub.s32 %v4125, %v4127
    %v4129 = vrot.slane %v3996, %v4128
    %vm4130 = vcmask 786112
    %v4131 = vsel %vm4130, %v4129, %v4124
    %v4132 = vadd.s32 %v4050, 4294967200
    %v4133 = vlaneseq
    %v4134 = vshrl.u32 %v4133, 7
    %v4135 = vsub.s32 %v4132, %v4134
    %v4136 = vrot.slane %v3997, %v4135
    %vm4137 = vcmask 851712
    %v4138 = vsel %vm4137, %v4136, %v4131
    %v4139 = vadd.s32 %v4050, 4294967192
    %v4140 = vlaneseq
    %v4141 = vshrl.u32 %v4140, 7
    %v4142 = vsub.s32 %v4139, %v4141
    %v4143 = vrot.slane %v3998, %v4142
    %vm4144 = vcmask 917312
    %v4145 = vsel %vm4144, %v4143, %v4138
    %v4146 = vadd.s32 %v4050, 4294967184
    %v4147 = vlaneseq
    %v4148 = vshrl.u32 %v4147, 7
    %v4149 = vsub.s32 %v4146, %v4148
    %v4150 = vrot.slane %v3999, %v4149
    %vm4151 = vcmask 982912
    %v4152 = vsel %vm4151, %v4150, %v4145
    %v4153 = vadd.s32 %v4050, 4294967176
    %v4154 = vlaneseq
    %v4155 = vshrl.u32 %v4154, 7
    %v4156 = vsub.s32 %v4153, %v4155
    %v4157 = vrot.slane %v4000, %v4156
    %vm4158 = vcmask 1048512
    %v4159 = vsel %vm4158, %v4157, %v4152
    %v4160 = vlaneseq
    %v4161 = vshrl.u32 %v4160, 7
    %v4162 = vsub.s32 %v4050, %v4161
    %v4163 = vrot.slane %v4001, %v4162
    %v4164 = vlaneseq
    %v4165 = vshrl.u32 %v4164, 7
    %v4166 = vsub.s32 %v4055, %v4165
    %v4167 = vrot.slane %v4002, %v4166
    %v4168 = vsel %vm4060, %v4167, %v4163
    %v4169 = vlaneseq
    %v4170 = vshrl.u32 %v4169, 7
    %v4171 = vsub.s32 %v4062, %v4170
    %v4172 = vrot.slane %v4003, %v4171
    %v4173 = vsel %vm4067, %v4172, %v4168
    %v4174 = vlaneseq
    %v4175 = vshrl.u32 %v4174, 7
    %v4176 = vsub.s32 %v4069, %v4175
    %v4177 = vrot.slane %v4004, %v4176
    %v4178 = vsel %vm4074, %v4177, %v4173
    %v4179 = vlaneseq
    %v4180 = vshrl.u32 %v4179, 7
    %v4181 = vsub.s32 %v4076, %v4180
    %v4182 = vrot.slane %v4005, %v4181
    %v4183 = vsel %vm4081, %v4182, %v4178
    %v4184 = vlaneseq
    %v4185 = vshrl.u32 %v4184, 7
    %v4186 = vsub.s32 %v4083, %v4185
    %v4187 = vrot.slane %v4006, %v4186
    %v4188 = vsel %vm4088, %v4187, %v4183
    %v4189 = vlaneseq
    %v4190 = vshrl.u32 %v4189, 7
    %v4191 = vsub.s32 %v4090, %v4190
    %v4192 = vrot.slane %v4007, %v4191
    %v4193 = vsel %vm4095, %v4192, %v4188
    %v4194 = vlaneseq
    %v4195 = vshrl.u32 %v4194, 7
    %v4196 = vsub.s32 %v4097, %v4195
    %v4197 = vrot.slane %v4008, %v4196
    %v4198 = vsel %vm4102, %v4197, %v4193
    %v4199 = vlaneseq
    %v4200 = vshrl.u32 %v4199, 7
    %v4201 = vsub.s32 %v4104, %v4200
    %v4202 = vrot.slane %v4009, %v4201
    %v4203 = vsel %vm4109, %v4202, %v4198
    %v4204 = vlaneseq
    %v4205 = vshrl.u32 %v4204, 7
    %v4206 = vsub.s32 %v4111, %v4205
    %v4207 = vrot.slane %v4010, %v4206
    %v4208 = vsel %vm4116, %v4207, %v4203
    %v4209 = vlaneseq
    %v4210 = vshrl.u32 %v4209, 7
    %v4211 = vsub.s32 %v4118, %v4210
    %v4212 = vrot.slane %v4011, %v4211
    %v4213 = vsel %vm4123, %v4212, %v4208
    %v4214 = vlaneseq
    %v4215 = vshrl.u32 %v4214, 7
    %v4216 = vsub.s32 %v4125, %v4215
    %v4217 = vrot.slane %v4012, %v4216
    %v4218 = vsel %vm4130, %v4217, %v4213
    %v4219 = vlaneseq
    %v4220 = vshrl.u32 %v4219, 7
    %v4221 = vsub.s32 %v4132, %v4220
    %v4222 = vrot.slane %v4013, %v4221
    %v4223 = vsel %vm4137, %v4222, %v4218
    %v4224 = vlaneseq
    %v4225 = vshrl.u32 %v4224, 7
    %v4226 = vsub.s32 %v4139, %v4225
    %v4227 = vrot.slane %v4014, %v4226
    %v4228 = vsel %vm4144, %v4227, %v4223
    %v4229 = vlaneseq
    %v4230 = vshrl.u32 %v4229, 7
    %v4231 = vsub.s32 %v4146, %v4230
    %v4232 = vrot.slane %v4015, %v4231
    %v4233 = vsel %vm4151, %v4232, %v4228
    %v4234 = vlaneseq
    %v4235 = vshrl.u32 %v4234, 7
    %v4236 = vsub.s32 %v4153, %v4235
    %v4237 = vrot.slane %v4016, %v4236
    %v4238 = vsel %vm4158, %v4237, %v4233
    %vm4239 = vcmask 1041409
    %v4240 = vsel %vm4239, %v4238, %v4159
    %4242 = vst [vmem:[#allocation3] sm:$0x3] %v4240
    // Predicated region
    $region54: #{raman_forward.1} parent=1 // pred_check
      _
    $region55: #{raman_forward.1} parent=1 // pred_check_branch
      %4244 = sbr.rel (0) target = $region57
    $region56: #{raman_forward.1} parent=1 // pred_region
      %s4246 = ssub.s32 32, 32
      %4247 = vsyncadd [#allocation4], %s4246
      %s4249 = sshll.u32 [#allocation3], 4
      %s4250 = int_to_ptr.vmem [resolvable:$true] %s4249
      %4252 = dma.vmem_to_hbm [thread:$0]  %s4250, 32, %s13, [#allocation4]
    $region57: #{raman_forward.1} parent=1 // pred_fallthru
      _
    // Predicated region
    $region58: #{raman_forward.1} parent=1 // pred_check
      _
    $region59: #{raman_forward.1} parent=1 // pred_check_branch
      %4254 = sbr.rel (0) target = $region61
    $region60: #{raman_forward.1} parent=1 // pred_region
      %4255 = dma.done [#allocation4], 32
    $region61: #{raman_forward.1} parent=1 // pred_fallthru
      _
    %4256 = vsyncpa [#allocation4], 1

</llo_original>
